<compile_context>
chip_gen: v7x
topology: tpu7x:2x2x1
jax: 0.10.0
libtpu: 0.0.40
codegen_flags: <defaults>
</compile_context>

<pallas_src>
import functools

import jax
import jax.numpy as jnp
from jax import lax
from jax.experimental import pallas as pl
from jax.experimental.pallas import tpu as pltpu

EPS = 1e-5


# ------------------------------ Pallas kernel -------------------------------

def _convnet_kernel(x_ref, w_ref, b_ref, o_ref, act_ref, slab_ref, *,
                    blocks, H, W, Cpad, Cout, Btile):
    """Whole ConvNet forward for Btile images, fully VMEM-resident.

    x_ref   : (Btile, Cpad, FLAT)      bf16  channel-major, spatially zero-padded,
                                             flattened input (+1 sentinel each end)
    w_ref   : (blocks, Cout, 9*Cpad)   bf16  conv weights, BN scale folded in;
                                             column = (ky*3+kx)*Cpad + cin
    b_ref   : (blocks, Cout, 1)        f32   folded bias (conv bias + BN)
    o_ref   : (Btile, Cout, H*Wp)      f32   lane-dense transposed output
    act_ref : (Btile, Cpad, FLAT)      bf16  activation buffer (halo stays zero)
    slab_ref: (9*Cpad, H*Wp)           bf16  im2col patch slab (one matmul / block)
    """
    Wp = W + 2
    HWp = H * Wp                      # width-padded flat output span per image
    base = 1 + Wp                     # flat offset of padded (row=1, col=0)

    # Positions whose column is a halo column (0 or Wp-1) compute garbage and
    # must be forced to zero (they are the next block's left/right halo).
    col = lax.broadcasted_iota(jnp.int32, (1, HWp), 1) % Wp
    interior = jnp.logical_and(col != 0, col != Wp - 1)

    # Activation buffer starts as the (already zero-padded) bf16 input; only
    # interior rows are rewritten per block, so halos stay zero throughout.
    act_ref[...] = x_ref[...]

    for blk in range(blocks):
        w_blk = w_ref[blk]            # (Cout, 9*Cpad)  bf16
        b_blk = b_ref[blk]            # (Cout, 1)       f32
        for i in range(Btile):
            # Fused im2col: 9 contiguous shifted copies -> (9*Cpad, HWp) slab.
            for t in range(9):
                ky, kx = divmod(t, 3)
                ofs = (ky - 1) * Wp + (kx - 1)
                slab_ref[t * Cpad:(t + 1) * Cpad, :] = (
                    act_ref[i, :, base + ofs: base + ofs + HWp])
            # One MXU matmul per block: (Cout, 9*Cpad) @ (9*Cpad, HWp), f32 acc.
            z = lax.dot_general(w_blk, slab_ref[...], (((1,), (0,)), ((), ())),
                                preferred_element_type=jnp.float32)
            # Folded bias + ReLU, junk halo columns masked to zero.
            z = jnp.where(interior, jnp.maximum(z + b_blk, 0.0), 0.0)
            if blk + 1 < blocks:
                # Lane-dense writeback: next block's input, never leaves VMEM.
                act_ref[i, :Cout, base: base + HWp] = z.astype(jnp.bfloat16)
                if Cout < Cpad and blk == 0:
                    # Cin > Cout case: clear stale input channels explicitly
                    # (later blocks' padded weight rows are zero anyway).
                    act_ref[i, Cout:Cpad, :] = jnp.zeros(
                        (Cpad - Cout, act_ref.shape[-1]), jnp.bfloat16)
            else:
                o_ref[i] = z


# --------------------------------- Wrapper -----------------------------------

def convnet_forward(x_nchw, w_packed, b_packed):
    """x_nchw: (B, Cin, H, W) f32  ->  (B, Cout, H, W) f32 (eval-mode ConvNet)."""
    B, Cin, H, W = x_nchw.shape
    blocks = int(w_packed.shape[0])
    if blocks == 0:                    # empty nn.Sequential -> identity
        return x_nchw
    _, Cout, K = w_packed.shape
    Cpad = K // 9
    Wp = W + 2
    HWp = H * Wp
    FLAT = (H + 2) * Wp + 2            # +1 sentinel each end for corner taps

    # Lane-dense, channel-major, spatially zero-padded bf16 input slab.
    xp = jnp.pad(x_nchw, ((0, 0), (0, Cpad - Cin), (1, 1), (1, 1)))
    xp = xp.reshape(B, Cpad, (H + 2) * Wp)
    xp = jnp.pad(xp, ((0, 0), (0, 0), (1, 1))).astype(jnp.bfloat16)

    # Batch tile: biggest divisor of B (<=8) so the kernel isn't grid-step
    # overhead bound.  (On v7x an even grid would split across both TCs.)
    Btile = next(t for t in (8, 4, 2, 1) if B % t == 0)

    kernel = functools.partial(_convnet_kernel, blocks=blocks, H=H, W=W,
                               Cpad=Cpad, Cout=Cout, Btile=Btile)
    out = pl.pallas_call(
        kernel,
        out_shape=jax.ShapeDtypeStruct((B, Cout, HWp), jnp.float32),
        grid_spec=pltpu.PrefetchScalarGridSpec(
            num_scalar_prefetch=0,
            grid=(B // Btile,),
            in_specs=[
                pl.BlockSpec((Btile, Cpad, FLAT), lambda b: (b, 0, 0)),
                # Constant index maps: weights/biases DMA'd once, stay resident.
                pl.BlockSpec((blocks, Cout, K), lambda b: (0, 0, 0)),
                pl.BlockSpec((blocks, Cout, 1), lambda b: (0, 0, 0)),
            ],
            out_specs=pl.BlockSpec((Btile, Cout, HWp), lambda b: (b, 0, 0)),
            scratch_shapes=[
                pltpu.VMEM((Btile, Cpad, FLAT), jnp.bfloat16),   # activations
                pltpu.VMEM((9 * Cpad, HWp), jnp.bfloat16),       # im2col slab
            ],
        ),
        compiler_params=pltpu.CompilerParams(
            dimension_semantics=("parallel",)),
    )(xp, w_packed, b_packed)

    # (B, Cout, H*Wp) -> (B, Cout, H, Wp) is a free reshape; dropping the two
    # halo columns gives NCHW.
    return out.reshape(B, Cout, H, Wp)[:, :, :, 1:W + 1]


# ----------------------------- Parameters (synthetic) ------------------------

def init_params(key, in_channels, out_channels, blocks):
    """Deterministic Conv2d + BatchNorm2d (eval) parameters per block."""
    chans_in = [in_channels] + [out_channels] * max(blocks - 1, 0)
    params = []
    for ci in chans_in[:blocks]:
        key, kw, kb, kg, kbeta, km, kv = jax.random.split(key, 7)
        params.append(dict(
            w=0.1 * jax.random.normal(kw, (out_channels, ci, 3, 3), jnp.float32),
            cb=0.05 * jax.random.normal(kb, (out_channels,), jnp.float32),
            g=1.0 + 0.1 * jax.random.normal(kg, (out_channels,), jnp.float32),
            b=0.1 * jax.random.normal(kbeta, (out_channels,), jnp.float32),
            m=0.05 * jax.random.normal(km, (out_channels,), jnp.float32),
            v=1.0 + 0.1 * jax.random.uniform(kv, (out_channels,), jnp.float32),
        ))
    return params


def pack_params(params, in_channels):
    """Fold eval-mode BN into conv weights/bias; pack taps into the K axis."""
    cout = params[0]["w"].shape[0]
    cpad = max(in_channels, cout)
    cpad = -(-cpad // 16) * 16                                   # bf16 sublane pack
    w_list, b_list = [], []
    for p in params:
        ci = p["w"].shape[1]
        scale = p["g"] / jnp.sqrt(p["v"] + EPS)                  # (Cout,)
        bias = p["b"] + (p["cb"] - p["m"]) * scale               # (Cout,)
        w = p["w"] * scale[:, None, None, None]                  # fold BN scale
        # OIHW -> (O, ky, kx, I); zero-pad input channels; flatten taps into K.
        w = jnp.transpose(w, (0, 2, 3, 1))
        w = jnp.pad(w, ((0, 0), (0, 0), (0, 0), (0, cpad - ci)))
        w_list.append(w.reshape(cout, 9 * cpad))
        b_list.append(bias.reshape(cout, 1))
    w_packed = jnp.stack(w_list).astype(jnp.bfloat16)            # (blocks,Cout,9*Cpad)
    b_packed = jnp.stack(b_list).astype(jnp.float32)             # (blocks,Cout,1)
    return w_packed, b_packed


# ------------------------------ Pure-JAX reference ---------------------------

def reference_forward(x_nchw, params):
    x = jnp.transpose(x_nchw, (0, 2, 3, 1)).astype(jnp.float32)
    for p in params:
        w_hwio = jnp.transpose(p["w"], (2, 3, 1, 0))
        z = lax.conv_general_dilated(
            x, w_hwio, window_strides=(1, 1), padding="SAME",
            dimension_numbers=("NHWC", "HWIO", "NHWC"),
            precision=lax.Precision.HIGHEST) + p["cb"]
        z = (z - p["m"]) / jnp.sqrt(p["v"] + EPS) * p["g"] + p["b"]
        x = jnp.maximum(z, 0.0)
    return jnp.transpose(x, (0, 3, 1, 2))


# ----------------------------------- Main ------------------------------------

if __name__ == "__main__":
    B, CIN, COUT, H, W, BLOCKS = 2, 4, 32, 16, 16, 3
    key = jax.random.PRNGKey(0)
    kx, kp = jax.random.split(key)
    x = jax.random.normal(kx, (B, CIN, H, W), jnp.float32)

    params = init_params(kp, CIN, COUT, BLOCKS)
    w_packed, b_packed = pack_params(params, CIN)

    fwd = jax.jit(convnet_forward)
    out = jax.block_until_ready(fwd(x, w_packed, b_packed))
    assert out.shape == (B, COUT, H, W), out.shape

    ref = reference_forward(x, params)
    err = float(jnp.max(jnp.abs(out - ref)))
    tol = 3e-2 * (1.0 + float(jnp.max(jnp.abs(ref))))
    assert err <= tol, f"max abs err {err} (tol {tol})"

    print("KERNEL_OK")
</pallas_src>

<mosaic_0001>
module attributes {stable_mosaic.version = 11 : i64} {
  func.func @_convnet_kernel(%arg0: i32, %arg1: memref<2x32x326xbf16, #tpu.memory_space<vmem>>, %arg2: memref<3x32x288xbf16, #tpu.memory_space<vmem>>, %arg3: memref<3x32x1xf32, #tpu.memory_space<vmem>>, %arg4: memref<2x32x288xf32, #tpu.memory_space<vmem>>, %arg5: memref<2x32x326xbf16, #tpu.memory_space<vmem>>, %arg6: memref<288x288xbf16, #tpu.memory_space<vmem>>) attributes {dimension_semantics = [#tpu.dimension_semantics<parallel>], iteration_bounds = array<i64: 1>, scalar_prefetch = 0 : i64, scratch_operands = 2 : i64, tpu.core_type = #tpu.core_type<tc>, window_params = [{transform_indices = @transform_0, window_bounds = array<i64: 2, 32, 326>}, {pipeline_mode = #tpu.pipeline_mode<synchronous>, transform_indices = @transform_1, window_bounds = array<i64: 3, 32, 288>}, {pipeline_mode = #tpu.pipeline_mode<synchronous>, transform_indices = @transform_2, window_bounds = array<i64: 3, 32, 1>}, {transform_indices = @transform_3, window_bounds = array<i64: 2, 32, 288>}]} {
    %0 = tpu.iota {dimensions = array<i32: 1>} : vector<1x288xi32>
    %c18_i32 = arith.constant 18 : i32
    %c0_i32 = arith.constant 0 : i32
    %1 = arith.cmpi eq, %c18_i32, %c0_i32 : i32
    %c1_i32 = arith.constant 1 : i32
    %2 = arith.select %1, %c1_i32, %c18_i32 : i32
    %3 = vector.broadcast %2 : i32 to vector<1x288xi32>
    %4 = arith.remsi %0, %3 : vector<1x288xi32>
    %c0_i32_0 = arith.constant 0 : i32
    %5 = vector.broadcast %c0_i32_0 : i32 to vector<1x288xi32>
    %6 = arith.cmpi ne, %4, %5 : vector<1x288xi32>
    %c0_i32_1 = arith.constant 0 : i32
    %7 = vector.broadcast %c0_i32_1 : i32 to vector<1x288xi32>
    %8 = arith.cmpi slt, %4, %7 : vector<1x288xi32>
    %c0_i32_2 = arith.constant 0 : i32
    %9 = arith.cmpi slt, %2, %c0_i32_2 : i32
    %10 = vector.broadcast %9 : i1 to vector<1x288xi1>
    %11 = vector.broadcast %10 : vector<1x288xi1> to vector<1x288xi1>
    %12 = arith.xori %8, %11 : vector<1x288xi1>
    %13 = arith.andi %12, %6 : vector<1x288xi1>
    %14 = vector.broadcast %2 : i32 to vector<1x288xi32>
    %15 = arith.addi %4, %14 : vector<1x288xi32>
    %16 = arith.select %13, %15, %4 : vector<1x288xi1>, vector<1x288xi32>
    %c0_i32_3 = arith.constant 0 : i32
    %17 = vector.broadcast %c0_i32_3 : i32 to vector<1x288xi32>
    %18 = arith.cmpi ne, %16, %17 : vector<1x288xi32>
    %c17_i32 = arith.constant 17 : i32
    %19 = vector.broadcast %c17_i32 : i32 to vector<1x288xi32>
    %20 = arith.cmpi ne, %16, %19 : vector<1x288xi32>
    %21 = arith.andi %18, %20 : vector<1x288xi1>
    %c0 = arith.constant 0 : index
    %c0_4 = arith.constant 0 : index
    %c0_5 = arith.constant 0 : index
    %22 = vector.load %arg1[%c0, %c0_4, %c0_5] : memref<2x32x326xbf16, #tpu.memory_space<vmem>>, vector<2x32x326xbf16>
    %c0_6 = arith.constant 0 : index
    %c0_7 = arith.constant 0 : index
    %c0_8 = arith.constant 0 : index
    %23 = vector.load %arg5[%c0_6, %c0_7, %c0_8] : memref<2x32x326xbf16, #tpu.memory_space<vmem>>, vector<2x32x326xbf16>
    tpu.vector_store %arg5[%c0_6, %c0_7, %c0_8], %22 {strides = array<i32>} : memref<2x32x326xbf16, #tpu.memory_space<vmem>>, vector<2x32x326xbf16>,
    %c0_9 = arith.constant 0 : index
    %c0_10 = arith.constant 0 : index
    %c0_11 = arith.constant 0 : index
    %24 = vector.load %arg2[%c0_9, %c0_10, %c0_11] : memref<3x32x288xbf16, #tpu.memory_space<vmem>>, vector<1x32x288xbf16>
    %25 = vector.shape_cast %24 : vector<1x32x288xbf16> to vector<32x288xbf16>
    %c0_12 = arith.constant 0 : index
    %c0_13 = arith.constant 0 : index
    %c0_14 = arith.constant 0 : index
    %26 = vector.load %arg3[%c0_12, %c0_13, %c0_14] : memref<3x32x1xf32, #tpu.memory_space<vmem>>, vector<1x32x1xf32>
    %27 = vector.shape_cast %26 : vector<1x32x1xf32> to vector<32x1xf32>
    %c0_15 = arith.constant 0 : index
    %c0_16 = arith.constant 0 : index
    %c0_17 = arith.constant 0 : index
    %28 = vector.load %arg5[%c0_15, %c0_16, %c0_17] : memref<2x32x326xbf16, #tpu.memory_space<vmem>>, vector<1x32x288xbf16>
    %29 = vector.shape_cast %28 : vector<1x32x288xbf16> to vector<32x288xbf16>
    %c0_18 = arith.constant 0 : index
    %c0_19 = arith.constant 0 : index
    %30 = vector.load %arg6[%c0_18, %c0_19] : memref<288x288xbf16, #tpu.memory_space<vmem>>, vector<32x288xbf16>
    tpu.vector_store %arg6[%c0_18, %c0_19], %29 {strides = array<i32>} : memref<288x288xbf16, #tpu.memory_space<vmem>>, vector<32x288xbf16>,
    %c0_20 = arith.constant 0 : index
    %c0_21 = arith.constant 0 : index
    %c1 = arith.constant 1 : index
    %31 = vector.load %arg5[%c0_20, %c0_21, %c1] : memref<2x32x326xbf16, #tpu.memory_space<vmem>>, vector<1x32x288xbf16>
    %32 = vector.shape_cast %31 : vector<1x32x288xbf16> to vector<32x288xbf16>
    %c32 = arith.constant 32 : index
    %c0_22 = arith.constant 0 : index
    %33 = vector.load %arg6[%c32, %c0_22] : memref<288x288xbf16, #tpu.memory_space<vmem>>, vector<32x288xbf16>
    tpu.vector_store %arg6[%c32, %c0_22], %32 {strides = array<i32>} : memref<288x288xbf16, #tpu.memory_space<vmem>>, vector<32x288xbf16>,
    %c0_23 = arith.constant 0 : index
    %c0_24 = arith.constant 0 : index
    %c2 = arith.constant 2 : index
    %34 = vector.load %arg5[%c0_23, %c0_24, %c2] : memref<2x32x326xbf16, #tpu.memory_space<vmem>>, vector<1x32x288xbf16>
    %35 = vector.shape_cast %34 : vector<1x32x288xbf16> to vector<32x288xbf16>
    %c64 = arith.constant 64 : index
    %c0_25 = arith.constant 0 : index
    %36 = vector.load %arg6[%c64, %c0_25] : memref<288x288xbf16, #tpu.memory_space<vmem>>, vector<32x288xbf16>
    tpu.vector_store %arg6[%c64, %c0_25], %35 {strides = array<i32>} : memref<288x288xbf16, #tpu.memory_space<vmem>>, vector<32x288xbf16>,
    %c0_26 = arith.constant 0 : index
    %c0_27 = arith.constant 0 : index
    %c18 = arith.constant 18 : index
    %37 = vector.load %arg5[%c0_26, %c0_27, %c18] : memref<2x32x326xbf16, #tpu.memory_space<vmem>>, vector<1x32x288xbf16>
    %38 = vector.shape_cast %37 : vector<1x32x288xbf16> to vector<32x288xbf16>
    %c96 = arith.constant 96 : index
    %c0_28 = arith.constant 0 : index
    %39 = vector.load %arg6[%c96, %c0_28] : memref<288x288xbf16, #tpu.memory_space<vmem>>, vector<32x288xbf16>
    tpu.vector_store %arg6[%c96, %c0_28], %38 {strides = array<i32>} : memref<288x288xbf16, #tpu.memory_space<vmem>>, vector<32x288xbf16>,
    %c0_29 = arith.constant 0 : index
    %c0_30 = arith.constant 0 : index
    %c19 = arith.constant 19 : index
    %40 = vector.load %arg5[%c0_29, %c0_30, %c19] : memref<2x32x326xbf16, #tpu.memory_space<vmem>>, vector<1x32x288xbf16>
    %41 = vector.shape_cast %40 : vector<1x32x288xbf16> to vector<32x288xbf16>
    %c128 = arith.constant 128 : index
    %c0_31 = arith.constant 0 : index
    %42 = vector.load %arg6[%c128, %c0_31] : memref<288x288xbf16, #tpu.memory_space<vmem>>, vector<32x288xbf16>
    tpu.vector_store %arg6[%c128, %c0_31], %41 {strides = array<i32>} : memref<288x288xbf16, #tpu.memory_space<vmem>>, vector<32x288xbf16>,
    %c0_32 = arith.constant 0 : index
    %c0_33 = arith.constant 0 : index
    %c20 = arith.constant 20 : index
    %43 = vector.load %arg5[%c0_32, %c0_33, %c20] : memref<2x32x326xbf16, #tpu.memory_space<vmem>>, vector<1x32x288xbf16>
    %44 = vector.shape_cast %43 : vector<1x32x288xbf16> to vector<32x288xbf16>
    %c160 = arith.constant 160 : index
    %c0_34 = arith.constant 0 : index
    %45 = vector.load %arg6[%c160, %c0_34] : memref<288x288xbf16, #tpu.memory_space<vmem>>, vector<32x288xbf16>
    tpu.vector_store %arg6[%c160, %c0_34], %44 {strides = array<i32>} : memref<288x288xbf16, #tpu.memory_space<vmem>>, vector<32x288xbf16>,
    %c0_35 = arith.constant 0 : index
    %c0_36 = arith.constant 0 : index
    %c36 = arith.constant 36 : index
    %46 = vector.load %arg5[%c0_35, %c0_36, %c36] : memref<2x32x326xbf16, #tpu.memory_space<vmem>>, vector<1x32x288xbf16>
    %47 = vector.shape_cast %46 : vector<1x32x288xbf16> to vector<32x288xbf16>
    %c192 = arith.constant 192 : index
    %c0_37 = arith.constant 0 : index
    %48 = vector.load %arg6[%c192, %c0_37] : memref<288x288xbf16, #tpu.memory_space<vmem>>, vector<32x288xbf16>
    tpu.vector_store %arg6[%c192, %c0_37], %47 {strides = array<i32>} : memref<288x288xbf16, #tpu.memory_space<vmem>>, vector<32x288xbf16>,
    %c0_38 = arith.constant 0 : index
    %c0_39 = arith.constant 0 : index
    %c37 = arith.constant 37 : index
    %49 = vector.load %arg5[%c0_38, %c0_39, %c37] : memref<2x32x326xbf16, #tpu.memory_space<vmem>>, vector<1x32x288xbf16>
    %50 = vector.shape_cast %49 : vector<1x32x288xbf16> to vector<32x288xbf16>
    %c224 = arith.constant 224 : index
    %c0_40 = arith.constant 0 : index
    %51 = vector.load %arg6[%c224, %c0_40] : memref<288x288xbf16, #tpu.memory_space<vmem>>, vector<32x288xbf16>
    tpu.vector_store %arg6[%c224, %c0_40], %50 {strides = array<i32>} : memref<288x288xbf16, #tpu.memory_space<vmem>>, vector<32x288xbf16>,
    %c0_41 = arith.constant 0 : index
    %c0_42 = arith.constant 0 : index
    %c38 = arith.constant 38 : index
    %52 = vector.load %arg5[%c0_41, %c0_42, %c38] : memref<2x32x326xbf16, #tpu.memory_space<vmem>>, vector<1x32x288xbf16>
    %53 = vector.shape_cast %52 : vector<1x32x288xbf16> to vector<32x288xbf16>
    %c256 = arith.constant 256 : index
    %c0_43 = arith.constant 0 : index
    %54 = vector.load %arg6[%c256, %c0_43] : memref<288x288xbf16, #tpu.memory_space<vmem>>, vector<32x288xbf16>
    tpu.vector_store %arg6[%c256, %c0_43], %53 {strides = array<i32>} : memref<288x288xbf16, #tpu.memory_space<vmem>>, vector<32x288xbf16>,
    %c0_44 = arith.constant 0 : index
    %c0_45 = arith.constant 0 : index
    %55 = vector.load %arg6[%c0_44, %c0_45] : memref<288x288xbf16, #tpu.memory_space<vmem>>, vector<288x288xbf16>
    %cst = arith.constant dense<0.000000e+00> : vector<32x288xf32>
    %56 = tpu.matmul %25, %55, %cst {dimension_numbers = #tpu.dot_dimension_numbers<[1], [0], [0], [1], [0, 0, 1, 1], [], []>} : vector<32x288xbf16>, vector<288x288xbf16>, vector<32x288xf32> -> vector<32x288xf32>
    %57 = vector.broadcast %27 : vector<32x1xf32> to vector<32x288xf32>
    %58 = arith.addf %56, %57 : vector<32x288xf32>
    %cst_46 = arith.constant 0.000000e+00 : f32
    %59 = vector.broadcast %cst_46 : f32 to vector<32x288xf32>
    %60 = arith.maximumf %58, %59 : vector<32x288xf32>
    %cst_47 = arith.constant 0.000000e+00 : f32
    %61 = vector.shape_cast %21 : vector<1x288xi1> to vector<1x288xi1>
    %62 = vector.broadcast %61 : vector<1x288xi1> to vector<32x288xi1>
    %63 = vector.broadcast %cst_47 : f32 to vector<32x288xf32>
    %64 = arith.select %62, %60, %63 : vector<32x288xi1>, vector<32x288xf32>
    %65 = arith.truncf %64 : vector<32x288xf32> to vector<32x288xbf16>
    %c0_48 = arith.constant 0 : index
    %c0_49 = arith.constant 0 : index
    %c19_50 = arith.constant 19 : index
    %66 = vector.load %arg5[%c0_48, %c0_49, %c19_50] : memref<2x32x326xbf16, #tpu.memory_space<vmem>>, vector<1x32x288xbf16>
    %67 = vector.shape_cast %66 : vector<1x32x288xbf16> to vector<32x288xbf16>
    %68 = vector.shape_cast %65 : vector<32x288xbf16> to vector<1x32x288xbf16>
    tpu.vector_store %arg5[%c0_48, %c0_49, %c19_50], %68 {strides = array<i32>} : memref<2x32x326xbf16, #tpu.memory_space<vmem>>, vector<1x32x288xbf16>,
    %c1_51 = arith.constant 1 : index
    %c0_52 = arith.constant 0 : index
    %c0_53 = arith.constant 0 : index
    %69 = vector.load %arg5[%c1_51, %c0_52, %c0_53] : memref<2x32x326xbf16, #tpu.memory_space<vmem>>, vector<1x32x288xbf16>
    %70 = vector.shape_cast %69 : vector<1x32x288xbf16> to vector<32x288xbf16>
    %c0_54 = arith.constant 0 : index
    %c0_55 = arith.constant 0 : index
    %71 = vector.load %arg6[%c0_54, %c0_55] : memref<288x288xbf16, #tpu.memory_space<vmem>>, vector<32x288xbf16>
    tpu.vector_store %arg6[%c0_54, %c0_55], %70 {strides = array<i32>} : memref<288x288xbf16, #tpu.memory_space<vmem>>, vector<32x288xbf16>,
    %c1_56 = arith.constant 1 : index
    %c0_57 = arith.constant 0 : index
    %c1_58 = arith.constant 1 : index
    %72 = vector.load %arg5[%c1_56, %c0_57, %c1_58] : memref<2x32x326xbf16, #tpu.memory_space<vmem>>, vector<1x32x288xbf16>
    %73 = vector.shape_cast %72 : vector<1x32x288xbf16> to vector<32x288xbf16>
    %c32_59 = arith.constant 32 : index
    %c0_60 = arith.constant 0 : index
    %74 = vector.load %arg6[%c32_59, %c0_60] : memref<288x288xbf16, #tpu.memory_space<vmem>>, vector<32x288xbf16>
    tpu.vector_store %arg6[%c32_59, %c0_60], %73 {strides = array<i32>} : memref<288x288xbf16, #tpu.memory_space<vmem>>, vector<32x288xbf16>,
    %c1_61 = arith.constant 1 : index
    %c0_62 = arith.constant 0 : index
    %c2_63 = arith.constant 2 : index
    %75 = vector.load %arg5[%c1_61, %c0_62, %c2_63] : memref<2x32x326xbf16, #tpu.memory_space<vmem>>, vector<1x32x288xbf16>
    %76 = vector.shape_cast %75 : vector<1x32x288xbf16> to vector<32x288xbf16>
    %c64_64 = arith.constant 64 : index
    %c0_65 = arith.constant 0 : index
    %77 = vector.load %arg6[%c64_64, %c0_65] : memref<288x288xbf16, #tpu.memory_space<vmem>>, vector<32x288xbf16>
    tpu.vector_store %arg6[%c64_64, %c0_65], %76 {strides = array<i32>} : memref<288x288xbf16, #tpu.memory_space<vmem>>, vector<32x288xbf16>,
    %c1_66 = arith.constant 1 : index
    %c0_67 = arith.constant 0 : index
    %c18_68 = arith.constant 18 : index
    %78 = vector.load %arg5[%c1_66, %c0_67, %c18_68] : memref<2x32x326xbf16, #tpu.memory_space<vmem>>, vector<1x32x288xbf16>
    %79 = vector.shape_cast %78 : vector<1x32x288xbf16> to vector<32x288xbf16>
    %c96_69 = arith.constant 96 : index
    %c0_70 = arith.constant 0 : index
    %80 = vector.load %arg6[%c96_69, %c0_70] : memref<288x288xbf16, #tpu.memory_space<vmem>>, vector<32x288xbf16>
    tpu.vector_store %arg6[%c96_69, %c0_70], %79 {strides = array<i32>} : memref<288x288xbf16, #tpu.memory_space<vmem>>, vector<32x288xbf16>,
    %c1_71 = arith.constant 1 : index
    %c0_72 = arith.constant 0 : index
    %c19_73 = arith.constant 19 : index
    %81 = vector.load %arg5[%c1_71, %c0_72, %c19_73] : memref<2x32x326xbf16, #tpu.memory_space<vmem>>, vector<1x32x288xbf16>
    %82 = vector.shape_cast %81 : vector<1x32x288xbf16> to vector<32x288xbf16>
    %c128_74 = arith.constant 128 : index
    %c0_75 = arith.constant 0 : index
    %83 = vector.load %arg6[%c128_74, %c0_75] : memref<288x288xbf16, #tpu.memory_space<vmem>>, vector<32x288xbf16>
    tpu.vector_store %arg6[%c128_74, %c0_75], %82 {strides = array<i32>} : memref<288x288xbf16, #tpu.memory_space<vmem>>, vector<32x288xbf16>,
    %c1_76 = arith.constant 1 : index
    %c0_77 = arith.constant 0 : index
    %c20_78 = arith.constant 20 : index
    %84 = vector.load %arg5[%c1_76, %c0_77, %c20_78] : memref<2x32x326xbf16, #tpu.memory_space<vmem>>, vector<1x32x288xbf16>
    %85 = vector.shape_cast %84 : vector<1x32x288xbf16> to vector<32x288xbf16>
    %c160_79 = arith.constant 160 : index
    %c0_80 = arith.constant 0 : index
    %86 = vector.load %arg6[%c160_79, %c0_80] : memref<288x288xbf16, #tpu.memory_space<vmem>>, vector<32x288xbf16>
    tpu.vector_store %arg6[%c160_79, %c0_80], %85 {strides = array<i32>} : memref<288x288xbf16, #tpu.memory_space<vmem>>, vector<32x288xbf16>,
    %c1_81 = arith.constant 1 : index
    %c0_82 = arith.constant 0 : index
    %c36_83 = arith.constant 36 : index
    %87 = vector.load %arg5[%c1_81, %c0_82, %c36_83] : memref<2x32x326xbf16, #tpu.memory_space<vmem>>, vector<1x32x288xbf16>
    %88 = vector.shape_cast %87 : vector<1x32x288xbf16> to vector<32x288xbf16>
    %c192_84 = arith.constant 192 : index
    %c0_85 = arith.constant 0 : index
    %89 = vector.load %arg6[%c192_84, %c0_85] : memref<288x288xbf16, #tpu.memory_space<vmem>>, vector<32x288xbf16>
    tpu.vector_store %arg6[%c192_84, %c0_85], %88 {strides = array<i32>} : memref<288x288xbf16, #tpu.memory_space<vmem>>, vector<32x288xbf16>,
    %c1_86 = arith.constant 1 : index
    %c0_87 = arith.constant 0 : index
    %c37_88 = arith.constant 37 : index
    %90 = vector.load %arg5[%c1_86, %c0_87, %c37_88] : memref<2x32x326xbf16, #tpu.memory_space<vmem>>, vector<1x32x288xbf16>
    %91 = vector.shape_cast %90 : vector<1x32x288xbf16> to vector<32x288xbf16>
    %c224_89 = arith.constant 224 : index
    %c0_90 = arith.constant 0 : index
    %92 = vector.load %arg6[%c224_89, %c0_90] : memref<288x288xbf16, #tpu.memory_space<vmem>>, vector<32x288xbf16>
    tpu.vector_store %arg6[%c224_89, %c0_90], %91 {strides = array<i32>} : memref<288x288xbf16, #tpu.memory_space<vmem>>, vector<32x288xbf16>,
    %c1_91 = arith.constant 1 : index
    %c0_92 = arith.constant 0 : index
    %c38_93 = arith.constant 38 : index
    %93 = vector.load %arg5[%c1_91, %c0_92, %c38_93] : memref<2x32x326xbf16, #tpu.memory_space<vmem>>, vector<1x32x288xbf16>
    %94 = vector.shape_cast %93 : vector<1x32x288xbf16> to vector<32x288xbf16>
    %c256_94 = arith.constant 256 : index
    %c0_95 = arith.constant 0 : index
    %95 = vector.load %arg6[%c256_94, %c0_95] : memref<288x288xbf16, #tpu.memory_space<vmem>>, vector<32x288xbf16>
    tpu.vector_store %arg6[%c256_94, %c0_95], %94 {strides = array<i32>} : memref<288x288xbf16, #tpu.memory_space<vmem>>, vector<32x288xbf16>,
    %c0_96 = arith.constant 0 : index
    %c0_97 = arith.constant 0 : index
    %96 = vector.load %arg6[%c0_96, %c0_97] : memref<288x288xbf16, #tpu.memory_space<vmem>>, vector<288x288xbf16>
    %cst_98 = arith.constant dense<0.000000e+00> : vector<32x288xf32>
    %97 = tpu.matmul %25, %96, %cst_98 {dimension_numbers = #tpu.dot_dimension_numbers<[1], [0], [0], [1], [0, 0, 1, 1], [], []>} : vector<32x288xbf16>, vector<288x288xbf16>, vector<32x288xf32> -> vector<32x288xf32>
    %98 = vector.broadcast %27 : vector<32x1xf32> to vector<32x288xf32>
    %99 = arith.addf %97, %98 : vector<32x288xf32>
    %cst_99 = arith.constant 0.000000e+00 : f32
    %100 = vector.broadcast %cst_99 : f32 to vector<32x288xf32>
    %101 = arith.maximumf %99, %100 : vector<32x288xf32>
    %cst_100 = arith.constant 0.000000e+00 : f32
    %102 = vector.shape_cast %21 : vector<1x288xi1> to vector<1x288xi1>
    %103 = vector.broadcast %102 : vector<1x288xi1> to vector<32x288xi1>
    %104 = vector.broadcast %cst_100 : f32 to vector<32x288xf32>
    %105 = arith.select %103, %101, %104 : vector<32x288xi1>, vector<32x288xf32>
    %106 = arith.truncf %105 : vector<32x288xf32> to vector<32x288xbf16>
    %c1_101 = arith.constant 1 : index
    %c0_102 = arith.constant 0 : index
    %c19_103 = arith.constant 19 : index
    %107 = vector.load %arg5[%c1_101, %c0_102, %c19_103] : memref<2x32x326xbf16, #tpu.memory_space<vmem>>, vector<1x32x288xbf16>
    %108 = vector.shape_cast %107 : vector<1x32x288xbf16> to vector<32x288xbf16>
    %109 = vector.shape_cast %106 : vector<32x288xbf16> to vector<1x32x288xbf16>
    tpu.vector_store %arg5[%c1_101, %c0_102, %c19_103], %109 {strides = array<i32>} : memref<2x32x326xbf16, #tpu.memory_space<vmem>>, vector<1x32x288xbf16>,
    %c1_104 = arith.constant 1 : index
    %c0_105 = arith.constant 0 : index
    %c0_106 = arith.constant 0 : index
    %110 = vector.load %arg2[%c1_104, %c0_105, %c0_106] : memref<3x32x288xbf16, #tpu.memory_space<vmem>>, vector<1x32x288xbf16>
    %111 = vector.shape_cast %110 : vector<1x32x288xbf16> to vector<32x288xbf16>
    %c1_107 = arith.constant 1 : index
    %c0_108 = arith.constant 0 : index
    %c0_109 = arith.constant 0 : index
    %112 = vector.load %arg3[%c1_107, %c0_108, %c0_109] : memref<3x32x1xf32, #tpu.memory_space<vmem>>, vector<1x32x1xf32>
    %113 = vector.shape_cast %112 : vector<1x32x1xf32> to vector<32x1xf32>
    %c0_110 = arith.constant 0 : index
    %c0_111 = arith.constant 0 : index
    %c0_112 = arith.constant 0 : index
    %114 = vector.load %arg5[%c0_110, %c0_111, %c0_112] : memref<2x32x326xbf16, #tpu.memory_space<vmem>>, vector<1x32x288xbf16>
    %115 = vector.shape_cast %114 : vector<1x32x288xbf16> to vector<32x288xbf16>
    %c0_113 = arith.constant 0 : index
    %c0_114 = arith.constant 0 : index
    %116 = vector.load %arg6[%c0_113, %c0_114] : memref<288x288xbf16, #tpu.memory_space<vmem>>, vector<32x288xbf16>
    tpu.vector_store %arg6[%c0_113, %c0_114], %115 {strides = array<i32>} : memref<288x288xbf16, #tpu.memory_space<vmem>>, vector<32x288xbf16>,
    %c0_115 = arith.constant 0 : index
    %c0_116 = arith.constant 0 : index
    %c1_117 = arith.constant 1 : index
    %117 = vector.load %arg5[%c0_115, %c0_116, %c1_117] : memref<2x32x326xbf16, #tpu.memory_space<vmem>>, vector<1x32x288xbf16>
    %118 = vector.shape_cast %117 : vector<1x32x288xbf16> to vector<32x288xbf16>
    %c32_118 = arith.constant 32 : index
    %c0_119 = arith.constant 0 : index
    %119 = vector.load %arg6[%c32_118, %c0_119] : memref<288x288xbf16, #tpu.memory_space<vmem>>, vector<32x288xbf16>
    tpu.vector_store %arg6[%c32_118, %c0_119], %118 {strides = array<i32>} : memref<288x288xbf16, #tpu.memory_space<vmem>>, vector<32x288xbf16>,
    %c0_120 = arith.constant 0 : index
    %c0_121 = arith.constant 0 : index
    %c2_122 = arith.constant 2 : index
    %120 = vector.load %arg5[%c0_120, %c0_121, %c2_122] : memref<2x32x326xbf16, #tpu.memory_space<vmem>>, vector<1x32x288xbf16>
    %121 = vector.shape_cast %120 : vector<1x32x288xbf16> to vector<32x288xbf16>
    %c64_123 = arith.constant 64 : index
    %c0_124 = arith.constant 0 : index
    %122 = vector.load %arg6[%c64_123, %c0_124] : memref<288x288xbf16, #tpu.memory_space<vmem>>, vector<32x288xbf16>
    tpu.vector_store %arg6[%c64_123, %c0_124], %121 {strides = array<i32>} : memref<288x288xbf16, #tpu.memory_space<vmem>>, vector<32x288xbf16>,
    %c0_125 = arith.constant 0 : index
    %c0_126 = arith.constant 0 : index
    %c18_127 = arith.constant 18 : index
    %123 = vector.load %arg5[%c0_125, %c0_126, %c18_127] : memref<2x32x326xbf16, #tpu.memory_space<vmem>>, vector<1x32x288xbf16>
    %124 = vector.shape_cast %123 : vector<1x32x288xbf16> to vector<32x288xbf16>
    %c96_128 = arith.constant 96 : index
    %c0_129 = arith.constant 0 : index
    %125 = vector.load %arg6[%c96_128, %c0_129] : memref<288x288xbf16, #tpu.memory_space<vmem>>, vector<32x288xbf16>
    tpu.vector_store %arg6[%c96_128, %c0_129], %124 {strides = array<i32>} : memref<288x288xbf16, #tpu.memory_space<vmem>>, vector<32x288xbf16>,
    %c0_130 = arith.constant 0 : index
    %c0_131 = arith.constant 0 : index
    %c19_132 = arith.constant 19 : index
    %126 = vector.load %arg5[%c0_130, %c0_131, %c19_132] : memref<2x32x326xbf16, #tpu.memory_space<vmem>>, vector<1x32x288xbf16>
    %127 = vector.shape_cast %126 : vector<1x32x288xbf16> to vector<32x288xbf16>
    %c128_133 = arith.constant 128 : index
    %c0_134 = arith.constant 0 : index
    %128 = vector.load %arg6[%c128_133, %c0_134] : memref<288x288xbf16, #tpu.memory_space<vmem>>, vector<32x288xbf16>
    tpu.vector_store %arg6[%c128_133, %c0_134], %127 {strides = array<i32>} : memref<288x288xbf16, #tpu.memory_space<vmem>>, vector<32x288xbf16>,
    %c0_135 = arith.constant 0 : index
    %c0_136 = arith.constant 0 : index
    %c20_137 = arith.constant 20 : index
    %129 = vector.load %arg5[%c0_135, %c0_136, %c20_137] : memref<2x32x326xbf16, #tpu.memory_space<vmem>>, vector<1x32x288xbf16>
    %130 = vector.shape_cast %129 : vector<1x32x288xbf16> to vector<32x288xbf16>
    %c160_138 = arith.constant 160 : index
    %c0_139 = arith.constant 0 : index
    %131 = vector.load %arg6[%c160_138, %c0_139] : memref<288x288xbf16, #tpu.memory_space<vmem>>, vector<32x288xbf16>
    tpu.vector_store %arg6[%c160_138, %c0_139], %130 {strides = array<i32>} : memref<288x288xbf16, #tpu.memory_space<vmem>>, vector<32x288xbf16>,
    %c0_140 = arith.constant 0 : index
    %c0_141 = arith.constant 0 : index
    %c36_142 = arith.constant 36 : index
    %132 = vector.load %arg5[%c0_140, %c0_141, %c36_142] : memref<2x32x326xbf16, #tpu.memory_space<vmem>>, vector<1x32x288xbf16>
    %133 = vector.shape_cast %132 : vector<1x32x288xbf16> to vector<32x288xbf16>
    %c192_143 = arith.constant 192 : index
    %c0_144 = arith.constant 0 : index
    %134 = vector.load %arg6[%c192_143, %c0_144] : memref<288x288xbf16, #tpu.memory_space<vmem>>, vector<32x288xbf16>
    tpu.vector_store %arg6[%c192_143, %c0_144], %133 {strides = array<i32>} : memref<288x288xbf16, #tpu.memory_space<vmem>>, vector<32x288xbf16>,
    %c0_145 = arith.constant 0 : index
    %c0_146 = arith.constant 0 : index
    %c37_147 = arith.constant 37 : index
    %135 = vector.load %arg5[%c0_145, %c0_146, %c37_147] : memref<2x32x326xbf16, #tpu.memory_space<vmem>>, vector<1x32x288xbf16>
    %136 = vector.shape_cast %135 : vector<1x32x288xbf16> to vector<32x288xbf16>
    %c224_148 = arith.constant 224 : index
    %c0_149 = arith.constant 0 : index
    %137 = vector.load %arg6[%c224_148, %c0_149] : memref<288x288xbf16, #tpu.memory_space<vmem>>, vector<32x288xbf16>
    tpu.vector_store %arg6[%c224_148, %c0_149], %136 {strides = array<i32>} : memref<288x288xbf16, #tpu.memory_space<vmem>>, vector<32x288xbf16>,
    %c0_150 = arith.constant 0 : index
    %c0_151 = arith.constant 0 : index
    %c38_152 = arith.constant 38 : index
    %138 = vector.load %arg5[%c0_150, %c0_151, %c38_152] : memref<2x32x326xbf16, #tpu.memory_space<vmem>>, vector<1x32x288xbf16>
    %139 = vector.shape_cast %138 : vector<1x32x288xbf16> to vector<32x288xbf16>
    %c256_153 = arith.constant 256 : index
    %c0_154 = arith.constant 0 : index
    %140 = vector.load %arg6[%c256_153, %c0_154] : memref<288x288xbf16, #tpu.memory_space<vmem>>, vector<32x288xbf16>
    tpu.vector_store %arg6[%c256_153, %c0_154], %139 {strides = array<i32>} : memref<288x288xbf16, #tpu.memory_space<vmem>>, vector<32x288xbf16>,
    %c0_155 = arith.constant 0 : index
    %c0_156 = arith.constant 0 : index
    %141 = vector.load %arg6[%c0_155, %c0_156] : memref<288x288xbf16, #tpu.memory_space<vmem>>, vector<288x288xbf16>
    %cst_157 = arith.constant dense<0.000000e+00> : vector<32x288xf32>
    %142 = tpu.matmul %111, %141, %cst_157 {dimension_numbers = #tpu.dot_dimension_numbers<[1], [0], [0], [1], [0, 0, 1, 1], [], []>} : vector<32x288xbf16>, vector<288x288xbf16>, vector<32x288xf32> -> vector<32x288xf32>
    %143 = vector.broadcast %113 : vector<32x1xf32> to vector<32x288xf32>
    %144 = arith.addf %142, %143 : vector<32x288xf32>
    %cst_158 = arith.constant 0.000000e+00 : f32
    %145 = vector.broadcast %cst_158 : f32 to vector<32x288xf32>
    %146 = arith.maximumf %144, %145 : vector<32x288xf32>
    %cst_159 = arith.constant 0.000000e+00 : f32
    %147 = vector.shape_cast %21 : vector<1x288xi1> to vector<1x288xi1>
    %148 = vector.broadcast %147 : vector<1x288xi1> to vector<32x288xi1>
    %149 = vector.broadcast %cst_159 : f32 to vector<32x288xf32>
    %150 = arith.select %148, %146, %149 : vector<32x288xi1>, vector<32x288xf32>
    %151 = arith.truncf %150 : vector<32x288xf32> to vector<32x288xbf16>
    %c0_160 = arith.constant 0 : index
    %c0_161 = arith.constant 0 : index
    %c19_162 = arith.constant 19 : index
    %152 = vector.load %arg5[%c0_160, %c0_161, %c19_162] : memref<2x32x326xbf16, #tpu.memory_space<vmem>>, vector<1x32x288xbf16>
    %153 = vector.shape_cast %152 : vector<1x32x288xbf16> to vector<32x288xbf16>
    %154 = vector.shape_cast %151 : vector<32x288xbf16> to vector<1x32x288xbf16>
    tpu.vector_store %arg5[%c0_160, %c0_161, %c19_162], %154 {strides = array<i32>} : memref<2x32x326xbf16, #tpu.memory_space<vmem>>, vector<1x32x288xbf16>,
    %c1_163 = arith.constant 1 : index
    %c0_164 = arith.constant 0 : index
    %c0_165 = arith.constant 0 : index
    %155 = vector.load %arg5[%c1_163, %c0_164, %c0_165] : memref<2x32x326xbf16, #tpu.memory_space<vmem>>, vector<1x32x288xbf16>
    %156 = vector.shape_cast %155 : vector<1x32x288xbf16> to vector<32x288xbf16>
    %c0_166 = arith.constant 0 : index
    %c0_167 = arith.constant 0 : index
    %157 = vector.load %arg6[%c0_166, %c0_167] : memref<288x288xbf16, #tpu.memory_space<vmem>>, vector<32x288xbf16>
    tpu.vector_store %arg6[%c0_166, %c0_167], %156 {strides = array<i32>} : memref<288x288xbf16, #tpu.memory_space<vmem>>, vector<32x288xbf16>,
    %c1_168 = arith.constant 1 : index
    %c0_169 = arith.constant 0 : index
    %c1_170 = arith.constant 1 : index
    %158 = vector.load %arg5[%c1_168, %c0_169, %c1_170] : memref<2x32x326xbf16, #tpu.memory_space<vmem>>, vector<1x32x288xbf16>
    %159 = vector.shape_cast %158 : vector<1x32x288xbf16> to vector<32x288xbf16>
    %c32_171 = arith.constant 32 : index
    %c0_172 = arith.constant 0 : index
    %160 = vector.load %arg6[%c32_171, %c0_172] : memref<288x288xbf16, #tpu.memory_space<vmem>>, vector<32x288xbf16>
    tpu.vector_store %arg6[%c32_171, %c0_172], %159 {strides = array<i32>} : memref<288x288xbf16, #tpu.memory_space<vmem>>, vector<32x288xbf16>,
    %c1_173 = arith.constant 1 : index
    %c0_174 = arith.constant 0 : index
    %c2_175 = arith.constant 2 : index
    %161 = vector.load %arg5[%c1_173, %c0_174, %c2_175] : memref<2x32x326xbf16, #tpu.memory_space<vmem>>, vector<1x32x288xbf16>
    %162 = vector.shape_cast %161 : vector<1x32x288xbf16> to vector<32x288xbf16>
    %c64_176 = arith.constant 64 : index
    %c0_177 = arith.constant 0 : index
    %163 = vector.load %arg6[%c64_176, %c0_177] : memref<288x288xbf16, #tpu.memory_space<vmem>>, vector<32x288xbf16>
    tpu.vector_store %arg6[%c64_176, %c0_177], %162 {strides = array<i32>} : memref<288x288xbf16, #tpu.memory_space<vmem>>, vector<32x288xbf16>,
    %c1_178 = arith.constant 1 : index
    %c0_179 = arith.constant 0 : index
    %c18_180 = arith.constant 18 : index
    %164 = vector.load %arg5[%c1_178, %c0_179, %c18_180] : memref<2x32x326xbf16, #tpu.memory_space<vmem>>, vector<1x32x288xbf16>
    %165 = vector.shape_cast %164 : vector<1x32x288xbf16> to vector<32x288xbf16>
    %c96_181 = arith.constant 96 : index
    %c0_182 = arith.constant 0 : index
    %166 = vector.load %arg6[%c96_181, %c0_182] : memref<288x288xbf16, #tpu.memory_space<vmem>>, vector<32x288xbf16>
    tpu.vector_store %arg6[%c96_181, %c0_182], %165 {strides = array<i32>} : memref<288x288xbf16, #tpu.memory_space<vmem>>, vector<32x288xbf16>,
    %c1_183 = arith.constant 1 : index
    %c0_184 = arith.constant 0 : index
    %c19_185 = arith.constant 19 : index
    %167 = vector.load %arg5[%c1_183, %c0_184, %c19_185] : memref<2x32x326xbf16, #tpu.memory_space<vmem>>, vector<1x32x288xbf16>
    %168 = vector.shape_cast %167 : vector<1x32x288xbf16> to vector<32x288xbf16>
    %c128_186 = arith.constant 128 : index
    %c0_187 = arith.constant 0 : index
    %169 = vector.load %arg6[%c128_186, %c0_187] : memref<288x288xbf16, #tpu.memory_space<vmem>>, vector<32x288xbf16>
    tpu.vector_store %arg6[%c128_186, %c0_187], %168 {strides = array<i32>} : memref<288x288xbf16, #tpu.memory_space<vmem>>, vector<32x288xbf16>,
    %c1_188 = arith.constant 1 : index
    %c0_189 = arith.constant 0 : index
    %c20_190 = arith.constant 20 : index
    %170 = vector.load %arg5[%c1_188, %c0_189, %c20_190] : memref<2x32x326xbf16, #tpu.memory_space<vmem>>, vector<1x32x288xbf16>
    %171 = vector.shape_cast %170 : vector<1x32x288xbf16> to vector<32x288xbf16>
    %c160_191 = arith.constant 160 : index
    %c0_192 = arith.constant 0 : index
    %172 = vector.load %arg6[%c160_191, %c0_192] : memref<288x288xbf16, #tpu.memory_space<vmem>>, vector<32x288xbf16>
    tpu.vector_store %arg6[%c160_191, %c0_192], %171 {strides = array<i32>} : memref<288x288xbf16, #tpu.memory_space<vmem>>, vector<32x288xbf16>,
    %c1_193 = arith.constant 1 : index
    %c0_194 = arith.constant 0 : index
    %c36_195 = arith.constant 36 : index
    %173 = vector.load %arg5[%c1_193, %c0_194, %c36_195] : memref<2x32x326xbf16, #tpu.memory_space<vmem>>, vector<1x32x288xbf16>
    %174 = vector.shape_cast %173 : vector<1x32x288xbf16> to vector<32x288xbf16>
    %c192_196 = arith.constant 192 : index
    %c0_197 = arith.constant 0 : index
    %175 = vector.load %arg6[%c192_196, %c0_197] : memref<288x288xbf16, #tpu.memory_space<vmem>>, vector<32x288xbf16>
    tpu.vector_store %arg6[%c192_196, %c0_197], %174 {strides = array<i32>} : memref<288x288xbf16, #tpu.memory_space<vmem>>, vector<32x288xbf16>,
    %c1_198 = arith.constant 1 : index
    %c0_199 = arith.constant 0 : index
    %c37_200 = arith.constant 37 : index
    %176 = vector.load %arg5[%c1_198, %c0_199, %c37_200] : memref<2x32x326xbf16, #tpu.memory_space<vmem>>, vector<1x32x288xbf16>
    %177 = vector.shape_cast %176 : vector<1x32x288xbf16> to vector<32x288xbf16>
    %c224_201 = arith.constant 224 : index
    %c0_202 = arith.constant 0 : index
    %178 = vector.load %arg6[%c224_201, %c0_202] : memref<288x288xbf16, #tpu.memory_space<vmem>>, vector<32x288xbf16>
    tpu.vector_store %arg6[%c224_201, %c0_202], %177 {strides = array<i32>} : memref<288x288xbf16, #tpu.memory_space<vmem>>, vector<32x288xbf16>,
    %c1_203 = arith.constant 1 : index
    %c0_204 = arith.constant 0 : index
    %c38_205 = arith.constant 38 : index
    %179 = vector.load %arg5[%c1_203, %c0_204, %c38_205] : memref<2x32x326xbf16, #tpu.memory_space<vmem>>, vector<1x32x288xbf16>
    %180 = vector.shape_cast %179 : vector<1x32x288xbf16> to vector<32x288xbf16>
    %c256_206 = arith.constant 256 : index
    %c0_207 = arith.constant 0 : index
    %181 = vector.load %arg6[%c256_206, %c0_207] : memref<288x288xbf16, #tpu.memory_space<vmem>>, vector<32x288xbf16>
    tpu.vector_store %arg6[%c256_206, %c0_207], %180 {strides = array<i32>} : memref<288x288xbf16, #tpu.memory_space<vmem>>, vector<32x288xbf16>,
    %c0_208 = arith.constant 0 : index
    %c0_209 = arith.constant 0 : index
    %182 = vector.load %arg6[%c0_208, %c0_209] : memref<288x288xbf16, #tpu.memory_space<vmem>>, vector<288x288xbf16>
    %cst_210 = arith.constant dense<0.000000e+00> : vector<32x288xf32>
    %183 = tpu.matmul %111, %182, %cst_210 {dimension_numbers = #tpu.dot_dimension_numbers<[1], [0], [0], [1], [0, 0, 1, 1], [], []>} : vector<32x288xbf16>, vector<288x288xbf16>, vector<32x288xf32> -> vector<32x288xf32>
    %184 = vector.broadcast %113 : vector<32x1xf32> to vector<32x288xf32>
    %185 = arith.addf %183, %184 : vector<32x288xf32>
    %cst_211 = arith.constant 0.000000e+00 : f32
    %186 = vector.broadcast %cst_211 : f32 to vector<32x288xf32>
    %187 = arith.maximumf %185, %186 : vector<32x288xf32>
    %cst_212 = arith.constant 0.000000e+00 : f32
    %188 = vector.shape_cast %21 : vector<1x288xi1> to vector<1x288xi1>
    %189 = vector.broadcast %188 : vector<1x288xi1> to vector<32x288xi1>
    %190 = vector.broadcast %cst_212 : f32 to vector<32x288xf32>
    %191 = arith.select %189, %187, %190 : vector<32x288xi1>, vector<32x288xf32>
    %192 = arith.truncf %191 : vector<32x288xf32> to vector<32x288xbf16>
    %c1_213 = arith.constant 1 : index
    %c0_214 = arith.constant 0 : index
    %c19_215 = arith.constant 19 : index
    %193 = vector.load %arg5[%c1_213, %c0_214, %c19_215] : memref<2x32x326xbf16, #tpu.memory_space<vmem>>, vector<1x32x288xbf16>
    %194 = vector.shape_cast %193 : vector<1x32x288xbf16> to vector<32x288xbf16>
    %195 = vector.shape_cast %192 : vector<32x288xbf16> to vector<1x32x288xbf16>
    tpu.vector_store %arg5[%c1_213, %c0_214, %c19_215], %195 {strides = array<i32>} : memref<2x32x326xbf16, #tpu.memory_space<vmem>>, vector<1x32x288xbf16>,
    %c2_216 = arith.constant 2 : index
    %c0_217 = arith.constant 0 : index
    %c0_218 = arith.constant 0 : index
    %196 = vector.load %arg2[%c2_216, %c0_217, %c0_218] : memref<3x32x288xbf16, #tpu.memory_space<vmem>>, vector<1x32x288xbf16>
    %197 = vector.shape_cast %196 : vector<1x32x288xbf16> to vector<32x288xbf16>
    %c2_219 = arith.constant 2 : index
    %c0_220 = arith.constant 0 : index
    %c0_221 = arith.constant 0 : index
    %198 = vector.load %arg3[%c2_219, %c0_220, %c0_221] : memref<3x32x1xf32, #tpu.memory_space<vmem>>, vector<1x32x1xf32>
    %199 = vector.shape_cast %198 : vector<1x32x1xf32> to vector<32x1xf32>
    %c0_222 = arith.constant 0 : index
    %c0_223 = arith.constant 0 : index
    %c0_224 = arith.constant 0 : index
    %200 = vector.load %arg5[%c0_222, %c0_223, %c0_224] : memref<2x32x326xbf16, #tpu.memory_space<vmem>>, vector<1x32x288xbf16>
    %201 = vector.shape_cast %200 : vector<1x32x288xbf16> to vector<32x288xbf16>
    %c0_225 = arith.constant 0 : index
    %c0_226 = arith.constant 0 : index
    %202 = vector.load %arg6[%c0_225, %c0_226] : memref<288x288xbf16, #tpu.memory_space<vmem>>, vector<32x288xbf16>
    tpu.vector_store %arg6[%c0_225, %c0_226], %201 {strides = array<i32>} : memref<288x288xbf16, #tpu.memory_space<vmem>>, vector<32x288xbf16>,
    %c0_227 = arith.constant 0 : index
    %c0_228 = arith.constant 0 : index
    %c1_229 = arith.constant 1 : index
    %203 = vector.load %arg5[%c0_227, %c0_228, %c1_229] : memref<2x32x326xbf16, #tpu.memory_space<vmem>>, vector<1x32x288xbf16>
    %204 = vector.shape_cast %203 : vector<1x32x288xbf16> to vector<32x288xbf16>
    %c32_230 = arith.constant 32 : index
    %c0_231 = arith.constant 0 : index
    %205 = vector.load %arg6[%c32_230, %c0_231] : memref<288x288xbf16, #tpu.memory_space<vmem>>, vector<32x288xbf16>
    tpu.vector_store %arg6[%c32_230, %c0_231], %204 {strides = array<i32>} : memref<288x288xbf16, #tpu.memory_space<vmem>>, vector<32x288xbf16>,
    %c0_232 = arith.constant 0 : index
    %c0_233 = arith.constant 0 : index
    %c2_234 = arith.constant 2 : index
    %206 = vector.load %arg5[%c0_232, %c0_233, %c2_234] : memref<2x32x326xbf16, #tpu.memory_space<vmem>>, vector<1x32x288xbf16>
    %207 = vector.shape_cast %206 : vector<1x32x288xbf16> to vector<32x288xbf16>
    %c64_235 = arith.constant 64 : index
    %c0_236 = arith.constant 0 : index
    %208 = vector.load %arg6[%c64_235, %c0_236] : memref<288x288xbf16, #tpu.memory_space<vmem>>, vector<32x288xbf16>
    tpu.vector_store %arg6[%c64_235, %c0_236], %207 {strides = array<i32>} : memref<288x288xbf16, #tpu.memory_space<vmem>>, vector<32x288xbf16>,
    %c0_237 = arith.constant 0 : index
    %c0_238 = arith.constant 0 : index
    %c18_239 = arith.constant 18 : index
    %209 = vector.load %arg5[%c0_237, %c0_238, %c18_239] : memref<2x32x326xbf16, #tpu.memory_space<vmem>>, vector<1x32x288xbf16>
    %210 = vector.shape_cast %209 : vector<1x32x288xbf16> to vector<32x288xbf16>
    %c96_240 = arith.constant 96 : index
    %c0_241 = arith.constant 0 : index
    %211 = vector.load %arg6[%c96_240, %c0_241] : memref<288x288xbf16, #tpu.memory_space<vmem>>, vector<32x288xbf16>
    tpu.vector_store %arg6[%c96_240, %c0_241], %210 {strides = array<i32>} : memref<288x288xbf16, #tpu.memory_space<vmem>>, vector<32x288xbf16>,
    %c0_242 = arith.constant 0 : index
    %c0_243 = arith.constant 0 : index
    %c19_244 = arith.constant 19 : index
    %212 = vector.load %arg5[%c0_242, %c0_243, %c19_244] : memref<2x32x326xbf16, #tpu.memory_space<vmem>>, vector<1x32x288xbf16>
    %213 = vector.shape_cast %212 : vector<1x32x288xbf16> to vector<32x288xbf16>
    %c128_245 = arith.constant 128 : index
    %c0_246 = arith.constant 0 : index
    %214 = vector.load %arg6[%c128_245, %c0_246] : memref<288x288xbf16, #tpu.memory_space<vmem>>, vector<32x288xbf16>
    tpu.vector_store %arg6[%c128_245, %c0_246], %213 {strides = array<i32>} : memref<288x288xbf16, #tpu.memory_space<vmem>>, vector<32x288xbf16>,
    %c0_247 = arith.constant 0 : index
    %c0_248 = arith.constant 0 : index
    %c20_249 = arith.constant 20 : index
    %215 = vector.load %arg5[%c0_247, %c0_248, %c20_249] : memref<2x32x326xbf16, #tpu.memory_space<vmem>>, vector<1x32x288xbf16>
    %216 = vector.shape_cast %215 : vector<1x32x288xbf16> to vector<32x288xbf16>
    %c160_250 = arith.constant 160 : index
    %c0_251 = arith.constant 0 : index
    %217 = vector.load %arg6[%c160_250, %c0_251] : memref<288x288xbf16, #tpu.memory_space<vmem>>, vector<32x288xbf16>
    tpu.vector_store %arg6[%c160_250, %c0_251], %216 {strides = array<i32>} : memref<288x288xbf16, #tpu.memory_space<vmem>>, vector<32x288xbf16>,
    %c0_252 = arith.constant 0 : index
    %c0_253 = arith.constant 0 : index
    %c36_254 = arith.constant 36 : index
    %218 = vector.load %arg5[%c0_252, %c0_253, %c36_254] : memref<2x32x326xbf16, #tpu.memory_space<vmem>>, vector<1x32x288xbf16>
    %219 = vector.shape_cast %218 : vector<1x32x288xbf16> to vector<32x288xbf16>
    %c192_255 = arith.constant 192 : index
    %c0_256 = arith.constant 0 : index
    %220 = vector.load %arg6[%c192_255, %c0_256] : memref<288x288xbf16, #tpu.memory_space<vmem>>, vector<32x288xbf16>
    tpu.vector_store %arg6[%c192_255, %c0_256], %219 {strides = array<i32>} : memref<288x288xbf16, #tpu.memory_space<vmem>>, vector<32x288xbf16>,
    %c0_257 = arith.constant 0 : index
    %c0_258 = arith.constant 0 : index
    %c37_259 = arith.constant 37 : index
    %221 = vector.load %arg5[%c0_257, %c0_258, %c37_259] : memref<2x32x326xbf16, #tpu.memory_space<vmem>>, vector<1x32x288xbf16>
    %222 = vector.shape_cast %221 : vector<1x32x288xbf16> to vector<32x288xbf16>
    %c224_260 = arith.constant 224 : index
    %c0_261 = arith.constant 0 : index
    %223 = vector.load %arg6[%c224_260, %c0_261] : memref<288x288xbf16, #tpu.memory_space<vmem>>, vector<32x288xbf16>
    tpu.vector_store %arg6[%c224_260, %c0_261], %222 {strides = array<i32>} : memref<288x288xbf16, #tpu.memory_space<vmem>>, vector<32x288xbf16>,
    %c0_262 = arith.constant 0 : index
    %c0_263 = arith.constant 0 : index
    %c38_264 = arith.constant 38 : index
    %224 = vector.load %arg5[%c0_262, %c0_263, %c38_264] : memref<2x32x326xbf16, #tpu.memory_space<vmem>>, vector<1x32x288xbf16>
    %225 = vector.shape_cast %224 : vector<1x32x288xbf16> to vector<32x288xbf16>
    %c256_265 = arith.constant 256 : index
    %c0_266 = arith.constant 0 : index
    %226 = vector.load %arg6[%c256_265, %c0_266] : memref<288x288xbf16, #tpu.memory_space<vmem>>, vector<32x288xbf16>
    tpu.vector_store %arg6[%c256_265, %c0_266], %225 {strides = array<i32>} : memref<288x288xbf16, #tpu.memory_space<vmem>>, vector<32x288xbf16>,
    %c0_267 = arith.constant 0 : index
    %c0_268 = arith.constant 0 : index
    %227 = vector.load %arg6[%c0_267, %c0_268] : memref<288x288xbf16, #tpu.memory_space<vmem>>, vector<288x288xbf16>
    %cst_269 = arith.constant dense<0.000000e+00> : vector<32x288xf32>
    %228 = tpu.matmul %197, %227, %cst_269 {dimension_numbers = #tpu.dot_dimension_numbers<[1], [0], [0], [1], [0, 0, 1, 1], [], []>} : vector<32x288xbf16>, vector<288x288xbf16>, vector<32x288xf32> -> vector<32x288xf32>
    %229 = vector.broadcast %199 : vector<32x1xf32> to vector<32x288xf32>
    %230 = arith.addf %228, %229 : vector<32x288xf32>
    %cst_270 = arith.constant 0.000000e+00 : f32
    %231 = vector.broadcast %cst_270 : f32 to vector<32x288xf32>
    %232 = arith.maximumf %230, %231 : vector<32x288xf32>
    %cst_271 = arith.constant 0.000000e+00 : f32
    %233 = vector.shape_cast %21 : vector<1x288xi1> to vector<1x288xi1>
    %234 = vector.broadcast %233 : vector<1x288xi1> to vector<32x288xi1>
    %235 = vector.broadcast %cst_271 : f32 to vector<32x288xf32>
    %236 = arith.select %234, %232, %235 : vector<32x288xi1>, vector<32x288xf32>
    %c0_272 = arith.constant 0 : index
    %c0_273 = arith.constant 0 : index
    %c0_274 = arith.constant 0 : index
    %237 = vector.load %arg4[%c0_272, %c0_273, %c0_274] : memref<2x32x288xf32, #tpu.memory_space<vmem>>, vector<1x32x288xf32>
    %238 = vector.shape_cast %237 : vector<1x32x288xf32> to vector<32x288xf32>
    %239 = vector.shape_cast %236 : vector<32x288xf32> to vector<1x32x288xf32>
    tpu.vector_store %arg4[%c0_272, %c0_273, %c0_274], %239 {strides = array<i32>} : memref<2x32x288xf32, #tpu.memory_space<vmem>>, vector<1x32x288xf32>,
    %c1_275 = arith.constant 1 : index
    %c0_276 = arith.constant 0 : index
    %c0_277 = arith.constant 0 : index
    %240 = vector.load %arg5[%c1_275, %c0_276, %c0_277] : memref<2x32x326xbf16, #tpu.memory_space<vmem>>, vector<1x32x288xbf16>
    %241 = vector.shape_cast %240 : vector<1x32x288xbf16> to vector<32x288xbf16>
    %c0_278 = arith.constant 0 : index
    %c0_279 = arith.constant 0 : index
    %242 = vector.load %arg6[%c0_278, %c0_279] : memref<288x288xbf16, #tpu.memory_space<vmem>>, vector<32x288xbf16>
    tpu.vector_store %arg6[%c0_278, %c0_279], %241 {strides = array<i32>} : memref<288x288xbf16, #tpu.memory_space<vmem>>, vector<32x288xbf16>,
    %c1_280 = arith.constant 1 : index
    %c0_281 = arith.constant 0 : index
    %c1_282 = arith.constant 1 : index
    %243 = vector.load %arg5[%c1_280, %c0_281, %c1_282] : memref<2x32x326xbf16, #tpu.memory_space<vmem>>, vector<1x32x288xbf16>
    %244 = vector.shape_cast %243 : vector<1x32x288xbf16> to vector<32x288xbf16>
    %c32_283 = arith.constant 32 : index
    %c0_284 = arith.constant 0 : index
    %245 = vector.load %arg6[%c32_283, %c0_284] : memref<288x288xbf16, #tpu.memory_space<vmem>>, vector<32x288xbf16>
    tpu.vector_store %arg6[%c32_283, %c0_284], %244 {strides = array<i32>} : memref<288x288xbf16, #tpu.memory_space<vmem>>, vector<32x288xbf16>,
    %c1_285 = arith.constant 1 : index
    %c0_286 = arith.constant 0 : index
    %c2_287 = arith.constant 2 : index
    %246 = vector.load %arg5[%c1_285, %c0_286, %c2_287] : memref<2x32x326xbf16, #tpu.memory_space<vmem>>, vector<1x32x288xbf16>
    %247 = vector.shape_cast %246 : vector<1x32x288xbf16> to vector<32x288xbf16>
    %c64_288 = arith.constant 64 : index
    %c0_289 = arith.constant 0 : index
    %248 = vector.load %arg6[%c64_288, %c0_289] : memref<288x288xbf16, #tpu.memory_space<vmem>>, vector<32x288xbf16>
    tpu.vector_store %arg6[%c64_288, %c0_289], %247 {strides = array<i32>} : memref<288x288xbf16, #tpu.memory_space<vmem>>, vector<32x288xbf16>,
    %c1_290 = arith.constant 1 : index
    %c0_291 = arith.constant 0 : index
    %c18_292 = arith.constant 18 : index
    %249 = vector.load %arg5[%c1_290, %c0_291, %c18_292] : memref<2x32x326xbf16, #tpu.memory_space<vmem>>, vector<1x32x288xbf16>
    %250 = vector.shape_cast %249 : vector<1x32x288xbf16> to vector<32x288xbf16>
    %c96_293 = arith.constant 96 : index
    %c0_294 = arith.constant 0 : index
    %251 = vector.load %arg6[%c96_293, %c0_294] : memref<288x288xbf16, #tpu.memory_space<vmem>>, vector<32x288xbf16>
    tpu.vector_store %arg6[%c96_293, %c0_294], %250 {strides = array<i32>} : memref<288x288xbf16, #tpu.memory_space<vmem>>, vector<32x288xbf16>,
    %c1_295 = arith.constant 1 : index
    %c0_296 = arith.constant 0 : index
    %c19_297 = arith.constant 19 : index
    %252 = vector.load %arg5[%c1_295, %c0_296, %c19_297] : memref<2x32x326xbf16, #tpu.memory_space<vmem>>, vector<1x32x288xbf16>
    %253 = vector.shape_cast %252 : vector<1x32x288xbf16> to vector<32x288xbf16>
    %c128_298 = arith.constant 128 : index
    %c0_299 = arith.constant 0 : index
    %254 = vector.load %arg6[%c128_298, %c0_299] : memref<288x288xbf16, #tpu.memory_space<vmem>>, vector<32x288xbf16>
    tpu.vector_store %arg6[%c128_298, %c0_299], %253 {strides = array<i32>} : memref<288x288xbf16, #tpu.memory_space<vmem>>, vector<32x288xbf16>,
    %c1_300 = arith.constant 1 : index
    %c0_301 = arith.constant 0 : index
    %c20_302 = arith.constant 20 : index
    %255 = vector.load %arg5[%c1_300, %c0_301, %c20_302] : memref<2x32x326xbf16, #tpu.memory_space<vmem>>, vector<1x32x288xbf16>
    %256 = vector.shape_cast %255 : vector<1x32x288xbf16> to vector<32x288xbf16>
    %c160_303 = arith.constant 160 : index
    %c0_304 = arith.constant 0 : index
    %257 = vector.load %arg6[%c160_303, %c0_304] : memref<288x288xbf16, #tpu.memory_space<vmem>>, vector<32x288xbf16>
    tpu.vector_store %arg6[%c160_303, %c0_304], %256 {strides = array<i32>} : memref<288x288xbf16, #tpu.memory_space<vmem>>, vector<32x288xbf16>,
    %c1_305 = arith.constant 1 : index
    %c0_306 = arith.constant 0 : index
    %c36_307 = arith.constant 36 : index
    %258 = vector.load %arg5[%c1_305, %c0_306, %c36_307] : memref<2x32x326xbf16, #tpu.memory_space<vmem>>, vector<1x32x288xbf16>
    %259 = vector.shape_cast %258 : vector<1x32x288xbf16> to vector<32x288xbf16>
    %c192_308 = arith.constant 192 : index
    %c0_309 = arith.constant 0 : index
    %260 = vector.load %arg6[%c192_308, %c0_309] : memref<288x288xbf16, #tpu.memory_space<vmem>>, vector<32x288xbf16>
    tpu.vector_store %arg6[%c192_308, %c0_309], %259 {strides = array<i32>} : memref<288x288xbf16, #tpu.memory_space<vmem>>, vector<32x288xbf16>,
    %c1_310 = arith.constant 1 : index
    %c0_311 = arith.constant 0 : index
    %c37_312 = arith.constant 37 : index
    %261 = vector.load %arg5[%c1_310, %c0_311, %c37_312] : memref<2x32x326xbf16, #tpu.memory_space<vmem>>, vector<1x32x288xbf16>
    %262 = vector.shape_cast %261 : vector<1x32x288xbf16> to vector<32x288xbf16>
    %c224_313 = arith.constant 224 : index
    %c0_314 = arith.constant 0 : index
    %263 = vector.load %arg6[%c224_313, %c0_314] : memref<288x288xbf16, #tpu.memory_space<vmem>>, vector<32x288xbf16>
    tpu.vector_store %arg6[%c224_313, %c0_314], %262 {strides = array<i32>} : memref<288x288xbf16, #tpu.memory_space<vmem>>, vector<32x288xbf16>,
    %c1_315 = arith.constant 1 : index
    %c0_316 = arith.constant 0 : index
    %c38_317 = arith.constant 38 : index
    %264 = vector.load %arg5[%c1_315, %c0_316, %c38_317] : memref<2x32x326xbf16, #tpu.memory_space<vmem>>, vector<1x32x288xbf16>
    %265 = vector.shape_cast %264 : vector<1x32x288xbf16> to vector<32x288xbf16>
    %c256_318 = arith.constant 256 : index
    %c0_319 = arith.constant 0 : index
    %266 = vector.load %arg6[%c256_318, %c0_319] : memref<288x288xbf16, #tpu.memory_space<vmem>>, vector<32x288xbf16>
    tpu.vector_store %arg6[%c256_318, %c0_319], %265 {strides = array<i32>} : memref<288x288xbf16, #tpu.memory_space<vmem>>, vector<32x288xbf16>,
    %c0_320 = arith.constant 0 : index
    %c0_321 = arith.constant 0 : index
    %267 = vector.load %arg6[%c0_320, %c0_321] : memref<288x288xbf16, #tpu.memory_space<vmem>>, vector<288x288xbf16>
    %cst_322 = arith.constant dense<0.000000e+00> : vector<32x288xf32>
    %268 = tpu.matmul %197, %267, %cst_322 {dimension_numbers = #tpu.dot_dimension_numbers<[1], [0], [0], [1], [0, 0, 1, 1], [], []>} : vector<32x288xbf16>, vector<288x288xbf16>, vector<32x288xf32> -> vector<32x288xf32>
    %269 = vector.broadcast %199 : vector<32x1xf32> to vector<32x288xf32>
    %270 = arith.addf %268, %269 : vector<32x288xf32>
    %cst_323 = arith.constant 0.000000e+00 : f32
    %271 = vector.broadcast %cst_323 : f32 to vector<32x288xf32>
    %272 = arith.maximumf %270, %271 : vector<32x288xf32>
    %cst_324 = arith.constant 0.000000e+00 : f32
    %273 = vector.shape_cast %21 : vector<1x288xi1> to vector<1x288xi1>
    %274 = vector.broadcast %273 : vector<1x288xi1> to vector<32x288xi1>
    %275 = vector.broadcast %cst_324 : f32 to vector<32x288xf32>
    %276 = arith.select %274, %272, %275 : vector<32x288xi1>, vector<32x288xf32>
    %c1_325 = arith.constant 1 : index
    %c0_326 = arith.constant 0 : index
    %c0_327 = arith.constant 0 : index
    %277 = vector.load %arg4[%c1_325, %c0_326, %c0_327] : memref<2x32x288xf32, #tpu.memory_space<vmem>>, vector<1x32x288xf32>
    %278 = vector.shape_cast %277 : vector<1x32x288xf32> to vector<32x288xf32>
    %279 = vector.shape_cast %276 : vector<32x288xf32> to vector<1x32x288xf32>
    tpu.vector_store %arg4[%c1_325, %c0_326, %c0_327], %279 {strides = array<i32>} : memref<2x32x288xf32, #tpu.memory_space<vmem>>, vector<1x32x288xf32>,
    return
  }
  func.func @transform_0(%arg0: i32) -> (i32, i32, i32) {
    %c0_i32 = arith.constant 0 : i32
    %c0_i32_0 = arith.constant 0 : i32
    %c0_i32_1 = arith.constant 0 : i32
    return %arg0, %c0_i32, %c0_i32_0 : i32, i32, i32
  }
  func.func @transform_1(%arg0: i32) -> (i32, i32, i32) {
    %c0_i32 = arith.constant 0 : i32
    %c0_i32_0 = arith.constant 0 : i32
    %c0_i32_1 = arith.constant 0 : i32
    %c0_i32_2 = arith.constant 0 : i32
    return %c0_i32, %c0_i32_0, %c0_i32_1 : i32, i32, i32
  }
  func.func @transform_2(%arg0: i32) -> (i32, i32, i32) {
    %c0_i32 = arith.constant 0 : i32
    %c0_i32_0 = arith.constant 0 : i32
    %c0_i32_1 = arith.constant 0 : i32
    %c0_i32_2 = arith.constant 0 : i32
    return %c0_i32, %c0_i32_0, %c0_i32_1 : i32, i32, i32
  }
  func.func @transform_3(%arg0: i32) -> (i32, i32, i32) {
    %c0_i32 = arith.constant 0 : i32
    %c0_i32_0 = arith.constant 0 : i32
    %c0_i32_1 = arith.constant 0 : i32
    return %arg0, %c0_i32, %c0_i32_0 : i32, i32, i32
  }
}

</mosaic_0001>

<llo_original>
// kernel: convnet_forward.1
$region0: #{convnet_forward.1}
  #allocation0 [shape = 'u32[]', space=smem, size = 0x4, offset = 0x4, fixed_abs, tag = 'smem constant byte address 0x4 - core index']
  #allocation1 [shape = 'u32[144,128]{1,0:T(1,128)}', space=vmem, size = 0x12000, scoped, tag = 'internal scratch']
  #allocation2 [shape = 'bf16[2,32,326]{2,1,0:T(16,128)(2,1)}', space=vmem, size = 0xc000, scoped, tag = 'scratch operand']
  #allocation3 [shape = 'bf16[288,288]{1,0:T(16,128)(2,1)}', space=vmem, size = 0x36000, scoped, tag = 'scratch operand']
  %s0 = inlined_call_operand.vmem [shape: bf16[2,32,326], index: 0, kind: input, shape index: {}]
  %s1 = inlined_call_operand.vmem [shape: bf16[3,32,288], index: 1, kind: input, shape index: {}]
  %s2 = inlined_call_operand.vmem [shape: f32[3,32,1], index: 2, kind: input, shape index: {}]
  %s3 = inlined_call_operand.vmem [shape: f32[2,32,288], index: 3, kind: output, shape index: {}]
  %s4 = sld [smem:[#allocation0]]
  $region22: #{convnet_forward.1} parent=0
    _
  %s6 = ssub.s32 1, %s4
  %s7 = scalar_select 0, %s6, %s4
  // Predicated region
  $region2: #{convnet_forward.1} parent=0 // pred_check
    _
  $region3: #{convnet_forward.1} parent=0 // pred_check_branch
    %9 = sbr.rel (0) target = $region5
  $region4: #{convnet_forward.1} parent=0 // pred_region
    _
  $region5: #{convnet_forward.1} parent=0 // pred_fallthru
    _
  // Predicated region
  $region6: #{convnet_forward.1} parent=0 // pred_check
    _
  $region7: #{convnet_forward.1} parent=0 // pred_check_branch
    %11 = sbr.rel (0) target = $region9
  $region8: #{convnet_forward.1} parent=0 // pred_region
    _
  $region9: #{convnet_forward.1} parent=0 // pred_fallthru
    _
  // Predicated region
  $region10: #{convnet_forward.1} parent=0 // pred_check
    _
  $region11: #{convnet_forward.1} parent=0 // pred_check_branch
    %13 = sbr.rel (0) target = $region13
  $region12: #{convnet_forward.1} parent=0 // pred_region
    _
  $region13: #{convnet_forward.1} parent=0 // pred_fallthru
    _
  %v15 = vlaneseq
  %v16 = vand.u32 %v15, 127
  %v17 = vadd.s32 %v16, 128
  %v18 = vadd.s32 %v16, 256
  %vm19 = vcmp.lt.s32.totalorder %v16, 0
  %v20 = vsub.s32 0, %v16
  %v21 = vsel %vm19, %v20, %v16
  %v22 = vmul.u32.u64.compose %v21, 3817748708
  %v23 = vextract.low.u32 %v22
  %v24 = vextract.high.u32 %v22
  %v25 = vshrl.u32 %v24, 4
  %v26 = vmul.u32 %v25, 18
  %v27 = vsub.s32 %v21, %v26
  %v28 = vsub.s32 0, %v27
  %v29 = vsel %vm19, %v28, %v27
  %vm30 = vcmp.lt.s32.totalorder %v17, 0
  %v31 = vsub.s32 0, %v17
  %v32 = vsel %vm30, %v31, %v17
  %v33 = vmul.u32.u64.compose %v32, 3817748708
  %v34 = vextract.low.u32 %v33
  %v35 = vextract.high.u32 %v33
  %v36 = vshrl.u32 %v35, 4
  %v37 = vmul.u32 %v36, 18
  %v38 = vsub.s32 %v32, %v37
  %v39 = vsub.s32 0, %v38
  %v40 = vsel %vm30, %v39, %v38
  %vm41 = vcmp.lt.s32.totalorder %v18, 0
  %v42 = vsub.s32 0, %v18
  %v43 = vsel %vm41, %v42, %v18
  %v44 = vmul.u32.u64.compose %v43, 3817748708
  %v45 = vextract.low.u32 %v44
  %v46 = vextract.high.u32 %v44
  %v47 = vshrl.u32 %v46, 4
  %v48 = vmul.u32 %v47, 18
  %v49 = vsub.s32 %v43, %v48
  %v50 = vsub.s32 0, %v49
  %v51 = vsel %vm41, %v50, %v49
  %vm52 = vcmp.ne.s32.totalorder %v29, 0
  %vm53 = vcmp.ne.s32.totalorder %v40, 0
  %vm54 = vcmp.ne.s32.totalorder %v51, 0
  %vm55 = vcmp.lt.s32.totalorder %v29, 0
  %vm56 = vcmp.lt.s32.totalorder %v40, 0
  %vm57 = vcmp.lt.s32.totalorder %v51, 0
  %vm58 = vmand %vm55, %vm52
  %vm59 = vmand %vm56, %vm53
  %vm60 = vmand %vm57, %vm54
  %v61 = vadd.s32 %v29, 18
  %v62 = vadd.s32 %v40, 18
  %v63 = vadd.s32 %v51, 18
  %v64 = vsel %vm58, %v61, %v29
  %v65 = vsel %vm59, %v62, %v40
  %v66 = vsel %vm60, %v63, %v51
  %vm67 = vcmp.ne.s32.totalorder %v64, 0
  %vm68 = vcmp.ne.s32.totalorder %v65, 0
  %vm69 = vcmp.ne.s32.totalorder %v66, 0
  %vm70 = vcmp.ne.s32.totalorder %v64, 17
  %vm71 = vcmp.ne.s32.totalorder %v65, 17
  %vm72 = vcmp.ne.s32.totalorder %v66, 17
  %vm73 = vmand %vm67, %vm70
  %vm74 = vmand %vm68, %vm71
  %vm75 = vmand %vm69, %vm72
  %v76 = vld [vmem:[%s0] sm:$0xff]
  %v77 = vld [vmem:[%s0 + $0x8] sm:$0xf]
  %v78 = vld [vmem:[%s0 + $0xc] sm:$0xff]
  %v79 = vld [vmem:[%s0 + $0x14] sm:$0xf]
  %v80 = vld [vmem:[%s0 + $0x18] sm:$0xff]
  %v81 = vld [vmem:[%s0 + $0x20] sm:$0xf]
  %v82 = vld [vmem:[%s0 + $0x24] sm:$0xff]
  %v83 = vld [vmem:[%s0 + $0x2c] sm:$0xf]
  %v84 = vld [vmem:[%s0 + $0x30] sm:$0xff]
  %v85 = vld [vmem:[%s0 + $0x38] sm:$0xf]
  %v86 = vld [vmem:[%s0 + $0x3c] sm:$0xff]
  %v87 = vld [vmem:[%s0 + $0x44] sm:$0xf]
  %v88 = vld [vmem:[%s0 + $0x48] sm:$0xff]
  %v89 = vld [vmem:[%s0 + $0x50] sm:$0xf]
  %v90 = vld [vmem:[%s0 + $0x54] sm:$0xff]
  %v91 = vld [vmem:[%s0 + $0x5c] sm:$0xf]
  %v108 = vunpack.c.l.b16 %v76
  %v109 = vunpack.c.h.b16 %v76
  %v110 = vunpack.c.l.b16 %v77
  %v111 = vunpack.c.l.b16 %v78
  %v112 = vunpack.c.h.b16 %v78
  %v113 = vunpack.c.l.b16 %v79
  %v114 = vunpack.c.l.b16 %v80
  %v115 = vunpack.c.h.b16 %v80
  %v116 = vunpack.c.l.b16 %v81
  %v117 = vunpack.c.l.b16 %v82
  %v118 = vunpack.c.h.b16 %v82
  %v119 = vunpack.c.l.b16 %v83
  %v120 = vunpack.c.l.b16 %v84
  %v121 = vunpack.c.h.b16 %v84
  %v122 = vunpack.c.l.b16 %v85
  %v123 = vunpack.c.l.b16 %v86
  %v124 = vunpack.c.h.b16 %v86
  %v125 = vunpack.c.l.b16 %v87
  %v126 = vunpack.c.l.b16 %v88
  %v127 = vunpack.c.h.b16 %v88
  %v128 = vunpack.c.l.b16 %v89
  %v129 = vunpack.c.l.b16 %v90
  %v130 = vunpack.c.h.b16 %v90
  %v131 = vunpack.c.l.b16 %v91
  %v132 = vpack.c.b16 %v111, %v108
  %v133 = vpack.c.b16 %v112, %v109
  %v134 = vpack.c.b16 %v113, %v110
  %v135 = vpack.c.b16 %v117, %v114
  %v136 = vpack.c.b16 %v118, %v115
  %v137 = vpack.c.b16 %v119, %v116
  %v138 = vpack.c.b16 %v123, %v120
  %v139 = vpack.c.b16 %v124, %v121
  %v140 = vpack.c.b16 %v125, %v122
  %v141 = vpack.c.b16 %v129, %v126
  %v142 = vpack.c.b16 %v130, %v127
  %v143 = vpack.c.b16 %v131, %v128
  %156 = vst [vmem:[#allocation2] sm:$0xff] %v132
  %157 = vst [vmem:[#allocation2 + $0x8] sm:$0xff] %v133
  %vm158 = vcmask 572416
  %159 = vst.msk [vmem:[#allocation2 + $0x10] sm:$0xff] %vm158, %v134
  %160 = vst [vmem:[#allocation2 + $0x18] sm:$0xff] %v135
  %161 = vst [vmem:[#allocation2 + $0x20] sm:$0xff] %v136
  %162 = vst.msk [vmem:[#allocation2 + $0x28] sm:$0xff] %vm158, %v137
  %163 = vst [vmem:[#allocation2 + $0x30] sm:$0xff] %v138
  %164 = vst [vmem:[#allocation2 + $0x38] sm:$0xff] %v139
  %165 = vst.msk [vmem:[#allocation2 + $0x40] sm:$0xff] %vm158, %v140
  %166 = vst [vmem:[#allocation2 + $0x48] sm:$0xff] %v141
  %167 = vst [vmem:[#allocation2 + $0x50] sm:$0xff] %v142
  %168 = vst.msk [vmem:[#allocation2 + $0x58] sm:$0xff] %vm158, %v143
  %v169 = vld [vmem:[%s1] sm:$0xff]
  %v170 = vld [vmem:[%s1 + $0x8] sm:$0xf]
  %v171 = vld [vmem:[%s1 + $0xc] sm:$0xff]
  %v172 = vld [vmem:[%s1 + $0x14] sm:$0xf]
  %v173 = vld [vmem:[%s1 + $0x18] sm:$0xff]
  %v174 = vld [vmem:[%s1 + $0x20] sm:$0xf]
  %v175 = vld [vmem:[%s1 + $0x24] sm:$0xff]
  %v176 = vld [vmem:[%s1 + $0x2c] sm:$0xf]
  %v177 = vld [vmem:[%s2] sm:$0xff]
  %v178 = vld [vmem:[%s2 + $0x8] sm:$0xff]
  %v179 = vld [vmem:[%s2 + $0x10] sm:$0xff]
  %v180 = vld [vmem:[%s2 + $0x18] sm:$0xff]
  %v181 = vld [vmem:[#allocation2] sm:$0xff]
  %v182 = vld [vmem:[#allocation2 + $0x8] sm:$0xff]
  %v183 = vld [vmem:[#allocation2 + $0x10] sm:$0xff]
  %v184 = vld [vmem:[#allocation2 + $0x18] sm:$0xff]
  %v185 = vld [vmem:[#allocation2 + $0x20] sm:$0xff]
  %v186 = vld [vmem:[#allocation2 + $0x28] sm:$0xff]
  %187 = vst [vmem:[#allocation3] sm:$0xff] %v181
  %188 = vst [vmem:[#allocation3 + $0x8] sm:$0xff] %v182
  %vm189 = vcmask 261120
  %190 = vst.msk [vmem:[#allocation3 + $0x10] sm:$0xff] %vm189, %v183
  %191 = vst [vmem:[#allocation3 + $0x18] sm:$0xff] %v184
  %192 = vst [vmem:[#allocation3 + $0x20] sm:$0xff] %v185
  %193 = vst.msk [vmem:[#allocation3 + $0x28] sm:$0xff] %vm189, %v186
  %v194 = vld [vmem:[#allocation2] sm:$0xff]
  %v195 = vld [vmem:[#allocation2 + $0x8] sm:$0xff]
  %v196 = vld [vmem:[#allocation2 + $0x10] sm:$0xff]
  %v197 = vld [vmem:[#allocation2 + $0x18] sm:$0xff]
  %v198 = vld [vmem:[#allocation2 + $0x20] sm:$0xff]
  %v199 = vld [vmem:[#allocation2 + $0x28] sm:$0xff]
  %206 = vrot.lane.b32.xlu0 %v194, 127
  %v207 = vpop.permute.xlu0 %206
  %208 = vrot.lane.b32.xlu0 %v195, 127
  %v209 = vpop.permute.xlu0 %208
  %210 = vrot.lane.b32.xlu0 %v196, 127
  %v211 = vpop.permute.xlu0 %210
  %212 = vrot.lane.b32.xlu0 %v197, 127
  %v213 = vpop.permute.xlu0 %212
  %214 = vrot.lane.b32.xlu0 %v198, 127
  %v215 = vpop.permute.xlu0 %214
  %216 = vrot.lane.b32.xlu0 %v199, 127
  %v217 = vpop.permute.xlu0 %216
  %vm218 = vcmask 1039360
  %v219 = vsel %vm218, %v207, %v209
  %v220 = vsel %vm218, %v209, %v211
  %v221 = vsel %vm218, %v213, %v215
  %v222 = vsel %vm218, %v215, %v217
  %229 = vst [vmem:[#allocation3 + $0x30] sm:$0xff] %v219
  %230 = vst [vmem:[#allocation3 + $0x38] sm:$0xff] %v220
  %231 = vst.msk [vmem:[#allocation3 + $0x40] sm:$0xff] %vm189, %v211
  %232 = vst [vmem:[#allocation3 + $0x48] sm:$0xff] %v221
  %233 = vst [vmem:[#allocation3 + $0x50] sm:$0xff] %v222
  %234 = vst.msk [vmem:[#allocation3 + $0x58] sm:$0xff] %vm189, %v217
  %v235 = vld [vmem:[#allocation2] sm:$0xff]
  %v236 = vld [vmem:[#allocation2 + $0x8] sm:$0xff]
  %v237 = vld [vmem:[#allocation2 + $0x10] sm:$0xff]
  %v238 = vld [vmem:[#allocation2 + $0x18] sm:$0xff]
  %v239 = vld [vmem:[#allocation2 + $0x20] sm:$0xff]
  %v240 = vld [vmem:[#allocation2 + $0x28] sm:$0xff]
  %247 = vrot.lane.b32.xlu0 %v235, 126
  %v248 = vpop.permute.xlu0 %247
  %249 = vrot.lane.b32.xlu0 %v236, 126
  %v250 = vpop.permute.xlu0 %249
  %251 = vrot.lane.b32.xlu0 %v237, 126
  %v252 = vpop.permute.xlu0 %251
  %253 = vrot.lane.b32.xlu0 %v238, 126
  %v254 = vpop.permute.xlu0 %253
  %255 = vrot.lane.b32.xlu0 %v239, 126
  %v256 = vpop.permute.xlu0 %255
  %257 = vrot.lane.b32.xlu0 %v240, 126
  %v258 = vpop.permute.xlu0 %257
  %vm259 = vcmask 1031168
  %v260 = vsel %vm259, %v248, %v250
  %v261 = vsel %vm259, %v250, %v252
  %v262 = vsel %vm259, %v254, %v256
  %v263 = vsel %vm259, %v256, %v258
  %270 = vst [vmem:[#allocation3 + $0x60] sm:$0xff] %v260
  %271 = vst [vmem:[#allocation3 + $0x68] sm:$0xff] %v261
  %272 = vst.msk [vmem:[#allocation3 + $0x70] sm:$0xff] %vm189, %v252
  %273 = vst [vmem:[#allocation3 + $0x78] sm:$0xff] %v262
  %274 = vst [vmem:[#allocation3 + $0x80] sm:$0xff] %v263
  %275 = vst.msk [vmem:[#allocation3 + $0x88] sm:$0xff] %vm189, %v258
  %v276 = vld [vmem:[#allocation2] sm:$0xff]
  %v277 = vld [vmem:[#allocation2 + $0x8] sm:$0xff]
  %v278 = vld [vmem:[#allocation2 + $0x10] sm:$0xff]
  %v279 = vld [vmem:[#allocation2 + $0x18] sm:$0xff]
  %v280 = vld [vmem:[#allocation2 + $0x20] sm:$0xff]
  %v281 = vld [vmem:[#allocation2 + $0x28] sm:$0xff]
  %288 = vrot.lane.b32.xlu0 %v276, 110
  %v289 = vpop.permute.xlu0 %288
  %290 = vrot.lane.b32.xlu0 %v277, 110
  %v291 = vpop.permute.xlu0 %290
  %292 = vrot.lane.b32.xlu0 %v278, 110
  %v293 = vpop.permute.xlu0 %292
  %294 = vrot.lane.b32.xlu0 %v279, 110
  %v295 = vpop.permute.xlu0 %294
  %296 = vrot.lane.b32.xlu0 %v280, 110
  %v297 = vpop.permute.xlu0 %296
  %298 = vrot.lane.b32.xlu0 %v281, 110
  %v299 = vpop.permute.xlu0 %298
  %vm300 = vcmask 900096
  %v301 = vsel %vm300, %v289, %v291
  %v302 = vsel %vm300, %v291, %v293
  %v303 = vsel %vm300, %v295, %v297
  %v304 = vsel %vm300, %v297, %v299
  %311 = vst [vmem:[#allocation3 + $0x90] sm:$0xff] %v301
  %312 = vst [vmem:[#allocation3 + $0x98] sm:$0xff] %v302
  %313 = vst.msk [vmem:[#allocation3 + $0xa0] sm:$0xff] %vm189, %v293
  %314 = vst [vmem:[#allocation3 + $0xa8] sm:$0xff] %v303
  %315 = vst [vmem:[#allocation3 + $0xb0] sm:$0xff] %v304
  %316 = vst.msk [vmem:[#allocation3 + $0xb8] sm:$0xff] %vm189, %v299
  %v317 = vld [vmem:[#allocation2] sm:$0xff]
  %v318 = vld [vmem:[#allocation2 + $0x8] sm:$0xff]
  %v319 = vld [vmem:[#allocation2 + $0x10] sm:$0xff]
  %v320 = vld [vmem:[#allocation2 + $0x18] sm:$0xff]
  %v321 = vld [vmem:[#allocation2 + $0x20] sm:$0xff]
  %v322 = vld [vmem:[#allocation2 + $0x28] sm:$0xff]
  %329 = vrot.lane.b32.xlu0 %v317, 109
  %v330 = vpop.permute.xlu0 %329
  %331 = vrot.lane.b32.xlu0 %v318, 109
  %v332 = vpop.permute.xlu0 %331
  %333 = vrot.lane.b32.xlu0 %v319, 109
  %v334 = vpop.permute.xlu0 %333
  %335 = vrot.lane.b32.xlu0 %v320, 109
  %v336 = vpop.permute.xlu0 %335
  %337 = vrot.lane.b32.xlu0 %v321, 109
  %v338 = vpop.permute.xlu0 %337
  %339 = vrot.lane.b32.xlu0 %v322, 109
  %v340 = vpop.permute.xlu0 %339
  %vm341 = vcmask 891904
  %v342 = vsel %vm341, %v330, %v332
  %v343 = vsel %vm341, %v332, %v334
  %v344 = vsel %vm341, %v336, %v338
  %v345 = vsel %vm341, %v338, %v340
  %352 = vst [vmem:[#allocation3 + $0xc0] sm:$0xff] %v342
  %353 = vst [vmem:[#allocation3 + $0xc8] sm:$0xff] %v343
  %354 = vst.msk [vmem:[#allocation3 + $0xd0] sm:$0xff] %vm189, %v334
  %355 = vst [vmem:[#allocation3 + $0xd8] sm:$0xff] %v344
  %356 = vst [vmem:[#allocation3 + $0xe0] sm:$0xff] %v345
  %357 = vst.msk [vmem:[#allocation3 + $0xe8] sm:$0xff] %vm189, %v340
  %v358 = vld [vmem:[#allocation2] sm:$0xff]
  %v359 = vld [vmem:[#allocation2 + $0x8] sm:$0xff]
  %v360 = vld [vmem:[#allocation2 + $0x10] sm:$0xff]
  %v361 = vld [vmem:[#allocation2 + $0x18] sm:$0xff]
  %v362 = vld [vmem:[#allocation2 + $0x20] sm:$0xff]
  %v363 = vld [vmem:[#allocation2 + $0x28] sm:$0xff]
  %370 = vrot.lane.b32.xlu0 %v358, 108
  %v371 = vpop.permute.xlu0 %370
  %372 = vrot.lane.b32.xlu0 %v359, 108
  %v373 = vpop.permute.xlu0 %372
  %374 = vrot.lane.b32.xlu0 %v360, 108
  %v375 = vpop.permute.xlu0 %374
  %376 = vrot.lane.b32.xlu0 %v361, 108
  %v377 = vpop.permute.xlu0 %376
  %378 = vrot.lane.b32.xlu0 %v362, 108
  %v379 = vpop.permute.xlu0 %378
  %380 = vrot.lane.b32.xlu0 %v363, 108
  %v381 = vpop.permute.xlu0 %380
  %vm382 = vcmask 883712
  %v383 = vsel %vm382, %v371, %v373
  %v384 = vsel %vm382, %v373, %v375
  %v385 = vsel %vm382, %v377, %v379
  %v386 = vsel %vm382, %v379, %v381
  %393 = vst [vmem:[#allocation3 + $0xf0] sm:$0xff] %v383
  %394 = vst [vmem:[#allocation3 + $0xf8] sm:$0xff] %v384
  %395 = vst.msk [vmem:[#allocation3 + $0x100] sm:$0xff] %vm189, %v375
  %396 = vst [vmem:[#allocation3 + $0x108] sm:$0xff] %v385
  %397 = vst [vmem:[#allocation3 + $0x110] sm:$0xff] %v386
  %398 = vst.msk [vmem:[#allocation3 + $0x118] sm:$0xff] %vm189, %v381
  %v399 = vld [vmem:[#allocation2] sm:$0xff]
  %v400 = vld [vmem:[#allocation2 + $0x8] sm:$0xff]
  %v401 = vld [vmem:[#allocation2 + $0x10] sm:$0xff]
  %v402 = vld [vmem:[#allocation2 + $0x18] sm:$0xff]
  %v403 = vld [vmem:[#allocation2 + $0x20] sm:$0xff]
  %v404 = vld [vmem:[#allocation2 + $0x28] sm:$0xff]
  %411 = vrot.lane.b32.xlu0 %v399, 92
  %v412 = vpop.permute.xlu0 %411
  %413 = vrot.lane.b32.xlu0 %v400, 92
  %v414 = vpop.permute.xlu0 %413
  %415 = vrot.lane.b32.xlu0 %v401, 92
  %v416 = vpop.permute.xlu0 %415
  %417 = vrot.lane.b32.xlu0 %v402, 92
  %v418 = vpop.permute.xlu0 %417
  %419 = vrot.lane.b32.xlu0 %v403, 92
  %v420 = vpop.permute.xlu0 %419
  %421 = vrot.lane.b32.xlu0 %v404, 92
  %v422 = vpop.permute.xlu0 %421
  %vm423 = vcmask 752640
  %v424 = vsel %vm423, %v412, %v414
  %v425 = vsel %vm423, %v414, %v416
  %v426 = vsel %vm423, %v418, %v420
  %v427 = vsel %vm423, %v420, %v422
  %434 = vst [vmem:[#allocation3 + $0x120] sm:$0xff] %v424
  %435 = vst [vmem:[#allocation3 + $0x128] sm:$0xff] %v425
  %436 = vst.msk [vmem:[#allocation3 + $0x130] sm:$0xff] %vm189, %v416
  %437 = vst [vmem:[#allocation3 + $0x138] sm:$0xff] %v426
  %438 = vst [vmem:[#allocation3 + $0x140] sm:$0xff] %v427
  %439 = vst.msk [vmem:[#allocation3 + $0x148] sm:$0xff] %vm189, %v422
  %v440 = vld [vmem:[#allocation2] sm:$0xff]
  %v441 = vld [vmem:[#allocation2 + $0x8] sm:$0xff]
  %v442 = vld [vmem:[#allocation2 + $0x10] sm:$0xff]
  %v443 = vld [vmem:[#allocation2 + $0x18] sm:$0xff]
  %v444 = vld [vmem:[#allocation2 + $0x20] sm:$0xff]
  %v445 = vld [vmem:[#allocation2 + $0x28] sm:$0xff]
  %452 = vrot.lane.b32.xlu0 %v440, 91
  %v453 = vpop.permute.xlu0 %452
  %454 = vrot.lane.b32.xlu0 %v441, 91
  %v455 = vpop.permute.xlu0 %454
  %456 = vrot.lane.b32.xlu0 %v442, 91
  %v457 = vpop.permute.xlu0 %456
  %458 = vrot.lane.b32.xlu0 %v443, 91
  %v459 = vpop.permute.xlu0 %458
  %460 = vrot.lane.b32.xlu0 %v444, 91
  %v461 = vpop.permute.xlu0 %460
  %462 = vrot.lane.b32.xlu0 %v445, 91
  %v463 = vpop.permute.xlu0 %462
  %vm464 = vcmask 744448
  %v465 = vsel %vm464, %v453, %v455
  %v466 = vsel %vm464, %v455, %v457
  %v467 = vsel %vm464, %v459, %v461
  %v468 = vsel %vm464, %v461, %v463
  %475 = vst [vmem:[#allocation3 + $0x150] sm:$0xff] %v465
  %476 = vst [vmem:[#allocation3 + $0x158] sm:$0xff] %v466
  %477 = vst.msk [vmem:[#allocation3 + $0x160] sm:$0xff] %vm189, %v457
  %478 = vst [vmem:[#allocation3 + $0x168] sm:$0xff] %v467
  %479 = vst [vmem:[#allocation3 + $0x170] sm:$0xff] %v468
  %480 = vst.msk [vmem:[#allocation3 + $0x178] sm:$0xff] %vm189, %v463
  %v481 = vld [vmem:[#allocation2] sm:$0xff]
  %v482 = vld [vmem:[#allocation2 + $0x8] sm:$0xff]
  %v483 = vld [vmem:[#allocation2 + $0x10] sm:$0xff]
  %v484 = vld [vmem:[#allocation2 + $0x18] sm:$0xff]
  %v485 = vld [vmem:[#allocation2 + $0x20] sm:$0xff]
  %v486 = vld [vmem:[#allocation2 + $0x28] sm:$0xff]
  %493 = vrot.lane.b32.xlu0 %v481, 90
  %v494 = vpop.permute.xlu0 %493
  %495 = vrot.lane.b32.xlu0 %v482, 90
  %v496 = vpop.permute.xlu0 %495
  %497 = vrot.lane.b32.xlu0 %v483, 90
  %v498 = vpop.permute.xlu0 %497
  %499 = vrot.lane.b32.xlu0 %v484, 90
  %v500 = vpop.permute.xlu0 %499
  %501 = vrot.lane.b32.xlu0 %v485, 90
  %v502 = vpop.permute.xlu0 %501
  %503 = vrot.lane.b32.xlu0 %v486, 90
  %v504 = vpop.permute.xlu0 %503
  %vm505 = vcmask 736256
  %v506 = vsel %vm505, %v494, %v496
  %v507 = vsel %vm505, %v496, %v498
  %v508 = vsel %vm505, %v500, %v502
  %v509 = vsel %vm505, %v502, %v504
  %516 = vst [vmem:[#allocation3 + $0x180] sm:$0xff] %v506
  %517 = vst [vmem:[#allocation3 + $0x188] sm:$0xff] %v507
  %518 = vst.msk [vmem:[#allocation3 + $0x190] sm:$0xff] %vm189, %v498
  %519 = vst [vmem:[#allocation3 + $0x198] sm:$0xff] %v508
  %520 = vst [vmem:[#allocation3 + $0x1a0] sm:$0xff] %v509
  %521 = vst.msk [vmem:[#allocation3 + $0x1a8] sm:$0xff] %vm189, %v504
  %v522 = vld [vmem:[#allocation3] sm:$0xff]
  %v523 = vld [vmem:[#allocation3 + $0x8] sm:$0xff]
  %v524 = vld [vmem:[#allocation3 + $0x10] sm:$0xff]
  %v525 = vld [vmem:[#allocation3 + $0x18] sm:$0xff]
  %v526 = vld [vmem:[#allocation3 + $0x20] sm:$0xff]
  %v527 = vld [vmem:[#allocation3 + $0x28] sm:$0xff]
  %v528 = vld [vmem:[#allocation3 + $0x30] sm:$0xff]
  %v529 = vld [vmem:[#allocation3 + $0x38] sm:$0xff]
  %v530 = vld [vmem:[#allocation3 + $0x40] sm:$0xff]
  %v531 = vld [vmem:[#allocation3 + $0x48] sm:$0xff]
  %v532 = vld [vmem:[#allocation3 + $0x50] sm:$0xff]
  %v533 = vld [vmem:[#allocation3 + $0x58] sm:$0xff]
  %v534 = vld [vmem:[#allocation3 + $0x60] sm:$0xff]
  %v535 = vld [vmem:[#allocation3 + $0x68] sm:$0xff]
  %v536 = vld [vmem:[#allocation3 + $0x70] sm:$0xff]
  %v537 = vld [vmem:[#allocation3 + $0x78] sm:$0xff]
  %v538 = vld [vmem:[#allocation3 + $0x80] sm:$0xff]
  %v539 = vld [vmem:[#allocation3 + $0x88] sm:$0xff]
  %v540 = vld [vmem:[#allocation3 + $0x90] sm:$0xff]
  %v541 = vld [vmem:[#allocation3 + $0x98] sm:$0xff]
  %v542 = vld [vmem:[#allocation3 + $0xa0] sm:$0xff]
  %v543 = vld [vmem:[#allocation3 + $0xa8] sm:$0xff]
  %v544 = vld [vmem:[#allocation3 + $0xb0] sm:$0xff]
  %v545 = vld [vmem:[#allocation3 + $0xb8] sm:$0xff]
  %v546 = vld [vmem:[#allocation3 + $0xc0] sm:$0xff]
  %v547 = vld [vmem:[#allocation3 + $0xc8] sm:$0xff]
  %v548 = vld [vmem:[#allocation3 + $0xd0] sm:$0xff]
  %v549 = vld [vmem:[#allocation3 + $0xd8] sm:$0xff]
  %v550 = vld [vmem:[#allocation3 + $0xe0] sm:$0xff]
  %v551 = vld [vmem:[#allocation3 + $0xe8] sm:$0xff]
  %v552 = vld [vmem:[#allocation3 + $0xf0] sm:$0xff]
  %v553 = vld [vmem:[#allocation3 + $0xf8] sm:$0xff]
  %v554 = vld [vmem:[#allocation3 + $0x100] sm:$0xff]
  %v555 = vld [vmem:[#allocation3 + $0x108] sm:$0xff]
  %v556 = vld [vmem:[#allocation3 + $0x110] sm:$0xff]
  %v557 = vld [vmem:[#allocation3 + $0x118] sm:$0xff]
  %v558 = vld [vmem:[#allocation3 + $0x120] sm:$0xff]
  %v559 = vld [vmem:[#allocation3 + $0x128] sm:$0xff]
  %v560 = vld [vmem:[#allocation3 + $0x130] sm:$0xff]
  %v561 = vld [vmem:[#allocation3 + $0x138] sm:$0xff]
  %v562 = vld [vmem:[#allocation3 + $0x140] sm:$0xff]
  %v563 = vld [vmem:[#allocation3 + $0x148] sm:$0xff]
  %v564 = vld [vmem:[#allocation3 + $0x150] sm:$0xff]
  %v565 = vld [vmem:[#allocation3 + $0x158] sm:$0xff]
  %v566 = vld [vmem:[#allocation3 + $0x160] sm:$0xff]
  %v567 = vld [vmem:[#allocation3 + $0x168] sm:$0xff]
  %v568 = vld [vmem:[#allocation3 + $0x170] sm:$0xff]
  %v569 = vld [vmem:[#allocation3 + $0x178] sm:$0xff]
  %v570 = vld [vmem:[#allocation3 + $0x180] sm:$0xff]
  %v571 = vld [vmem:[#allocation3 + $0x188] sm:$0xff]
  %v572 = vld [vmem:[#allocation3 + $0x190] sm:$0xff]
  %v573 = vld [vmem:[#allocation3 + $0x198] sm:$0xff]
  %v574 = vld [vmem:[#allocation3 + $0x1a0] sm:$0xff]
  %v575 = vld [vmem:[#allocation3 + $0x1a8] sm:$0xff]
  %577 = vset.pattern.permute.xlu0 0
  %578 = vperm.xlu0 %577, %v177
  %v579 = vpop.permute.xlu0 %578
  %582 = vset.pattern.permute.xlu0 0
  %583 = vperm.xlu0 %582, %v178
  %v584 = vpop.permute.xlu0 %583
  %587 = vset.pattern.permute.xlu0 0
  %588 = vperm.xlu0 %587, %v179
  %v589 = vpop.permute.xlu0 %588
  %592 = vset.pattern.permute.xlu0 0
  %593 = vperm.xlu0 %592, %v180
  %v594 = vpop.permute.xlu0 %593
  %v604 = vunpack.c.l.b16 %v169
  %v605 = vunpack.c.h.b16 %v169
  %v606 = vunpack.c.l.b16 %v170
  %v607 = vunpack.c.l.b16 %v171
  %v608 = vunpack.c.h.b16 %v171
  %v609 = vunpack.c.l.b16 %v172
  %v610 = vunpack.c.l.b16 %v173
  %v611 = vunpack.c.h.b16 %v173
  %v612 = vunpack.c.l.b16 %v174
  %v613 = vunpack.c.l.b16 %v175
  %v614 = vunpack.c.h.b16 %v175
  %v615 = vunpack.c.l.b16 %v176
  %v616 = vpack.c.b16 %v607, %v604
  %v617 = vpack.c.b16 %v608, %v605
  %v618 = vpack.c.b16 %v609, %v606
  %v619 = vpack.c.b16 %v613, %v610
  %v620 = vpack.c.b16 %v614, %v611
  %v621 = vpack.c.b16 %v615, %v612
  %v627 = vsel %vm189, %v618, 0
  %v630 = vsel %vm189, %v621, 0
  %632 = vmatprep.subr.bf16.mxu0 %v523
  %633 = vmatpush1.bf16.msra.mxu0 %v522
  %634 = vmatprep.subr.bf16.mxu0 %v526
  %635 = vmatpush1.bf16.msra.mxu0 %v525
  %636 = vmatprep.subr.bf16.mxu0 %v529
  %637 = vmatpush1.bf16.msra.mxu0 %v528
  %638 = vmatprep.subr.bf16.mxu0 %v532
  %639 = vmatpush1.bf16.msra.mxu0 %v531
  %640 = vmatprep.subr.bf16.mxu0 %v535
  %641 = vmatpush1.bf16.msra.mxu0 %v534
  %642 = vmatprep.subr.bf16.mxu0 %v538
  %643 = vmatpush1.bf16.msra.mxu0 %v537
  %644 = vmatprep.subr.bf16.mxu0 %v541
  %645 = vmatpush1.bf16.msra.mxu0 %v540
  %646 = vmatprep.subr.bf16.mxu0 %v544
  %647 = vmatpush1.bf16.msra.mxu0 %v543
  %648 = vmatprep.subr.bf16.mxu0 %v547
  %649 = vmatpush1.bf16.msra.mxu0 %v546
  %650 = vmatprep.subr.bf16.mxu0 %v550
  %651 = vmatpush1.bf16.msra.mxu0 %v549
  %652 = vmatprep.subr.bf16.mxu0 %v553
  %653 = vmatpush1.bf16.msra.mxu0 %v552
  %654 = vmatprep.subr.bf16.mxu0 %v556
  %655 = vmatpush1.bf16.msra.mxu0 %v555
  %656 = vmatprep.subr.bf16.mxu0 %v559
  %657 = vmatpush1.bf16.msra.mxu0 %v558
  %658 = vmatprep.subr.bf16.mxu0 %v562
  %659 = vmatpush1.bf16.msra.mxu0 %v561
  %660 = vmatprep.subr.bf16.mxu0 %v565
  %661 = vmatpush1.bf16.msra.mxu0 %v564
  %662 = vmatprep.subr.bf16.mxu0 %v568
  %663 = vmatpush1.bf16.msra.mxu0 %v567
  %664 = vmatprep.mubr.bf16.mxu0 %v617
  %665 = vmatmul.mubr.bf16.gmra.mrb[0].mxu0 %v616
  %v666 = vpop.f32.mrb[0].mxu0
  %v667 = vadd.f32 %v579, %v666
  %v668 = vpop.f32.mrb[0].mxu0
  %v669 = vadd.f32 %v579, %v668
  %v670 = vpop.f32.mrb[0].mxu0
  %v671 = vadd.f32 %v584, %v670
  %v672 = vpop.f32.mrb[0].mxu0
  %v673 = vadd.f32 %v584, %v672
  %674 = vmatprep.mubr.bf16.mxu0 %v620
  %675 = vmatmul.mubr.bf16.gmra.mrb[0].mxu0 %v619
  %v676 = vpop.f32.mrb[0].mxu0
  %v677 = vadd.f32 %v589, %v676
  %v678 = vpop.f32.mrb[0].mxu0
  %v679 = vadd.f32 %v589, %v678
  %v680 = vpop.f32.mrb[0].mxu0
  %v681 = vadd.f32 %v594, %v680
  %v682 = vpop.f32.mrb[0].mxu0
  %v683 = vadd.f32 %v594, %v682
  %684 = vdwg.mxu0
  %685 = vmatprep.subr.bf16.mxu0 %v571
  %686 = vmatpush1.bf16.msra.mxu0 %v570
  %687 = vmatprep.subr.bf16.mxu0 %v574
  %688 = vmatpush1.bf16.msra.mxu0 %v573
  %689 = vmatprep.subr.bf16.mxu0 0
  %690 = vmatpush1.bf16.msra.mxu0 0
  %691 = vmatprep.subr.bf16.mxu0 0
  %692 = vmatpush1.bf16.msra.mxu0 0
  %693 = vmatprep.subr.bf16.mxu0 0
  %694 = vmatpush1.bf16.msra.mxu0 0
  %695 = vmatprep.subr.bf16.mxu0 0
  %696 = vmatpush1.bf16.msra.mxu0 0
  %697 = vmatprep.subr.bf16.mxu0 0
  %698 = vmatpush1.bf16.msra.mxu0 0
  %699 = vmatprep.subr.bf16.mxu0 0
  %700 = vmatpush1.bf16.msra.mxu0 0
  %701 = vmatprep.subr.bf16.mxu0 0
  %702 = vmatpush1.bf16.msra.mxu0 0
  %703 = vmatprep.subr.bf16.mxu0 0
  %704 = vmatpush1.bf16.msra.mxu0 0
  %705 = vmatprep.subr.bf16.mxu0 0
  %706 = vmatpush1.bf16.msra.mxu0 0
  %707 = vmatprep.subr.bf16.mxu0 0
  %708 = vmatpush1.bf16.msra.mxu0 0
  %709 = vmatprep.subr.bf16.mxu0 0
  %710 = vmatpush1.bf16.msra.mxu0 0
  %711 = vmatprep.subr.bf16.mxu0 0
  %712 = vmatpush1.bf16.msra.mxu0 0
  %713 = vmatprep.subr.bf16.mxu0 0
  %714 = vmatpush1.bf16.msra.mxu0 0
  %715 = vmatprep.subr.bf16.mxu0 0
  %716 = vmatpush1.bf16.msra.mxu0 0
  %717 = vmatprep.mubr.bf16.mxu0 0
  %718 = vmatmul.mubr.bf16.gmra.mrb[0].mxu0 %v627
  %v719 = vpop.f32.mrb[0].mxu0
  %v720 = vadd.f32 %v667, %v719
  %v721 = vpop.f32.mrb[0].mxu0
  %v722 = vadd.f32 %v669, %v721
  %v723 = vpop.f32.mrb[0].mxu0
  %v724 = vadd.f32 %v671, %v723
  %v725 = vpop.f32.mrb[0].mxu0
  %v726 = vadd.f32 %v673, %v725
  %727 = vmatprep.mubr.bf16.mxu0 0
  %728 = vmatmul.mubr.bf16.gmra.mrb[0].mxu0 %v630
  %v729 = vpop.f32.mrb[0].mxu0
  %v730 = vadd.f32 %v677, %v729
  %v731 = vpop.f32.mrb[0].mxu0
  %v732 = vadd.f32 %v679, %v731
  %v733 = vpop.f32.mrb[0].mxu0
  %v734 = vadd.f32 %v681, %v733
  %v735 = vpop.f32.mrb[0].mxu0
  %v736 = vadd.f32 %v683, %v735
  %737 = vdwg.mxu0
  %738 = vmatprep.subr.bf16.mxu0 0
  %739 = vmatpush1.bf16.msra.mxu0 %v524
  %740 = vmatprep.subr.bf16.mxu0 0
  %741 = vmatpush1.bf16.msra.mxu0 %v527
  %742 = vmatprep.subr.bf16.mxu0 0
  %743 = vmatpush1.bf16.msra.mxu0 %v530
  %744 = vmatprep.subr.bf16.mxu0 0
  %745 = vmatpush1.bf16.msra.mxu0 %v533
  %746 = vmatprep.subr.bf16.mxu0 0
  %747 = vmatpush1.bf16.msra.mxu0 %v536
  %748 = vmatprep.subr.bf16.mxu0 0
  %749 = vmatpush1.bf16.msra.mxu0 %v539
  %750 = vmatprep.subr.bf16.mxu0 0
  %751 = vmatpush1.bf16.msra.mxu0 %v542
  %752 = vmatprep.subr.bf16.mxu0 0
  %753 = vmatpush1.bf16.msra.mxu0 %v545
  %754 = vmatprep.subr.bf16.mxu0 0
  %755 = vmatpush1.bf16.msra.mxu0 %v548
  %756 = vmatprep.subr.bf16.mxu0 0
  %757 = vmatpush1.bf16.msra.mxu0 %v551
  %758 = vmatprep.subr.bf16.mxu0 0
  %759 = vmatpush1.bf16.msra.mxu0 %v554
  %760 = vmatprep.subr.bf16.mxu0 0
  %761 = vmatpush1.bf16.msra.mxu0 %v557
  %762 = vmatprep.subr.bf16.mxu0 0
  %763 = vmatpush1.bf16.msra.mxu0 %v560
  %764 = vmatprep.subr.bf16.mxu0 0
  %765 = vmatpush1.bf16.msra.mxu0 %v563
  %766 = vmatprep.subr.bf16.mxu0 0
  %767 = vmatpush1.bf16.msra.mxu0 %v566
  %768 = vmatprep.subr.bf16.mxu0 0
  %769 = vmatpush1.bf16.msra.mxu0 %v569
  %770 = vmatprep.mubr.bf16.mxu0 %v617
  %771 = vmatmul.mubr.bf16.gmra.mrb[0].mxu0 %v616
  %v772 = vpop.f32.mrb[0].mxu0
  %v773 = vadd.f32 %v579, %v772
  %v774 = vpop.f32.mrb[0].mxu0
  %v775 = vpop.f32.mrb[0].mxu0
  %v776 = vadd.f32 %v584, %v775
  %v777 = vpop.f32.mrb[0].mxu0
  %778 = vmatprep.mubr.bf16.mxu0 %v620
  %779 = vmatmul.mubr.bf16.gmra.mrb[0].mxu0 %v619
  %v780 = vpop.f32.mrb[0].mxu0
  %v781 = vadd.f32 %v589, %v780
  %v782 = vpop.f32.mrb[0].mxu0
  %v783 = vpop.f32.mrb[0].mxu0
  %v784 = vadd.f32 %v594, %v783
  %v785 = vpop.f32.mrb[0].mxu0
  %786 = vdwg.mxu0
  %787 = vmatprep.subr.bf16.mxu0 0
  %788 = vmatpush1.bf16.msra.mxu0 %v572
  %789 = vmatprep.subr.bf16.mxu0 0
  %790 = vmatpush1.bf16.msra.mxu0 %v575
  %791 = vmatprep.subr.bf16.mxu0 0
  %792 = vmatpush1.bf16.msra.mxu0 0
  %793 = vmatprep.subr.bf16.mxu0 0
  %794 = vmatpush1.bf16.msra.mxu0 0
  %795 = vmatprep.subr.bf16.mxu0 0
  %796 = vmatpush1.bf16.msra.mxu0 0
  %797 = vmatprep.subr.bf16.mxu0 0
  %798 = vmatpush1.bf16.msra.mxu0 0
  %799 = vmatprep.subr.bf16.mxu0 0
  %800 = vmatpush1.bf16.msra.mxu0 0
  %801 = vmatprep.subr.bf16.mxu0 0
  %802 = vmatpush1.bf16.msra.mxu0 0
  %803 = vmatprep.subr.bf16.mxu0 0
  %804 = vmatpush1.bf16.msra.mxu0 0
  %805 = vmatprep.subr.bf16.mxu0 0
  %806 = vmatpush1.bf16.msra.mxu0 0
  %807 = vmatprep.subr.bf16.mxu0 0
  %808 = vmatpush1.bf16.msra.mxu0 0
  %809 = vmatprep.subr.bf16.mxu0 0
  %810 = vmatpush1.bf16.msra.mxu0 0
  %811 = vmatprep.subr.bf16.mxu0 0
  %812 = vmatpush1.bf16.msra.mxu0 0
  %813 = vmatprep.subr.bf16.mxu0 0
  %814 = vmatpush1.bf16.msra.mxu0 0
  %815 = vmatprep.subr.bf16.mxu0 0
  %816 = vmatpush1.bf16.msra.mxu0 0
  %817 = vmatprep.subr.bf16.mxu0 0
  %818 = vmatpush1.bf16.msra.mxu0 0
  %819 = vmatprep.mubr.bf16.mxu0 0
  %820 = vmatmul.mubr.bf16.gmra.mrb[0].mxu0 %v627
  %v821 = vpop.f32.mrb[0].mxu0
  %v822 = vadd.f32 %v773, %v821
  %v823 = vpop.f32.mrb[0].mxu0
  %v824 = vpop.f32.mrb[0].mxu0
  %v825 = vadd.f32 %v776, %v824
  %v826 = vpop.f32.mrb[0].mxu0
  %827 = vmatprep.mubr.bf16.mxu0 0
  %828 = vmatmul.mubr.bf16.gmra.mrb[0].mxu0 %v630
  %v829 = vpop.f32.mrb[0].mxu0
  %v830 = vadd.f32 %v781, %v829
  %v831 = vpop.f32.mrb[0].mxu0
  %v832 = vpop.f32.mrb[0].mxu0
  %v833 = vadd.f32 %v784, %v832
  %v834 = vpop.f32.mrb[0].mxu0
  %835 = vdwg.mxu0
  %v836 = vmax.f32 %v720, 0.0
  %v837 = vmax.f32 %v722, 0.0
  %v838 = vmax.f32 %v822, 0.0
  %v839 = vmax.f32 %v724, 0.0
  %v840 = vmax.f32 %v726, 0.0
  %v841 = vmax.f32 %v825, 0.0
  %v842 = vmax.f32 %v730, 0.0
  %v843 = vmax.f32 %v732, 0.0
  %v844 = vmax.f32 %v830, 0.0
  %v845 = vmax.f32 %v734, 0.0
  %v846 = vmax.f32 %v736, 0.0
  %v847 = vmax.f32 %v833, 0.0
  %v848 = vsel %vm73, 1, 0
  %v849 = vsel %vm74, 1, 0
  %v850 = vsel %vm75, 1, 0
  %vm851 = vcmp.eq.s32.totalorder %v848, 1
  %vm852 = vcmp.eq.s32.totalorder %v849, 1
  %vm853 = vcmp.eq.s32.totalorder %v850, 1
  %v854 = vsel %vm851, %v836, 0.0
  %v855 = vsel %vm852, %v837, 0.0
  %v856 = vsel %vm853, %v838, 0.0
  %v857 = vsel %vm851, %v839, 0.0
  %v858 = vsel %vm852, %v840, 0.0
  %v859 = vsel %vm853, %v841, 0.0
  %v860 = vsel %vm851, %v842, 0.0
  %v861 = vsel %vm852, %v843, 0.0
  %v862 = vsel %vm853, %v844, 0.0
  %v863 = vsel %vm851, %v845, 0.0
  %v864 = vsel %vm852, %v846, 0.0
  %v865 = vsel %vm853, %v847, 0.0
  %v866 = vpack.c.bf16 %v857, %v854
  %v867 = vpack.c.bf16 %v858, %v855
  %v868 = vpack.c.bf16 %v859, %v856
  %v869 = vpack.c.bf16 %v863, %v860
  %v870 = vpack.c.bf16 %v864, %v861
  %v871 = vpack.c.bf16 %v865, %v862
  %878 = vrot.lane.b32.xlu0 %v866, 19
  %v879 = vpop.permute.xlu0 %878
  %880 = vrot.lane.b32.xlu0 %v867, 19
  %v881 = vpop.permute.xlu0 %880
  %882 = vrot.lane.b32.xlu0 %v868, 19
  %v883 = vpop.permute.xlu0 %882
  %884 = vrot.lane.b32.xlu0 %v869, 19
  %v885 = vpop.permute.xlu0 %884
  %886 = vrot.lane.b32.xlu0 %v870, 19
  %v887 = vpop.permute.xlu0 %886
  %888 = vrot.lane.b32.xlu0 %v871, 19
  %v889 = vpop.permute.xlu0 %888
  %vm890 = vcmask 154624
  %v891 = vsel %vm890, %v879, %v881
  %v892 = vsel %vm890, %v881, %v883
  %v893 = vsel %vm890, %v885, %v887
  %v894 = vsel %vm890, %v887, %v889
  %vm901 = vcmask 1047704
  %902 = vst.msk [vmem:[#allocation2] sm:$0xff] %vm901, %v879
  %903 = vst [vmem:[#allocation2 + $0x8] sm:$0xff] %v891
  %vm904 = vcmask 416768
  %905 = vst.msk [vmem:[#allocation2 + $0x10] sm:$0xff] %vm904, %v892
  %906 = vst.msk [vmem:[#allocation2 + $0x18] sm:$0xff] %vm901, %v885
  %907 = vst [vmem:[#allocation2 + $0x20] sm:$0xff] %v893
  %908 = vst.msk [vmem:[#allocation2 + $0x28] sm:$0xff] %vm904, %v894
  %s909 = scalar_lea.vmem [#allocation2], 48
  %v910 = vld [vmem:[%s909] sm:$0xff]
  %v911 = vld [vmem:[%s909 + $0x8] sm:$0xff]
  %v912 = vld [vmem:[%s909 + $0x10] sm:$0xff]
  %v913 = vld [vmem:[%s909 + $0x18] sm:$0xff]
  %v914 = vld [vmem:[%s909 + $0x20] sm:$0xff]
  %v915 = vld [vmem:[%s909 + $0x28] sm:$0xff]
  %916 = vst [vmem:[#allocation3] sm:$0xff] %v910
  %917 = vst [vmem:[#allocation3 + $0x8] sm:$0xff] %v911
  %918 = vst.msk [vmem:[#allocation3 + $0x10] sm:$0xff] %vm189, %v912
  %919 = vst [vmem:[#allocation3 + $0x18] sm:$0xff] %v913
  %920 = vst [vmem:[#allocation3 + $0x20] sm:$0xff] %v914
  %921 = vst.msk [vmem:[#allocation3 + $0x28] sm:$0xff] %vm189, %v915
  %v922 = vld [vmem:[%s909] sm:$0xff]
  %v923 = vld [vmem:[%s909 + $0x8] sm:$0xff]
  %v924 = vld [vmem:[%s909 + $0x10] sm:$0xff]
  %v925 = vld [vmem:[%s909 + $0x18] sm:$0xff]
  %v926 = vld [vmem:[%s909 + $0x20] sm:$0xff]
  %v927 = vld [vmem:[%s909 + $0x28] sm:$0xff]
  %934 = vrot.lane.b32.xlu0 %v922, 127
  %v935 = vpop.permute.xlu0 %934
  %936 = vrot.lane.b32.xlu0 %v923, 127
  %v937 = vpop.permute.xlu0 %936
  %938 = vrot.lane.b32.xlu0 %v924, 127
  %v939 = vpop.permute.xlu0 %938
  %940 = vrot.lane.b32.xlu0 %v925, 127
  %v941 = vpop.permute.xlu0 %940
  %942 = vrot.lane.b32.xlu0 %v926, 127
  %v943 = vpop.permute.xlu0 %942
  %944 = vrot.lane.b32.xlu0 %v927, 127
  %v945 = vpop.permute.xlu0 %944
  %v946 = vsel %vm218, %v935, %v937
  %v947 = vsel %vm218, %v937, %v939
  %v948 = vsel %vm218, %v941, %v943
  %v949 = vsel %vm218, %v943, %v945
  %956 = vst [vmem:[#allocation3 + $0x30] sm:$0xff] %v946
  %957 = vst [vmem:[#allocation3 + $0x38] sm:$0xff] %v947
  %958 = vst.msk [vmem:[#allocation3 + $0x40] sm:$0xff] %vm189, %v939
  %959 = vst [vmem:[#allocation3 + $0x48] sm:$0xff] %v948
  %960 = vst [vmem:[#allocation3 + $0x50] sm:$0xff] %v949
  %961 = vst.msk [vmem:[#allocation3 + $0x58] sm:$0xff] %vm189, %v945
  %v962 = vld [vmem:[%s909] sm:$0xff]
  %v963 = vld [vmem:[%s909 + $0x8] sm:$0xff]
  %v964 = vld [vmem:[%s909 + $0x10] sm:$0xff]
  %v965 = vld [vmem:[%s909 + $0x18] sm:$0xff]
  %v966 = vld [vmem:[%s909 + $0x20] sm:$0xff]
  %v967 = vld [vmem:[%s909 + $0x28] sm:$0xff]
  %974 = vrot.lane.b32.xlu0 %v962, 126
  %v975 = vpop.permute.xlu0 %974
  %976 = vrot.lane.b32.xlu0 %v963, 126
  %v977 = vpop.permute.xlu0 %976
  %978 = vrot.lane.b32.xlu0 %v964, 126
  %v979 = vpop.permute.xlu0 %978
  %980 = vrot.lane.b32.xlu0 %v965, 126
  %v981 = vpop.permute.xlu0 %980
  %982 = vrot.lane.b32.xlu0 %v966, 126
  %v983 = vpop.permute.xlu0 %982
  %984 = vrot.lane.b32.xlu0 %v967, 126
  %v985 = vpop.permute.xlu0 %984
  %v986 = vsel %vm259, %v975, %v977
  %v987 = vsel %vm259, %v977, %v979
  %v988 = vsel %vm259, %v981, %v983
  %v989 = vsel %vm259, %v983, %v985
  %996 = vst [vmem:[#allocation3 + $0x60] sm:$0xff] %v986
  %997 = vst [vmem:[#allocation3 + $0x68] sm:$0xff] %v987
  %998 = vst.msk [vmem:[#allocation3 + $0x70] sm:$0xff] %vm189, %v979
  %999 = vst [vmem:[#allocation3 + $0x78] sm:$0xff] %v988
  %1000 = vst [vmem:[#allocation3 + $0x80] sm:$0xff] %v989
  %1001 = vst.msk [vmem:[#allocation3 + $0x88] sm:$0xff] %vm189, %v985
  %v1002 = vld [vmem:[%s909] sm:$0xff]
  %v1003 = vld [vmem:[%s909 + $0x8] sm:$0xff]
  %v1004 = vld [vmem:[%s909 + $0x10] sm:$0xff]
  %v1005 = vld [vmem:[%s909 + $0x18] sm:$0xff]
  %v1006 = vld [vmem:[%s909 + $0x20] sm:$0xff]
  %v1007 = vld [vmem:[%s909 + $0x28] sm:$0xff]
  %1014 = vrot.lane.b32.xlu0 %v1002, 110
  %v1015 = vpop.permute.xlu0 %1014
  %1016 = vrot.lane.b32.xlu0 %v1003, 110
  %v1017 = vpop.permute.xlu0 %1016
  %1018 = vrot.lane.b32.xlu0 %v1004, 110
  %v1019 = vpop.permute.xlu0 %1018
  %1020 = vrot.lane.b32.xlu0 %v1005, 110
  %v1021 = vpop.permute.xlu0 %1020
  %1022 = vrot.lane.b32.xlu0 %v1006, 110
  %v1023 = vpop.permute.xlu0 %1022
  %1024 = vrot.lane.b32.xlu0 %v1007, 110
  %v1025 = vpop.permute.xlu0 %1024
  %v1026 = vsel %vm300, %v1015, %v1017
  %v1027 = vsel %vm300, %v1017, %v1019
  %v1028 = vsel %vm300, %v1021, %v1023
  %v1029 = vsel %vm300, %v1023, %v1025
  %1036 = vst [vmem:[#allocation3 + $0x90] sm:$0xff] %v1026
  %1037 = vst [vmem:[#allocation3 + $0x98] sm:$0xff] %v1027
  %1038 = vst.msk [vmem:[#allocation3 + $0xa0] sm:$0xff] %vm189, %v1019
  %1039 = vst [vmem:[#allocation3 + $0xa8] sm:$0xff] %v1028
  %1040 = vst [vmem:[#allocation3 + $0xb0] sm:$0xff] %v1029
  %1041 = vst.msk [vmem:[#allocation3 + $0xb8] sm:$0xff] %vm189, %v1025
  %v1042 = vld [vmem:[%s909] sm:$0xff]
  %v1043 = vld [vmem:[%s909 + $0x8] sm:$0xff]
  %v1044 = vld [vmem:[%s909 + $0x10] sm:$0xff]
  %v1045 = vld [vmem:[%s909 + $0x18] sm:$0xff]
  %v1046 = vld [vmem:[%s909 + $0x20] sm:$0xff]
  %v1047 = vld [vmem:[%s909 + $0x28] sm:$0xff]
  %1054 = vrot.lane.b32.xlu0 %v1042, 109
  %v1055 = vpop.permute.xlu0 %1054
  %1056 = vrot.lane.b32.xlu0 %v1043, 109
  %v1057 = vpop.permute.xlu0 %1056
  %1058 = vrot.lane.b32.xlu0 %v1044, 109
  %v1059 = vpop.permute.xlu0 %1058
  %1060 = vrot.lane.b32.xlu0 %v1045, 109
  %v1061 = vpop.permute.xlu0 %1060
  %1062 = vrot.lane.b32.xlu0 %v1046, 109
  %v1063 = vpop.permute.xlu0 %1062
  %1064 = vrot.lane.b32.xlu0 %v1047, 109
  %v1065 = vpop.permute.xlu0 %1064
  %v1066 = vsel %vm341, %v1055, %v1057
  %v1067 = vsel %vm341, %v1057, %v1059
  %v1068 = vsel %vm341, %v1061, %v1063
  %v1069 = vsel %vm341, %v1063, %v1065
  %1076 = vst [vmem:[#allocation3 + $0xc0] sm:$0xff] %v1066
  %1077 = vst [vmem:[#allocation3 + $0xc8] sm:$0xff] %v1067
  %1078 = vst.msk [vmem:[#allocation3 + $0xd0] sm:$0xff] %vm189, %v1059
  %1079 = vst [vmem:[#allocation3 + $0xd8] sm:$0xff] %v1068
  %1080 = vst [vmem:[#allocation3 + $0xe0] sm:$0xff] %v1069
  %1081 = vst.msk [vmem:[#allocation3 + $0xe8] sm:$0xff] %vm189, %v1065
  %v1082 = vld [vmem:[%s909] sm:$0xff]
  %v1083 = vld [vmem:[%s909 + $0x8] sm:$0xff]
  %v1084 = vld [vmem:[%s909 + $0x10] sm:$0xff]
  %v1085 = vld [vmem:[%s909 + $0x18] sm:$0xff]
  %v1086 = vld [vmem:[%s909 + $0x20] sm:$0xff]
  %v1087 = vld [vmem:[%s909 + $0x28] sm:$0xff]
  %1094 = vrot.lane.b32.xlu0 %v1082, 108
  %v1095 = vpop.permute.xlu0 %1094
  %1096 = vrot.lane.b32.xlu0 %v1083, 108
  %v1097 = vpop.permute.xlu0 %1096
  %1098 = vrot.lane.b32.xlu0 %v1084, 108
  %v1099 = vpop.permute.xlu0 %1098
  %1100 = vrot.lane.b32.xlu0 %v1085, 108
  %v1101 = vpop.permute.xlu0 %1100
  %1102 = vrot.lane.b32.xlu0 %v1086, 108
  %v1103 = vpop.permute.xlu0 %1102
  %1104 = vrot.lane.b32.xlu0 %v1087, 108
  %v1105 = vpop.permute.xlu0 %1104
  %v1106 = vsel %vm382, %v1095, %v1097
  %v1107 = vsel %vm382, %v1097, %v1099
  %v1108 = vsel %vm382, %v1101, %v1103
  %v1109 = vsel %vm382, %v1103, %v1105
  %1116 = vst [vmem:[#allocation3 + $0xf0] sm:$0xff] %v1106
  %1117 = vst [vmem:[#allocation3 + $0xf8] sm:$0xff] %v1107
  %1118 = vst.msk [vmem:[#allocation3 + $0x100] sm:$0xff] %vm189, %v1099
  %1119 = vst [vmem:[#allocation3 + $0x108] sm:$0xff] %v1108
  %1120 = vst [vmem:[#allocation3 + $0x110] sm:$0xff] %v1109
  %1121 = vst.msk [vmem:[#allocation3 + $0x118] sm:$0xff] %vm189, %v1105
  %v1122 = vld [vmem:[%s909] sm:$0xff]
  %v1123 = vld [vmem:[%s909 + $0x8] sm:$0xff]
  %v1124 = vld [vmem:[%s909 + $0x10] sm:$0xff]
  %v1125 = vld [vmem:[%s909 + $0x18] sm:$0xff]
  %v1126 = vld [vmem:[%s909 + $0x20] sm:$0xff]
  %v1127 = vld [vmem:[%s909 + $0x28] sm:$0xff]
  %1134 = vrot.lane.b32.xlu0 %v1122, 92
  %v1135 = vpop.permute.xlu0 %1134
  %1136 = vrot.lane.b32.xlu0 %v1123, 92
  %v1137 = vpop.permute.xlu0 %1136
  %1138 = vrot.lane.b32.xlu0 %v1124, 92
  %v1139 = vpop.permute.xlu0 %1138
  %1140 = vrot.lane.b32.xlu0 %v1125, 92
  %v1141 = vpop.permute.xlu0 %1140
  %1142 = vrot.lane.b32.xlu0 %v1126, 92
  %v1143 = vpop.permute.xlu0 %1142
  %1144 = vrot.lane.b32.xlu0 %v1127, 92
  %v1145 = vpop.permute.xlu0 %1144
  %v1146 = vsel %vm423, %v1135, %v1137
  %v1147 = vsel %vm423, %v1137, %v1139
  %v1148 = vsel %vm423, %v1141, %v1143
  %v1149 = vsel %vm423, %v1143, %v1145
  %1156 = vst [vmem:[#allocation3 + $0x120] sm:$0xff] %v1146
  %1157 = vst [vmem:[#allocation3 + $0x128] sm:$0xff] %v1147
  %1158 = vst.msk [vmem:[#allocation3 + $0x130] sm:$0xff] %vm189, %v1139
  %1159 = vst [vmem:[#allocation3 + $0x138] sm:$0xff] %v1148
  %1160 = vst [vmem:[#allocation3 + $0x140] sm:$0xff] %v1149
  %1161 = vst.msk [vmem:[#allocation3 + $0x148] sm:$0xff] %vm189, %v1145
  %v1162 = vld [vmem:[%s909] sm:$0xff]
  %v1163 = vld [vmem:[%s909 + $0x8] sm:$0xff]
  %v1164 = vld [vmem:[%s909 + $0x10] sm:$0xff]
  %v1165 = vld [vmem:[%s909 + $0x18] sm:$0xff]
  %v1166 = vld [vmem:[%s909 + $0x20] sm:$0xff]
  %v1167 = vld [vmem:[%s909 + $0x28] sm:$0xff]
  %1174 = vrot.lane.b32.xlu0 %v1162, 91
  %v1175 = vpop.permute.xlu0 %1174
  %1176 = vrot.lane.b32.xlu0 %v1163, 91
  %v1177 = vpop.permute.xlu0 %1176
  %1178 = vrot.lane.b32.xlu0 %v1164, 91
  %v1179 = vpop.permute.xlu0 %1178
  %1180 = vrot.lane.b32.xlu0 %v1165, 91
  %v1181 = vpop.permute.xlu0 %1180
  %1182 = vrot.lane.b32.xlu0 %v1166, 91
  %v1183 = vpop.permute.xlu0 %1182
  %1184 = vrot.lane.b32.xlu0 %v1167, 91
  %v1185 = vpop.permute.xlu0 %1184
  %v1186 = vsel %vm464, %v1175, %v1177
  %v1187 = vsel %vm464, %v1177, %v1179
  %v1188 = vsel %vm464, %v1181, %v1183
  %v1189 = vsel %vm464, %v1183, %v1185
  %1196 = vst [vmem:[#allocation3 + $0x150] sm:$0xff] %v1186
  %1197 = vst [vmem:[#allocation3 + $0x158] sm:$0xff] %v1187
  %1198 = vst.msk [vmem:[#allocation3 + $0x160] sm:$0xff] %vm189, %v1179
  %1199 = vst [vmem:[#allocation3 + $0x168] sm:$0xff] %v1188
  %1200 = vst [vmem:[#allocation3 + $0x170] sm:$0xff] %v1189
  %1201 = vst.msk [vmem:[#allocation3 + $0x178] sm:$0xff] %vm189, %v1185
  %v1202 = vld [vmem:[%s909] sm:$0xff]
  %v1203 = vld [vmem:[%s909 + $0x8] sm:$0xff]
  %v1204 = vld [vmem:[%s909 + $0x10] sm:$0xff]
  %v1205 = vld [vmem:[%s909 + $0x18] sm:$0xff]
  %v1206 = vld [vmem:[%s909 + $0x20] sm:$0xff]
  %v1207 = vld [vmem:[%s909 + $0x28] sm:$0xff]
  %1214 = vrot.lane.b32.xlu0 %v1202, 90
  %v1215 = vpop.permute.xlu0 %1214
  %1216 = vrot.lane.b32.xlu0 %v1203, 90
  %v1217 = vpop.permute.xlu0 %1216
  %1218 = vrot.lane.b32.xlu0 %v1204, 90
  %v1219 = vpop.permute.xlu0 %1218
  %1220 = vrot.lane.b32.xlu0 %v1205, 90
  %v1221 = vpop.permute.xlu0 %1220
  %1222 = vrot.lane.b32.xlu0 %v1206, 90
  %v1223 = vpop.permute.xlu0 %1222
  %1224 = vrot.lane.b32.xlu0 %v1207, 90
  %v1225 = vpop.permute.xlu0 %1224
  %v1226 = vsel %vm505, %v1215, %v1217
  %v1227 = vsel %vm505, %v1217, %v1219
  %v1228 = vsel %vm505, %v1221, %v1223
  %v1229 = vsel %vm505, %v1223, %v1225
  %1236 = vst [vmem:[#allocation3 + $0x180] sm:$0xff] %v1226
  %1237 = vst [vmem:[#allocation3 + $0x188] sm:$0xff] %v1227
  %1238 = vst.msk [vmem:[#allocation3 + $0x190] sm:$0xff] %vm189, %v1219
  %1239 = vst [vmem:[#allocation3 + $0x198] sm:$0xff] %v1228
  %1240 = vst [vmem:[#allocation3 + $0x1a0] sm:$0xff] %v1229
  %1241 = vst.msk [vmem:[#allocation3 + $0x1a8] sm:$0xff] %vm189, %v1225
  %v1242 = vld [vmem:[#allocation3] sm:$0xff]
  %v1243 = vld [vmem:[#allocation3 + $0x8] sm:$0xff]
  %v1244 = vld [vmem:[#allocation3 + $0x10] sm:$0xff]
  %v1245 = vld [vmem:[#allocation3 + $0x18] sm:$0xff]
  %v1246 = vld [vmem:[#allocation3 + $0x20] sm:$0xff]
  %v1247 = vld [vmem:[#allocation3 + $0x28] sm:$0xff]
  %v1248 = vld [vmem:[#allocation3 + $0x30] sm:$0xff]
  %v1249 = vld [vmem:[#allocation3 + $0x38] sm:$0xff]
  %v1250 = vld [vmem:[#allocation3 + $0x40] sm:$0xff]
  %v1251 = vld [vmem:[#allocation3 + $0x48] sm:$0xff]
  %v1252 = vld [vmem:[#allocation3 + $0x50] sm:$0xff]
  %v1253 = vld [vmem:[#allocation3 + $0x58] sm:$0xff]
  %v1254 = vld [vmem:[#allocation3 + $0x60] sm:$0xff]
  %v1255 = vld [vmem:[#allocation3 + $0x68] sm:$0xff]
  %v1256 = vld [vmem:[#allocation3 + $0x70] sm:$0xff]
  %v1257 = vld [vmem:[#allocation3 + $0x78] sm:$0xff]
  %v1258 = vld [vmem:[#allocation3 + $0x80] sm:$0xff]
  %v1259 = vld [vmem:[#allocation3 + $0x88] sm:$0xff]
  %v1260 = vld [vmem:[#allocation3 + $0x90] sm:$0xff]
  %v1261 = vld [vmem:[#allocation3 + $0x98] sm:$0xff]
  %v1262 = vld [vmem:[#allocation3 + $0xa0] sm:$0xff]
  %v1263 = vld [vmem:[#allocation3 + $0xa8] sm:$0xff]
  %v1264 = vld [vmem:[#allocation3 + $0xb0] sm:$0xff]
  %v1265 = vld [vmem:[#allocation3 + $0xb8] sm:$0xff]
  %v1266 = vld [vmem:[#allocation3 + $0xc0] sm:$0xff]
  %v1267 = vld [vmem:[#allocation3 + $0xc8] sm:$0xff]
  %v1268 = vld [vmem:[#allocation3 + $0xd0] sm:$0xff]
  %v1269 = vld [vmem:[#allocation3 + $0xd8] sm:$0xff]
  %v1270 = vld [vmem:[#allocation3 + $0xe0] sm:$0xff]
  %v1271 = vld [vmem:[#allocation3 + $0xe8] sm:$0xff]
  %v1272 = vld [vmem:[#allocation3 + $0xf0] sm:$0xff]
  %v1273 = vld [vmem:[#allocation3 + $0xf8] sm:$0xff]
  %v1274 = vld [vmem:[#allocation3 + $0x100] sm:$0xff]
  %v1275 = vld [vmem:[#allocation3 + $0x108] sm:$0xff]
  %v1276 = vld [vmem:[#allocation3 + $0x110] sm:$0xff]
  %v1277 = vld [vmem:[#allocation3 + $0x118] sm:$0xff]
  %v1278 = vld [vmem:[#allocation3 + $0x120] sm:$0xff]
  %v1279 = vld [vmem:[#allocation3 + $0x128] sm:$0xff]
  %v1280 = vld [vmem:[#allocation3 + $0x130] sm:$0xff]
  %v1281 = vld [vmem:[#allocation3 + $0x138] sm:$0xff]
  %v1282 = vld [vmem:[#allocation3 + $0x140] sm:$0xff]
  %v1283 = vld [vmem:[#allocation3 + $0x148] sm:$0xff]
  %v1284 = vld [vmem:[#allocation3 + $0x150] sm:$0xff]
  %v1285 = vld [vmem:[#allocation3 + $0x158] sm:$0xff]
  %v1286 = vld [vmem:[#allocation3 + $0x160] sm:$0xff]
  %v1287 = vld [vmem:[#allocation3 + $0x168] sm:$0xff]
  %v1288 = vld [vmem:[#allocation3 + $0x170] sm:$0xff]
  %v1289 = vld [vmem:[#allocation3 + $0x178] sm:$0xff]
  %v1290 = vld [vmem:[#allocation3 + $0x180] sm:$0xff]
  %v1291 = vld [vmem:[#allocation3 + $0x188] sm:$0xff]
  %v1292 = vld [vmem:[#allocation3 + $0x190] sm:$0xff]
  %v1293 = vld [vmem:[#allocation3 + $0x198] sm:$0xff]
  %v1294 = vld [vmem:[#allocation3 + $0x1a0] sm:$0xff]
  %v1295 = vld [vmem:[#allocation3 + $0x1a8] sm:$0xff]
  %1296 = vmatprep.subr.bf16.mxu0 %v1243
  %1297 = vmatpush1.bf16.msra.mxu0 %v1242
  %1298 = vmatprep.subr.bf16.mxu0 %v1246
  %1299 = vmatpush1.bf16.msra.mxu0 %v1245
  %1300 = vmatprep.subr.bf16.mxu0 %v1249
  %1301 = vmatpush1.bf16.msra.mxu0 %v1248
  %1302 = vmatprep.subr.bf16.mxu0 %v1252
  %1303 = vmatpush1.bf16.msra.mxu0 %v1251
  %1304 = vmatprep.subr.bf16.mxu0 %v1255
  %1305 = vmatpush1.bf16.msra.mxu0 %v1254
  %1306 = vmatprep.subr.bf16.mxu0 %v1258
  %1307 = vmatpush1.bf16.msra.mxu0 %v1257
  %1308 = vmatprep.subr.bf16.mxu0 %v1261
  %1309 = vmatpush1.bf16.msra.mxu0 %v1260
  %1310 = vmatprep.subr.bf16.mxu0 %v1264
  %1311 = vmatpush1.bf16.msra.mxu0 %v1263
  %1312 = vmatprep.subr.bf16.mxu0 %v1267
  %1313 = vmatpush1.bf16.msra.mxu0 %v1266
  %1314 = vmatprep.subr.bf16.mxu0 %v1270
  %1315 = vmatpush1.bf16.msra.mxu0 %v1269
  %1316 = vmatprep.subr.bf16.mxu0 %v1273
  %1317 = vmatpush1.bf16.msra.mxu0 %v1272
  %1318 = vmatprep.subr.bf16.mxu0 %v1276
  %1319 = vmatpush1.bf16.msra.mxu0 %v1275
  %1320 = vmatprep.subr.bf16.mxu0 %v1279
  %1321 = vmatpush1.bf16.msra.mxu0 %v1278
  %1322 = vmatprep.subr.bf16.mxu0 %v1282
  %1323 = vmatpush1.bf16.msra.mxu0 %v1281
  %1324 = vmatprep.subr.bf16.mxu0 %v1285
  %1325 = vmatpush1.bf16.msra.mxu0 %v1284
  %1326 = vmatprep.subr.bf16.mxu0 %v1288
  %1327 = vmatpush1.bf16.msra.mxu0 %v1287
  %1328 = vmatprep.mubr.bf16.mxu0 %v617
  %1329 = vmatmul.mubr.bf16.gmra.mrb[0].mxu0 %v616
  %v1330 = vpop.f32.mrb[0].mxu0
  %v1331 = vadd.f32 %v579, %v1330
  %v1332 = vpop.f32.mrb[0].mxu0
  %v1333 = vadd.f32 %v579, %v1332
  %v1334 = vpop.f32.mrb[0].mxu0
  %v1335 = vadd.f32 %v584, %v1334
  %v1336 = vpop.f32.mrb[0].mxu0
  %v1337 = vadd.f32 %v584, %v1336
  %1338 = vmatprep.mubr.bf16.mxu0 %v620
  %1339 = vmatmul.mubr.bf16.gmra.mrb[0].mxu0 %v619
  %v1340 = vpop.f32.mrb[0].mxu0
  %v1341 = vadd.f32 %v589, %v1340
  %v1342 = vpop.f32.mrb[0].mxu0
  %v1343 = vadd.f32 %v589, %v1342
  %v1344 = vpop.f32.mrb[0].mxu0
  %v1345 = vadd.f32 %v594, %v1344
  %v1346 = vpop.f32.mrb[0].mxu0
  %v1347 = vadd.f32 %v594, %v1346
  %1348 = vdwg.mxu0
  %1349 = vmatprep.subr.bf16.mxu0 %v1291
  %1350 = vmatpush1.bf16.msra.mxu0 %v1290
  %1351 = vmatprep.subr.bf16.mxu0 %v1294
  %1352 = vmatpush1.bf16.msra.mxu0 %v1293
  %1353 = vmatprep.subr.bf16.mxu0 0
  %1354 = vmatpush1.bf16.msra.mxu0 0
  %1355 = vmatprep.subr.bf16.mxu0 0
  %1356 = vmatpush1.bf16.msra.mxu0 0
  %1357 = vmatprep.subr.bf16.mxu0 0
  %1358 = vmatpush1.bf16.msra.mxu0 0
  %1359 = vmatprep.subr.bf16.mxu0 0
  %1360 = vmatpush1.bf16.msra.mxu0 0
  %1361 = vmatprep.subr.bf16.mxu0 0
  %1362 = vmatpush1.bf16.msra.mxu0 0
  %1363 = vmatprep.subr.bf16.mxu0 0
  %1364 = vmatpush1.bf16.msra.mxu0 0
  %1365 = vmatprep.subr.bf16.mxu0 0
  %1366 = vmatpush1.bf16.msra.mxu0 0
  %1367 = vmatprep.subr.bf16.mxu0 0
  %1368 = vmatpush1.bf16.msra.mxu0 0
  %1369 = vmatprep.subr.bf16.mxu0 0
  %1370 = vmatpush1.bf16.msra.mxu0 0
  %1371 = vmatprep.subr.bf16.mxu0 0
  %1372 = vmatpush1.bf16.msra.mxu0 0
  %1373 = vmatprep.subr.bf16.mxu0 0
  %1374 = vmatpush1.bf16.msra.mxu0 0
  %1375 = vmatprep.subr.bf16.mxu0 0
  %1376 = vmatpush1.bf16.msra.mxu0 0
  %1377 = vmatprep.subr.bf16.mxu0 0
  %1378 = vmatpush1.bf16.msra.mxu0 0
  %1379 = vmatprep.subr.bf16.mxu0 0
  %1380 = vmatpush1.bf16.msra.mxu0 0
  %1381 = vmatprep.mubr.bf16.mxu0 0
  %1382 = vmatmul.mubr.bf16.gmra.mrb[0].mxu0 %v627
  %v1383 = vpop.f32.mrb[0].mxu0
  %v1384 = vadd.f32 %v1331, %v1383
  %v1385 = vpop.f32.mrb[0].mxu0
  %v1386 = vadd.f32 %v1333, %v1385
  %v1387 = vpop.f32.mrb[0].mxu0
  %v1388 = vadd.f32 %v1335, %v1387
  %v1389 = vpop.f32.mrb[0].mxu0
  %v1390 = vadd.f32 %v1337, %v1389
  %1391 = vmatprep.mubr.bf16.mxu0 0
  %1392 = vmatmul.mubr.bf16.gmra.mrb[0].mxu0 %v630
  %v1393 = vpop.f32.mrb[0].mxu0
  %v1394 = vadd.f32 %v1341, %v1393
  %v1395 = vpop.f32.mrb[0].mxu0
  %v1396 = vadd.f32 %v1343, %v1395
  %v1397 = vpop.f32.mrb[0].mxu0
  %v1398 = vadd.f32 %v1345, %v1397
  %v1399 = vpop.f32.mrb[0].mxu0
  %v1400 = vadd.f32 %v1347, %v1399
  %1401 = vdwg.mxu0
  %1402 = vmatprep.subr.bf16.mxu0 0
  %1403 = vmatpush1.bf16.msra.mxu0 %v1244
  %1404 = vmatprep.subr.bf16.mxu0 0
  %1405 = vmatpush1.bf16.msra.mxu0 %v1247
  %1406 = vmatprep.subr.bf16.mxu0 0
  %1407 = vmatpush1.bf16.msra.mxu0 %v1250
  %1408 = vmatprep.subr.bf16.mxu0 0
  %1409 = vmatpush1.bf16.msra.mxu0 %v1253
  %1410 = vmatprep.subr.bf16.mxu0 0
  %1411 = vmatpush1.bf16.msra.mxu0 %v1256
  %1412 = vmatprep.subr.bf16.mxu0 0
  %1413 = vmatpush1.bf16.msra.mxu0 %v1259
  %1414 = vmatprep.subr.bf16.mxu0 0
  %1415 = vmatpush1.bf16.msra.mxu0 %v1262
  %1416 = vmatprep.subr.bf16.mxu0 0
  %1417 = vmatpush1.bf16.msra.mxu0 %v1265
  %1418 = vmatprep.subr.bf16.mxu0 0
  %1419 = vmatpush1.bf16.msra.mxu0 %v1268
  %1420 = vmatprep.subr.bf16.mxu0 0
  %1421 = vmatpush1.bf16.msra.mxu0 %v1271
  %1422 = vmatprep.subr.bf16.mxu0 0
  %1423 = vmatpush1.bf16.msra.mxu0 %v1274
  %1424 = vmatprep.subr.bf16.mxu0 0
  %1425 = vmatpush1.bf16.msra.mxu0 %v1277
  %1426 = vmatprep.subr.bf16.mxu0 0
  %1427 = vmatpush1.bf16.msra.mxu0 %v1280
  %1428 = vmatprep.subr.bf16.mxu0 0
  %1429 = vmatpush1.bf16.msra.mxu0 %v1283
  %1430 = vmatprep.subr.bf16.mxu0 0
  %1431 = vmatpush1.bf16.msra.mxu0 %v1286
  %1432 = vmatprep.subr.bf16.mxu0 0
  %1433 = vmatpush1.bf16.msra.mxu0 %v1289
  %1434 = vmatprep.mubr.bf16.mxu0 %v617
  %1435 = vmatmul.mubr.bf16.gmra.mrb[0].mxu0 %v616
  %v1436 = vpop.f32.mrb[0].mxu0
  %v1437 = vadd.f32 %v579, %v1436
  %v1438 = vpop.f32.mrb[0].mxu0
  %v1439 = vpop.f32.mrb[0].mxu0
  %v1440 = vadd.f32 %v584, %v1439
  %v1441 = vpop.f32.mrb[0].mxu0
  %1442 = vmatprep.mubr.bf16.mxu0 %v620
  %1443 = vmatmul.mubr.bf16.gmra.mrb[0].mxu0 %v619
  %v1444 = vpop.f32.mrb[0].mxu0
  %v1445 = vadd.f32 %v589, %v1444
  %v1446 = vpop.f32.mrb[0].mxu0
  %v1447 = vpop.f32.mrb[0].mxu0
  %v1448 = vadd.f32 %v594, %v1447
  %v1449 = vpop.f32.mrb[0].mxu0
  %1450 = vdwg.mxu0
  %1451 = vmatprep.subr.bf16.mxu0 0
  %1452 = vmatpush1.bf16.msra.mxu0 %v1292
  %1453 = vmatprep.subr.bf16.mxu0 0
  %1454 = vmatpush1.bf16.msra.mxu0 %v1295
  %1455 = vmatprep.subr.bf16.mxu0 0
  %1456 = vmatpush1.bf16.msra.mxu0 0
  %1457 = vmatprep.subr.bf16.mxu0 0
  %1458 = vmatpush1.bf16.msra.mxu0 0
  %1459 = vmatprep.subr.bf16.mxu0 0
  %1460 = vmatpush1.bf16.msra.mxu0 0
  %1461 = vmatprep.subr.bf16.mxu0 0
  %1462 = vmatpush1.bf16.msra.mxu0 0
  %1463 = vmatprep.subr.bf16.mxu0 0
  %1464 = vmatpush1.bf16.msra.mxu0 0
  %1465 = vmatprep.subr.bf16.mxu0 0
  %1466 = vmatpush1.bf16.msra.mxu0 0
  %1467 = vmatprep.subr.bf16.mxu0 0
  %1468 = vmatpush1.bf16.msra.mxu0 0
  %1469 = vmatprep.subr.bf16.mxu0 0
  %1470 = vmatpush1.bf16.msra.mxu0 0
  %1471 = vmatprep.subr.bf16.mxu0 0
  %1472 = vmatpush1.bf16.msra.mxu0 0
  %1473 = vmatprep.subr.bf16.mxu0 0
  %1474 = vmatpush1.bf16.msra.mxu0 0
  %1475 = vmatprep.subr.bf16.mxu0 0
  %1476 = vmatpush1.bf16.msra.mxu0 0
  %1477 = vmatprep.subr.bf16.mxu0 0
  %1478 = vmatpush1.bf16.msra.mxu0 0
  %1479 = vmatprep.subr.bf16.mxu0 0
  %1480 = vmatpush1.bf16.msra.mxu0 0
  %1481 = vmatprep.subr.bf16.mxu0 0
  %1482 = vmatpush1.bf16.msra.mxu0 0
  %1483 = vmatprep.mubr.bf16.mxu0 0
  %1484 = vmatmul.mubr.bf16.gmra.mrb[0].mxu0 %v627
  %v1485 = vpop.f32.mrb[0].mxu0
  %v1486 = vadd.f32 %v1437, %v1485
  %v1487 = vpop.f32.mrb[0].mxu0
  %v1488 = vpop.f32.mrb[0].mxu0
  %v1489 = vadd.f32 %v1440, %v1488
  %v1490 = vpop.f32.mrb[0].mxu0
  %1491 = vmatprep.mubr.bf16.mxu0 0
  %1492 = vmatmul.mubr.bf16.gmra.mrb[0].mxu0 %v630
  %v1493 = vpop.f32.mrb[0].mxu0
  %v1494 = vadd.f32 %v1445, %v1493
  %v1495 = vpop.f32.mrb[0].mxu0
  %v1496 = vpop.f32.mrb[0].mxu0
  %v1497 = vadd.f32 %v1448, %v1496
  %v1498 = vpop.f32.mrb[0].mxu0
  %1499 = vdwg.mxu0
  %v1500 = vmax.f32 %v1384, 0.0
  %v1501 = vmax.f32 %v1386, 0.0
  %v1502 = vmax.f32 %v1486, 0.0
  %v1503 = vmax.f32 %v1388, 0.0
  %v1504 = vmax.f32 %v1390, 0.0
  %v1505 = vmax.f32 %v1489, 0.0
  %v1506 = vmax.f32 %v1394, 0.0
  %v1507 = vmax.f32 %v1396, 0.0
  %v1508 = vmax.f32 %v1494, 0.0
  %v1509 = vmax.f32 %v1398, 0.0
  %v1510 = vmax.f32 %v1400, 0.0
  %v1511 = vmax.f32 %v1497, 0.0
  %v1512 = vsel %vm851, %v1500, 0.0
  %v1513 = vsel %vm852, %v1501, 0.0
  %v1514 = vsel %vm853, %v1502, 0.0
  %v1515 = vsel %vm851, %v1503, 0.0
  %v1516 = vsel %vm852, %v1504, 0.0
  %v1517 = vsel %vm853, %v1505, 0.0
  %v1518 = vsel %vm851, %v1506, 0.0
  %v1519 = vsel %vm852, %v1507, 0.0
  %v1520 = vsel %vm853, %v1508, 0.0
  %v1521 = vsel %vm851, %v1509, 0.0
  %v1522 = vsel %vm852, %v1510, 0.0
  %v1523 = vsel %vm853, %v1511, 0.0
  %v1524 = vpack.c.bf16 %v1515, %v1512
  %v1525 = vpack.c.bf16 %v1516, %v1513
  %v1526 = vpack.c.bf16 %v1517, %v1514
  %v1527 = vpack.c.bf16 %v1521, %v1518
  %v1528 = vpack.c.bf16 %v1522, %v1519
  %v1529 = vpack.c.bf16 %v1523, %v1520
  %1536 = vrot.lane.b32.xlu0 %v1524, 19
  %v1537 = vpop.permute.xlu0 %1536
  %1538 = vrot.lane.b32.xlu0 %v1525, 19
  %v1539 = vpop.permute.xlu0 %1538
  %1540 = vrot.lane.b32.xlu0 %v1526, 19
  %v1541 = vpop.permute.xlu0 %1540
  %1542 = vrot.lane.b32.xlu0 %v1527, 19
  %v1543 = vpop.permute.xlu0 %1542
  %1544 = vrot.lane.b32.xlu0 %v1528, 19
  %v1545 = vpop.permute.xlu0 %1544
  %1546 = vrot.lane.b32.xlu0 %v1529, 19
  %v1547 = vpop.permute.xlu0 %1546
  %v1548 = vsel %vm890, %v1537, %v1539
  %v1549 = vsel %vm890, %v1539, %v1541
  %v1550 = vsel %vm890, %v1543, %v1545
  %v1551 = vsel %vm890, %v1545, %v1547
  %1558 = vst.msk [vmem:[%s909] sm:$0xff] %vm901, %v1537
  %1559 = vst [vmem:[%s909 + $0x8] sm:$0xff] %v1548
  %1560 = vst.msk [vmem:[%s909 + $0x10] sm:$0xff] %vm904, %v1549
  %1561 = vst.msk [vmem:[%s909 + $0x18] sm:$0xff] %vm901, %v1543
  %1562 = vst [vmem:[%s909 + $0x20] sm:$0xff] %v1550
  %1563 = vst.msk [vmem:[%s909 + $0x28] sm:$0xff] %vm904, %v1551
  %s1564 = scalar_lea.vmem %s1, 48
  %v1565 = vld [vmem:[%s1564] sm:$0xff]
  %v1566 = vld [vmem:[%s1564 + $0x8] sm:$0xf]
  %v1567 = vld [vmem:[%s1564 + $0xc] sm:$0xff]
  %v1568 = vld [vmem:[%s1564 + $0x14] sm:$0xf]
  %v1569 = vld [vmem:[%s1564 + $0x18] sm:$0xff]
  %v1570 = vld [vmem:[%s1564 + $0x20] sm:$0xf]
  %v1571 = vld [vmem:[%s1564 + $0x24] sm:$0xff]
  %v1572 = vld [vmem:[%s1564 + $0x2c] sm:$0xf]
  %s1573 = scalar_lea.vmem %s2, 32
  %v1574 = vld [vmem:[%s1573] sm:$0xff]
  %v1575 = vld [vmem:[%s1573 + $0x8] sm:$0xff]
  %v1576 = vld [vmem:[%s1573 + $0x10] sm:$0xff]
  %v1577 = vld [vmem:[%s1573 + $0x18] sm:$0xff]
  %v1578 = vld [vmem:[#allocation2] sm:$0xff]
  %v1579 = vld [vmem:[#allocation2 + $0x8] sm:$0xff]
  %v1580 = vld [vmem:[#allocation2 + $0x10] sm:$0xff]
  %v1581 = vld [vmem:[#allocation2 + $0x18] sm:$0xff]
  %v1582 = vld [vmem:[#allocation2 + $0x20] sm:$0xff]
  %v1583 = vld [vmem:[#allocation2 + $0x28] sm:$0xff]
  %1584 = vst [vmem:[#allocation3] sm:$0xff] %v1578
  %1585 = vst [vmem:[#allocation3 + $0x8] sm:$0xff] %v1579
  %1586 = vst.msk [vmem:[#allocation3 + $0x10] sm:$0xff] %vm189, %v1580
  %1587 = vst [vmem:[#allocation3 + $0x18] sm:$0xff] %v1581
  %1588 = vst [vmem:[#allocation3 + $0x20] sm:$0xff] %v1582
  %1589 = vst.msk [vmem:[#allocation3 + $0x28] sm:$0xff] %vm189, %v1583
  %v1590 = vld [vmem:[#allocation2] sm:$0xff]
  %v1591 = vld [vmem:[#allocation2 + $0x8] sm:$0xff]
  %v1592 = vld [vmem:[#allocation2 + $0x10] sm:$0xff]
  %v1593 = vld [vmem:[#allocation2 + $0x18] sm:$0xff]
  %v1594 = vld [vmem:[#allocation2 + $0x20] sm:$0xff]
  %v1595 = vld [vmem:[#allocation2 + $0x28] sm:$0xff]
  %1602 = vrot.lane.b32.xlu0 %v1590, 127
  %v1603 = vpop.permute.xlu0 %1602
  %1604 = vrot.lane.b32.xlu0 %v1591, 127
  %v1605 = vpop.permute.xlu0 %1604
  %1606 = vrot.lane.b32.xlu0 %v1592, 127
  %v1607 = vpop.permute.xlu0 %1606
  %1608 = vrot.lane.b32.xlu0 %v1593, 127
  %v1609 = vpop.permute.xlu0 %1608
  %1610 = vrot.lane.b32.xlu0 %v1594, 127
  %v1611 = vpop.permute.xlu0 %1610
  %1612 = vrot.lane.b32.xlu0 %v1595, 127
  %v1613 = vpop.permute.xlu0 %1612
  %v1614 = vsel %vm218, %v1603, %v1605
  %v1615 = vsel %vm218, %v1605, %v1607
  %v1616 = vsel %vm218, %v1609, %v1611
  %v1617 = vsel %vm218, %v1611, %v1613
  %1624 = vst [vmem:[#allocation3 + $0x30] sm:$0xff] %v1614
  %1625 = vst [vmem:[#allocation3 + $0x38] sm:$0xff] %v1615
  %1626 = vst.msk [vmem:[#allocation3 + $0x40] sm:$0xff] %vm189, %v1607
  %1627 = vst [vmem:[#allocation3 + $0x48] sm:$0xff] %v1616
  %1628 = vst [vmem:[#allocation3 + $0x50] sm:$0xff] %v1617
  %1629 = vst.msk [vmem:[#allocation3 + $0x58] sm:$0xff] %vm189, %v1613
  %v1630 = vld [vmem:[#allocation2] sm:$0xff]
  %v1631 = vld [vmem:[#allocation2 + $0x8] sm:$0xff]
  %v1632 = vld [vmem:[#allocation2 + $0x10] sm:$0xff]
  %v1633 = vld [vmem:[#allocation2 + $0x18] sm:$0xff]
  %v1634 = vld [vmem:[#allocation2 + $0x20] sm:$0xff]
  %v1635 = vld [vmem:[#allocation2 + $0x28] sm:$0xff]
  %1642 = vrot.lane.b32.xlu0 %v1630, 126
  %v1643 = vpop.permute.xlu0 %1642
  %1644 = vrot.lane.b32.xlu0 %v1631, 126
  %v1645 = vpop.permute.xlu0 %1644
  %1646 = vrot.lane.b32.xlu0 %v1632, 126
  %v1647 = vpop.permute.xlu0 %1646
  %1648 = vrot.lane.b32.xlu0 %v1633, 126
  %v1649 = vpop.permute.xlu0 %1648
  %1650 = vrot.lane.b32.xlu0 %v1634, 126
  %v1651 = vpop.permute.xlu0 %1650
  %1652 = vrot.lane.b32.xlu0 %v1635, 126
  %v1653 = vpop.permute.xlu0 %1652
  %v1654 = vsel %vm259, %v1643, %v1645
  %v1655 = vsel %vm259, %v1645, %v1647
  %v1656 = vsel %vm259, %v1649, %v1651
  %v1657 = vsel %vm259, %v1651, %v1653
  %1664 = vst [vmem:[#allocation3 + $0x60] sm:$0xff] %v1654
  %1665 = vst [vmem:[#allocation3 + $0x68] sm:$0xff] %v1655
  %1666 = vst.msk [vmem:[#allocation3 + $0x70] sm:$0xff] %vm189, %v1647
  %1667 = vst [vmem:[#allocation3 + $0x78] sm:$0xff] %v1656
  %1668 = vst [vmem:[#allocation3 + $0x80] sm:$0xff] %v1657
  %1669 = vst.msk [vmem:[#allocation3 + $0x88] sm:$0xff] %vm189, %v1653
  %v1670 = vld [vmem:[#allocation2] sm:$0xff]
  %v1671 = vld [vmem:[#allocation2 + $0x8] sm:$0xff]
  %v1672 = vld [vmem:[#allocation2 + $0x10] sm:$0xff]
  %v1673 = vld [vmem:[#allocation2 + $0x18] sm:$0xff]
  %v1674 = vld [vmem:[#allocation2 + $0x20] sm:$0xff]
  %v1675 = vld [vmem:[#allocation2 + $0x28] sm:$0xff]
  %1682 = vrot.lane.b32.xlu0 %v1670, 110
  %v1683 = vpop.permute.xlu0 %1682
  %1684 = vrot.lane.b32.xlu0 %v1671, 110
  %v1685 = vpop.permute.xlu0 %1684
  %1686 = vrot.lane.b32.xlu0 %v1672, 110
  %v1687 = vpop.permute.xlu0 %1686
  %1688 = vrot.lane.b32.xlu0 %v1673, 110
  %v1689 = vpop.permute.xlu0 %1688
  %1690 = vrot.lane.b32.xlu0 %v1674, 110
  %v1691 = vpop.permute.xlu0 %1690
  %1692 = vrot.lane.b32.xlu0 %v1675, 110
  %v1693 = vpop.permute.xlu0 %1692
  %v1694 = vsel %vm300, %v1683, %v1685
  %v1695 = vsel %vm300, %v1685, %v1687
  %v1696 = vsel %vm300, %v1689, %v1691
  %v1697 = vsel %vm300, %v1691, %v1693
  %1704 = vst [vmem:[#allocation3 + $0x90] sm:$0xff] %v1694
  %1705 = vst [vmem:[#allocation3 + $0x98] sm:$0xff] %v1695
  %1706 = vst.msk [vmem:[#allocation3 + $0xa0] sm:$0xff] %vm189, %v1687
  %1707 = vst [vmem:[#allocation3 + $0xa8] sm:$0xff] %v1696
  %1708 = vst [vmem:[#allocation3 + $0xb0] sm:$0xff] %v1697
  %1709 = vst.msk [vmem:[#allocation3 + $0xb8] sm:$0xff] %vm189, %v1693
  %v1710 = vld [vmem:[#allocation2] sm:$0xff]
  %v1711 = vld [vmem:[#allocation2 + $0x8] sm:$0xff]
  %v1712 = vld [vmem:[#allocation2 + $0x10] sm:$0xff]
  %v1713 = vld [vmem:[#allocation2 + $0x18] sm:$0xff]
  %v1714 = vld [vmem:[#allocation2 + $0x20] sm:$0xff]
  %v1715 = vld [vmem:[#allocation2 + $0x28] sm:$0xff]
  %1722 = vrot.lane.b32.xlu0 %v1710, 109
  %v1723 = vpop.permute.xlu0 %1722
  %1724 = vrot.lane.b32.xlu0 %v1711, 109
  %v1725 = vpop.permute.xlu0 %1724
  %1726 = vrot.lane.b32.xlu0 %v1712, 109
  %v1727 = vpop.permute.xlu0 %1726
  %1728 = vrot.lane.b32.xlu0 %v1713, 109
  %v1729 = vpop.permute.xlu0 %1728
  %1730 = vrot.lane.b32.xlu0 %v1714, 109
  %v1731 = vpop.permute.xlu0 %1730
  %1732 = vrot.lane.b32.xlu0 %v1715, 109
  %v1733 = vpop.permute.xlu0 %1732
  %v1734 = vsel %vm341, %v1723, %v1725
  %v1735 = vsel %vm341, %v1725, %v1727
  %v1736 = vsel %vm341, %v1729, %v1731
  %v1737 = vsel %vm341, %v1731, %v1733
  %1744 = vst [vmem:[#allocation3 + $0xc0] sm:$0xff] %v1734
  %1745 = vst [vmem:[#allocation3 + $0xc8] sm:$0xff] %v1735
  %1746 = vst.msk [vmem:[#allocation3 + $0xd0] sm:$0xff] %vm189, %v1727
  %1747 = vst [vmem:[#allocation3 + $0xd8] sm:$0xff] %v1736
  %1748 = vst [vmem:[#allocation3 + $0xe0] sm:$0xff] %v1737
  %1749 = vst.msk [vmem:[#allocation3 + $0xe8] sm:$0xff] %vm189, %v1733
  %v1750 = vld [vmem:[#allocation2] sm:$0xff]
  %v1751 = vld [vmem:[#allocation2 + $0x8] sm:$0xff]
  %v1752 = vld [vmem:[#allocation2 + $0x10] sm:$0xff]
  %v1753 = vld [vmem:[#allocation2 + $0x18] sm:$0xff]
  %v1754 = vld [vmem:[#allocation2 + $0x20] sm:$0xff]
  %v1755 = vld [vmem:[#allocation2 + $0x28] sm:$0xff]
  %1762 = vrot.lane.b32.xlu0 %v1750, 108
  %v1763 = vpop.permute.xlu0 %1762
  %1764 = vrot.lane.b32.xlu0 %v1751, 108
  %v1765 = vpop.permute.xlu0 %1764
  %1766 = vrot.lane.b32.xlu0 %v1752, 108
  %v1767 = vpop.permute.xlu0 %1766
  %1768 = vrot.lane.b32.xlu0 %v1753, 108
  %v1769 = vpop.permute.xlu0 %1768
  %1770 = vrot.lane.b32.xlu0 %v1754, 108
  %v1771 = vpop.permute.xlu0 %1770
  %1772 = vrot.lane.b32.xlu0 %v1755, 108
  %v1773 = vpop.permute.xlu0 %1772
  %v1774 = vsel %vm382, %v1763, %v1765
  %v1775 = vsel %vm382, %v1765, %v1767
  %v1776 = vsel %vm382, %v1769, %v1771
  %v1777 = vsel %vm382, %v1771, %v1773
  %1784 = vst [vmem:[#allocation3 + $0xf0] sm:$0xff] %v1774
  %1785 = vst [vmem:[#allocation3 + $0xf8] sm:$0xff] %v1775
  %1786 = vst.msk [vmem:[#allocation3 + $0x100] sm:$0xff] %vm189, %v1767
  %1787 = vst [vmem:[#allocation3 + $0x108] sm:$0xff] %v1776
  %1788 = vst [vmem:[#allocation3 + $0x110] sm:$0xff] %v1777
  %1789 = vst.msk [vmem:[#allocation3 + $0x118] sm:$0xff] %vm189, %v1773
  %v1790 = vld [vmem:[#allocation2] sm:$0xff]
  %v1791 = vld [vmem:[#allocation2 + $0x8] sm:$0xff]
  %v1792 = vld [vmem:[#allocation2 + $0x10] sm:$0xff]
  %v1793 = vld [vmem:[#allocation2 + $0x18] sm:$0xff]
  %v1794 = vld [vmem:[#allocation2 + $0x20] sm:$0xff]
  %v1795 = vld [vmem:[#allocation2 + $0x28] sm:$0xff]
  %1802 = vrot.lane.b32.xlu0 %v1790, 92
  %v1803 = vpop.permute.xlu0 %1802
  %1804 = vrot.lane.b32.xlu0 %v1791, 92
  %v1805 = vpop.permute.xlu0 %1804
  %1806 = vrot.lane.b32.xlu0 %v1792, 92
  %v1807 = vpop.permute.xlu0 %1806
  %1808 = vrot.lane.b32.xlu0 %v1793, 92
  %v1809 = vpop.permute.xlu0 %1808
  %1810 = vrot.lane.b32.xlu0 %v1794, 92
  %v1811 = vpop.permute.xlu0 %1810
  %1812 = vrot.lane.b32.xlu0 %v1795, 92
  %v1813 = vpop.permute.xlu0 %1812
  %v1814 = vsel %vm423, %v1803, %v1805
  %v1815 = vsel %vm423, %v1805, %v1807
  %v1816 = vsel %vm423, %v1809, %v1811
  %v1817 = vsel %vm423, %v1811, %v1813
  %1824 = vst [vmem:[#allocation3 + $0x120] sm:$0xff] %v1814
  %1825 = vst [vmem:[#allocation3 + $0x128] sm:$0xff] %v1815
  %1826 = vst.msk [vmem:[#allocation3 + $0x130] sm:$0xff] %vm189, %v1807
  %1827 = vst [vmem:[#allocation3 + $0x138] sm:$0xff] %v1816
  %1828 = vst [vmem:[#allocation3 + $0x140] sm:$0xff] %v1817
  %1829 = vst.msk [vmem:[#allocation3 + $0x148] sm:$0xff] %vm189, %v1813
  %v1830 = vld [vmem:[#allocation2] sm:$0xff]
  %v1831 = vld [vmem:[#allocation2 + $0x8] sm:$0xff]
  %v1832 = vld [vmem:[#allocation2 + $0x10] sm:$0xff]
  %v1833 = vld [vmem:[#allocation2 + $0x18] sm:$0xff]
  %v1834 = vld [vmem:[#allocation2 + $0x20] sm:$0xff]
  %v1835 = vld [vmem:[#allocation2 + $0x28] sm:$0xff]
  %1842 = vrot.lane.b32.xlu0 %v1830, 91
  %v1843 = vpop.permute.xlu0 %1842
  %1844 = vrot.lane.b32.xlu0 %v1831, 91
  %v1845 = vpop.permute.xlu0 %1844
  %1846 = vrot.lane.b32.xlu0 %v1832, 91
  %v1847 = vpop.permute.xlu0 %1846
  %1848 = vrot.lane.b32.xlu0 %v1833, 91
  %v1849 = vpop.permute.xlu0 %1848
  %1850 = vrot.lane.b32.xlu0 %v1834, 91
  %v1851 = vpop.permute.xlu0 %1850
  %1852 = vrot.lane.b32.xlu0 %v1835, 91
  %v1853 = vpop.permute.xlu0 %1852
  %v1854 = vsel %vm464, %v1843, %v1845
  %v1855 = vsel %vm464, %v1845, %v1847
  %v1856 = vsel %vm464, %v1849, %v1851
  %v1857 = vsel %vm464, %v1851, %v1853
  %1864 = vst [vmem:[#allocation3 + $0x150] sm:$0xff] %v1854
  %1865 = vst [vmem:[#allocation3 + $0x158] sm:$0xff] %v1855
  %1866 = vst.msk [vmem:[#allocation3 + $0x160] sm:$0xff] %vm189, %v1847
  %1867 = vst [vmem:[#allocation3 + $0x168] sm:$0xff] %v1856
  %1868 = vst [vmem:[#allocation3 + $0x170] sm:$0xff] %v1857
  %1869 = vst.msk [vmem:[#allocation3 + $0x178] sm:$0xff] %vm189, %v1853
  %v1870 = vld [vmem:[#allocation2] sm:$0xff]
  %v1871 = vld [vmem:[#allocation2 + $0x8] sm:$0xff]
  %v1872 = vld [vmem:[#allocation2 + $0x10] sm:$0xff]
  %v1873 = vld [vmem:[#allocation2 + $0x18] sm:$0xff]
  %v1874 = vld [vmem:[#allocation2 + $0x20] sm:$0xff]
  %v1875 = vld [vmem:[#allocation2 + $0x28] sm:$0xff]
  %1882 = vrot.lane.b32.xlu0 %v1870, 90
  %v1883 = vpop.permute.xlu0 %1882
  %1884 = vrot.lane.b32.xlu0 %v1871, 90
  %v1885 = vpop.permute.xlu0 %1884
  %1886 = vrot.lane.b32.xlu0 %v1872, 90
  %v1887 = vpop.permute.xlu0 %1886
  %1888 = vrot.lane.b32.xlu0 %v1873, 90
  %v1889 = vpop.permute.xlu0 %1888
  %1890 = vrot.lane.b32.xlu0 %v1874, 90
  %v1891 = vpop.permute.xlu0 %1890
  %1892 = vrot.lane.b32.xlu0 %v1875, 90
  %v1893 = vpop.permute.xlu0 %1892
  %v1894 = vsel %vm505, %v1883, %v1885
  %v1895 = vsel %vm505, %v1885, %v1887
  %v1896 = vsel %vm505, %v1889, %v1891
  %v1897 = vsel %vm505, %v1891, %v1893
  %1904 = vst [vmem:[#allocation3 + $0x180] sm:$0xff] %v1894
  %1905 = vst [vmem:[#allocation3 + $0x188] sm:$0xff] %v1895
  %1906 = vst.msk [vmem:[#allocation3 + $0x190] sm:$0xff] %vm189, %v1887
  %1907 = vst [vmem:[#allocation3 + $0x198] sm:$0xff] %v1896
  %1908 = vst [vmem:[#allocation3 + $0x1a0] sm:$0xff] %v1897
  %1909 = vst.msk [vmem:[#allocation3 + $0x1a8] sm:$0xff] %vm189, %v1893
  %v1910 = vld [vmem:[#allocation3] sm:$0xff]
  %v1911 = vld [vmem:[#allocation3 + $0x8] sm:$0xff]
  %v1912 = vld [vmem:[#allocation3 + $0x10] sm:$0xff]
  %v1913 = vld [vmem:[#allocation3 + $0x18] sm:$0xff]
  %v1914 = vld [vmem:[#allocation3 + $0x20] sm:$0xff]
  %v1915 = vld [vmem:[#allocation3 + $0x28] sm:$0xff]
  %v1916 = vld [vmem:[#allocation3 + $0x30] sm:$0xff]
  %v1917 = vld [vmem:[#allocation3 + $0x38] sm:$0xff]
  %v1918 = vld [vmem:[#allocation3 + $0x40] sm:$0xff]
  %v1919 = vld [vmem:[#allocation3 + $0x48] sm:$0xff]
  %v1920 = vld [vmem:[#allocation3 + $0x50] sm:$0xff]
  %v1921 = vld [vmem:[#allocation3 + $0x58] sm:$0xff]
  %v1922 = vld [vmem:[#allocation3 + $0x60] sm:$0xff]
  %v1923 = vld [vmem:[#allocation3 + $0x68] sm:$0xff]
  %v1924 = vld [vmem:[#allocation3 + $0x70] sm:$0xff]
  %v1925 = vld [vmem:[#allocation3 + $0x78] sm:$0xff]
  %v1926 = vld [vmem:[#allocation3 + $0x80] sm:$0xff]
  %v1927 = vld [vmem:[#allocation3 + $0x88] sm:$0xff]
  %v1928 = vld [vmem:[#allocation3 + $0x90] sm:$0xff]
  %v1929 = vld [vmem:[#allocation3 + $0x98] sm:$0xff]
  %v1930 = vld [vmem:[#allocation3 + $0xa0] sm:$0xff]
  %v1931 = vld [vmem:[#allocation3 + $0xa8] sm:$0xff]
  %v1932 = vld [vmem:[#allocation3 + $0xb0] sm:$0xff]
  %v1933 = vld [vmem:[#allocation3 + $0xb8] sm:$0xff]
  %v1934 = vld [vmem:[#allocation3 + $0xc0] sm:$0xff]
  %v1935 = vld [vmem:[#allocation3 + $0xc8] sm:$0xff]
  %v1936 = vld [vmem:[#allocation3 + $0xd0] sm:$0xff]
  %v1937 = vld [vmem:[#allocation3 + $0xd8] sm:$0xff]
  %v1938 = vld [vmem:[#allocation3 + $0xe0] sm:$0xff]
  %v1939 = vld [vmem:[#allocation3 + $0xe8] sm:$0xff]
  %v1940 = vld [vmem:[#allocation3 + $0xf0] sm:$0xff]
  %v1941 = vld [vmem:[#allocation3 + $0xf8] sm:$0xff]
  %v1942 = vld [vmem:[#allocation3 + $0x100] sm:$0xff]
  %v1943 = vld [vmem:[#allocation3 + $0x108] sm:$0xff]
  %v1944 = vld [vmem:[#allocation3 + $0x110] sm:$0xff]
  %v1945 = vld [vmem:[#allocation3 + $0x118] sm:$0xff]
  %v1946 = vld [vmem:[#allocation3 + $0x120] sm:$0xff]
  %v1947 = vld [vmem:[#allocation3 + $0x128] sm:$0xff]
  %v1948 = vld [vmem:[#allocation3 + $0x130] sm:$0xff]
  %v1949 = vld [vmem:[#allocation3 + $0x138] sm:$0xff]
  %v1950 = vld [vmem:[#allocation3 + $0x140] sm:$0xff]
  %v1951 = vld [vmem:[#allocation3 + $0x148] sm:$0xff]
  %v1952 = vld [vmem:[#allocation3 + $0x150] sm:$0xff]
  %v1953 = vld [vmem:[#allocation3 + $0x158] sm:$0xff]
  %v1954 = vld [vmem:[#allocation3 + $0x160] sm:$0xff]
  %v1955 = vld [vmem:[#allocation3 + $0x168] sm:$0xff]
  %v1956 = vld [vmem:[#allocation3 + $0x170] sm:$0xff]
  %v1957 = vld [vmem:[#allocation3 + $0x178] sm:$0xff]
  %v1958 = vld [vmem:[#allocation3 + $0x180] sm:$0xff]
  %v1959 = vld [vmem:[#allocation3 + $0x188] sm:$0xff]
  %v1960 = vld [vmem:[#allocation3 + $0x190] sm:$0xff]
  %v1961 = vld [vmem:[#allocation3 + $0x198] sm:$0xff]
  %v1962 = vld [vmem:[#allocation3 + $0x1a0] sm:$0xff]
  %v1963 = vld [vmem:[#allocation3 + $0x1a8] sm:$0xff]
  %1965 = vset.pattern.permute.xlu0 0
  %1966 = vperm.xlu0 %1965, %v1574
  %v1967 = vpop.permute.xlu0 %1966
  %1970 = vset.pattern.permute.xlu0 0
  %1971 = vperm.xlu0 %1970, %v1575
  %v1972 = vpop.permute.xlu0 %1971
  %1975 = vset.pattern.permute.xlu0 0
  %1976 = vperm.xlu0 %1975, %v1576
  %v1977 = vpop.permute.xlu0 %1976
  %1980 = vset.pattern.permute.xlu0 0
  %1981 = vperm.xlu0 %1980, %v1577
  %v1982 = vpop.permute.xlu0 %1981
  %v1992 = vunpack.c.l.b16 %v1565
  %v1993 = vunpack.c.h.b16 %v1565
  %v1994 = vunpack.c.l.b16 %v1566
  %v1995 = vunpack.c.l.b16 %v1567
  %v1996 = vunpack.c.h.b16 %v1567
  %v1997 = vunpack.c.l.b16 %v1568
  %v1998 = vunpack.c.l.b16 %v1569
  %v1999 = vunpack.c.h.b16 %v1569
  %v2000 = vunpack.c.l.b16 %v1570
  %v2001 = vunpack.c.l.b16 %v1571
  %v2002 = vunpack.c.h.b16 %v1571
  %v2003 = vunpack.c.l.b16 %v1572
  %v2004 = vpack.c.b16 %v1995, %v1992
  %v2005 = vpack.c.b16 %v1996, %v1993
  %v2006 = vpack.c.b16 %v1997, %v1994
  %v2007 = vpack.c.b16 %v2001, %v1998
  %v2008 = vpack.c.b16 %v2002, %v1999
  %v2009 = vpack.c.b16 %v2003, %v2000
  %v2015 = vsel %vm189, %v2006, 0
  %v2018 = vsel %vm189, %v2009, 0
  %2020 = vmatprep.subr.bf16.mxu0 %v1911
  %2021 = vmatpush1.bf16.msra.mxu0 %v1910
  %2022 = vmatprep.subr.bf16.mxu0 %v1914
  %2023 = vmatpush1.bf16.msra.mxu0 %v1913
  %2024 = vmatprep.subr.bf16.mxu0 %v1917
  %2025 = vmatpush1.bf16.msra.mxu0 %v1916
  %2026 = vmatprep.subr.bf16.mxu0 %v1920
  %2027 = vmatpush1.bf16.msra.mxu0 %v1919
  %2028 = vmatprep.subr.bf16.mxu0 %v1923
  %2029 = vmatpush1.bf16.msra.mxu0 %v1922
  %2030 = vmatprep.subr.bf16.mxu0 %v1926
  %2031 = vmatpush1.bf16.msra.mxu0 %v1925
  %2032 = vmatprep.subr.bf16.mxu0 %v1929
  %2033 = vmatpush1.bf16.msra.mxu0 %v1928
  %2034 = vmatprep.subr.bf16.mxu0 %v1932
  %2035 = vmatpush1.bf16.msra.mxu0 %v1931
  %2036 = vmatprep.subr.bf16.mxu0 %v1935
  %2037 = vmatpush1.bf16.msra.mxu0 %v1934
  %2038 = vmatprep.subr.bf16.mxu0 %v1938
  %2039 = vmatpush1.bf16.msra.mxu0 %v1937
  %2040 = vmatprep.subr.bf16.mxu0 %v1941
  %2041 = vmatpush1.bf16.msra.mxu0 %v1940
  %2042 = vmatprep.subr.bf16.mxu0 %v1944
  %2043 = vmatpush1.bf16.msra.mxu0 %v1943
  %2044 = vmatprep.subr.bf16.mxu0 %v1947
  %2045 = vmatpush1.bf16.msra.mxu0 %v1946
  %2046 = vmatprep.subr.bf16.mxu0 %v1950
  %2047 = vmatpush1.bf16.msra.mxu0 %v1949
  %2048 = vmatprep.subr.bf16.mxu0 %v1953
  %2049 = vmatpush1.bf16.msra.mxu0 %v1952
  %2050 = vmatprep.subr.bf16.mxu0 %v1956
  %2051 = vmatpush1.bf16.msra.mxu0 %v1955
  %2052 = vmatprep.mubr.bf16.mxu0 %v2005
  %2053 = vmatmul.mubr.bf16.gmra.mrb[0].mxu0 %v2004
  %v2054 = vpop.f32.mrb[0].mxu0
  %v2055 = vadd.f32 %v1967, %v2054
  %v2056 = vpop.f32.mrb[0].mxu0
  %v2057 = vadd.f32 %v1967, %v2056
  %v2058 = vpop.f32.mrb[0].mxu0
  %v2059 = vadd.f32 %v1972, %v2058
  %v2060 = vpop.f32.mrb[0].mxu0
  %v2061 = vadd.f32 %v1972, %v2060
  %2062 = vmatprep.mubr.bf16.mxu0 %v2008
  %2063 = vmatmul.mubr.bf16.gmra.mrb[0].mxu0 %v2007
  %v2064 = vpop.f32.mrb[0].mxu0
  %v2065 = vadd.f32 %v1977, %v2064
  %v2066 = vpop.f32.mrb[0].mxu0
  %v2067 = vadd.f32 %v1977, %v2066
  %v2068 = vpop.f32.mrb[0].mxu0
  %v2069 = vadd.f32 %v1982, %v2068
  %v2070 = vpop.f32.mrb[0].mxu0
  %v2071 = vadd.f32 %v1982, %v2070
  %2072 = vdwg.mxu0
  %2073 = vmatprep.subr.bf16.mxu0 %v1959
  %2074 = vmatpush1.bf16.msra.mxu0 %v1958
  %2075 = vmatprep.subr.bf16.mxu0 %v1962
  %2076 = vmatpush1.bf16.msra.mxu0 %v1961
  %2077 = vmatprep.subr.bf16.mxu0 0
  %2078 = vmatpush1.bf16.msra.mxu0 0
  %2079 = vmatprep.subr.bf16.mxu0 0
  %2080 = vmatpush1.bf16.msra.mxu0 0
  %2081 = vmatprep.subr.bf16.mxu0 0
  %2082 = vmatpush1.bf16.msra.mxu0 0
  %2083 = vmatprep.subr.bf16.mxu0 0
  %2084 = vmatpush1.bf16.msra.mxu0 0
  %2085 = vmatprep.subr.bf16.mxu0 0
  %2086 = vmatpush1.bf16.msra.mxu0 0
  %2087 = vmatprep.subr.bf16.mxu0 0
  %2088 = vmatpush1.bf16.msra.mxu0 0
  %2089 = vmatprep.subr.bf16.mxu0 0
  %2090 = vmatpush1.bf16.msra.mxu0 0
  %2091 = vmatprep.subr.bf16.mxu0 0
  %2092 = vmatpush1.bf16.msra.mxu0 0
  %2093 = vmatprep.subr.bf16.mxu0 0
  %2094 = vmatpush1.bf16.msra.mxu0 0
  %2095 = vmatprep.subr.bf16.mxu0 0
  %2096 = vmatpush1.bf16.msra.mxu0 0
  %2097 = vmatprep.subr.bf16.mxu0 0
  %2098 = vmatpush1.bf16.msra.mxu0 0
  %2099 = vmatprep.subr.bf16.mxu0 0
  %2100 = vmatpush1.bf16.msra.mxu0 0
  %2101 = vmatprep.subr.bf16.mxu0 0
  %2102 = vmatpush1.bf16.msra.mxu0 0
  %2103 = vmatprep.subr.bf16.mxu0 0
  %2104 = vmatpush1.bf16.msra.mxu0 0
  %2105 = vmatprep.mubr.bf16.mxu0 0
  %2106 = vmatmul.mubr.bf16.gmra.mrb[0].mxu0 %v2015
  %v2107 = vpop.f32.mrb[0].mxu0
  %v2108 = vadd.f32 %v2055, %v2107
  %v2109 = vpop.f32.mrb[0].mxu0
  %v2110 = vadd.f32 %v2057, %v2109
  %v2111 = vpop.f32.mrb[0].mxu0
  %v2112 = vadd.f32 %v2059, %v2111
  %v2113 = vpop.f32.mrb[0].mxu0
  %v2114 = vadd.f32 %v2061, %v2113
  %2115 = vmatprep.mubr.bf16.mxu0 0
  %2116 = vmatmul.mubr.bf16.gmra.mrb[0].mxu0 %v2018
  %v2117 = vpop.f32.mrb[0].mxu0
  %v2118 = vadd.f32 %v2065, %v2117
  %v2119 = vpop.f32.mrb[0].mxu0
  %v2120 = vadd.f32 %v2067, %v2119
  %v2121 = vpop.f32.mrb[0].mxu0
  %v2122 = vadd.f32 %v2069, %v2121
  %v2123 = vpop.f32.mrb[0].mxu0
  %v2124 = vadd.f32 %v2071, %v2123
  %2125 = vdwg.mxu0
  %2126 = vmatprep.subr.bf16.mxu0 0
  %2127 = vmatpush1.bf16.msra.mxu0 %v1912
  %2128 = vmatprep.subr.bf16.mxu0 0
  %2129 = vmatpush1.bf16.msra.mxu0 %v1915
  %2130 = vmatprep.subr.bf16.mxu0 0
  %2131 = vmatpush1.bf16.msra.mxu0 %v1918
  %2132 = vmatprep.subr.bf16.mxu0 0
  %2133 = vmatpush1.bf16.msra.mxu0 %v1921
  %2134 = vmatprep.subr.bf16.mxu0 0
  %2135 = vmatpush1.bf16.msra.mxu0 %v1924
  %2136 = vmatprep.subr.bf16.mxu0 0
  %2137 = vmatpush1.bf16.msra.mxu0 %v1927
  %2138 = vmatprep.subr.bf16.mxu0 0
  %2139 = vmatpush1.bf16.msra.mxu0 %v1930
  %2140 = vmatprep.subr.bf16.mxu0 0
  %2141 = vmatpush1.bf16.msra.mxu0 %v1933
  %2142 = vmatprep.subr.bf16.mxu0 0
  %2143 = vmatpush1.bf16.msra.mxu0 %v1936
  %2144 = vmatprep.subr.bf16.mxu0 0
  %2145 = vmatpush1.bf16.msra.mxu0 %v1939
  %2146 = vmatprep.subr.bf16.mxu0 0
  %2147 = vmatpush1.bf16.msra.mxu0 %v1942
  %2148 = vmatprep.subr.bf16.mxu0 0
  %2149 = vmatpush1.bf16.msra.mxu0 %v1945
  %2150 = vmatprep.subr.bf16.mxu0 0
  %2151 = vmatpush1.bf16.msra.mxu0 %v1948
  %2152 = vmatprep.subr.bf16.mxu0 0
  %2153 = vmatpush1.bf16.msra.mxu0 %v1951
  %2154 = vmatprep.subr.bf16.mxu0 0
  %2155 = vmatpush1.bf16.msra.mxu0 %v1954
  %2156 = vmatprep.subr.bf16.mxu0 0
  %2157 = vmatpush1.bf16.msra.mxu0 %v1957
  %2158 = vmatprep.mubr.bf16.mxu0 %v2005
  %2159 = vmatmul.mubr.bf16.gmra.mrb[0].mxu0 %v2004
  %v2160 = vpop.f32.mrb[0].mxu0
  %v2161 = vadd.f32 %v1967, %v2160
  %v2162 = vpop.f32.mrb[0].mxu0
  %v2163 = vpop.f32.mrb[0].mxu0
  %v2164 = vadd.f32 %v1972, %v2163
  %v2165 = vpop.f32.mrb[0].mxu0
  %2166 = vmatprep.mubr.bf16.mxu0 %v2008
  %2167 = vmatmul.mubr.bf16.gmra.mrb[0].mxu0 %v2007
  %v2168 = vpop.f32.mrb[0].mxu0
  %v2169 = vadd.f32 %v1977, %v2168
  %v2170 = vpop.f32.mrb[0].mxu0
  %v2171 = vpop.f32.mrb[0].mxu0
  %v2172 = vadd.f32 %v1982, %v2171
  %v2173 = vpop.f32.mrb[0].mxu0
  %2174 = vdwg.mxu0
  %2175 = vmatprep.subr.bf16.mxu0 0
  %2176 = vmatpush1.bf16.msra.mxu0 %v1960
  %2177 = vmatprep.subr.bf16.mxu0 0
  %2178 = vmatpush1.bf16.msra.mxu0 %v1963
  %2179 = vmatprep.subr.bf16.mxu0 0
  %2180 = vmatpush1.bf16.msra.mxu0 0
  %2181 = vmatprep.subr.bf16.mxu0 0
  %2182 = vmatpush1.bf16.msra.mxu0 0
  %2183 = vmatprep.subr.bf16.mxu0 0
  %2184 = vmatpush1.bf16.msra.mxu0 0
  %2185 = vmatprep.subr.bf16.mxu0 0
  %2186 = vmatpush1.bf16.msra.mxu0 0
  %2187 = vmatprep.subr.bf16.mxu0 0
  %2188 = vmatpush1.bf16.msra.mxu0 0
  %2189 = vmatprep.subr.bf16.mxu0 0
  %2190 = vmatpush1.bf16.msra.mxu0 0
  %2191 = vmatprep.subr.bf16.mxu0 0
  %2192 = vmatpush1.bf16.msra.mxu0 0
  %2193 = vmatprep.subr.bf16.mxu0 0
  %2194 = vmatpush1.bf16.msra.mxu0 0
  %2195 = vmatprep.subr.bf16.mxu0 0
  %2196 = vmatpush1.bf16.msra.mxu0 0
  %2197 = vmatprep.subr.bf16.mxu0 0
  %2198 = vmatpush1.bf16.msra.mxu0 0
  %2199 = vmatprep.subr.bf16.mxu0 0
  %2200 = vmatpush1.bf16.msra.mxu0 0
  %2201 = vmatprep.subr.bf16.mxu0 0
  %2202 = vmatpush1.bf16.msra.mxu0 0
  %2203 = vmatprep.subr.bf16.mxu0 0
  %2204 = vmatpush1.bf16.msra.mxu0 0
  %2205 = vmatprep.subr.bf16.mxu0 0
  %2206 = vmatpush1.bf16.msra.mxu0 0
  %2207 = vmatprep.mubr.bf16.mxu0 0
  %2208 = vmatmul.mubr.bf16.gmra.mrb[0].mxu0 %v2015
  %v2209 = vpop.f32.mrb[0].mxu0
  %v2210 = vadd.f32 %v2161, %v2209
  %v2211 = vpop.f32.mrb[0].mxu0
  %v2212 = vpop.f32.mrb[0].mxu0
  %v2213 = vadd.f32 %v2164, %v2212
  %v2214 = vpop.f32.mrb[0].mxu0
  %2215 = vmatprep.mubr.bf16.mxu0 0
  %2216 = vmatmul.mubr.bf16.gmra.mrb[0].mxu0 %v2018
  %v2217 = vpop.f32.mrb[0].mxu0
  %v2218 = vadd.f32 %v2169, %v2217
  %v2219 = vpop.f32.mrb[0].mxu0
  %v2220 = vpop.f32.mrb[0].mxu0
  %v2221 = vadd.f32 %v2172, %v2220
  %v2222 = vpop.f32.mrb[0].mxu0
  %2223 = vdwg.mxu0
  %v2224 = vmax.f32 %v2108, 0.0
  %v2225 = vmax.f32 %v2110, 0.0
  %v2226 = vmax.f32 %v2210, 0.0
  %v2227 = vmax.f32 %v2112, 0.0
  %v2228 = vmax.f32 %v2114, 0.0
  %v2229 = vmax.f32 %v2213, 0.0
  %v2230 = vmax.f32 %v2118, 0.0
  %v2231 = vmax.f32 %v2120, 0.0
  %v2232 = vmax.f32 %v2218, 0.0
  %v2233 = vmax.f32 %v2122, 0.0
  %v2234 = vmax.f32 %v2124, 0.0
  %v2235 = vmax.f32 %v2221, 0.0
  %v2236 = vsel %vm851, %v2224, 0.0
  %v2237 = vsel %vm852, %v2225, 0.0
  %v2238 = vsel %vm853, %v2226, 0.0
  %v2239 = vsel %vm851, %v2227, 0.0
  %v2240 = vsel %vm852, %v2228, 0.0
  %v2241 = vsel %vm853, %v2229, 0.0
  %v2242 = vsel %vm851, %v2230, 0.0
  %v2243 = vsel %vm852, %v2231, 0.0
  %v2244 = vsel %vm853, %v2232, 0.0
  %v2245 = vsel %vm851, %v2233, 0.0
  %v2246 = vsel %vm852, %v2234, 0.0
  %v2247 = vsel %vm853, %v2235, 0.0
  %v2248 = vpack.c.bf16 %v2239, %v2236
  %v2249 = vpack.c.bf16 %v2240, %v2237
  %v2250 = vpack.c.bf16 %v2241, %v2238
  %v2251 = vpack.c.bf16 %v2245, %v2242
  %v2252 = vpack.c.bf16 %v2246, %v2243
  %v2253 = vpack.c.bf16 %v2247, %v2244
  %2260 = vrot.lane.b32.xlu0 %v2248, 19
  %v2261 = vpop.permute.xlu0 %2260
  %2262 = vrot.lane.b32.xlu0 %v2249, 19
  %v2263 = vpop.permute.xlu0 %2262
  %2264 = vrot.lane.b32.xlu0 %v2250, 19
  %v2265 = vpop.permute.xlu0 %2264
  %2266 = vrot.lane.b32.xlu0 %v2251, 19
  %v2267 = vpop.permute.xlu0 %2266
  %2268 = vrot.lane.b32.xlu0 %v2252, 19
  %v2269 = vpop.permute.xlu0 %2268
  %2270 = vrot.lane.b32.xlu0 %v2253, 19
  %v2271 = vpop.permute.xlu0 %2270
  %v2272 = vsel %vm890, %v2261, %v2263
  %v2273 = vsel %vm890, %v2263, %v2265
  %v2274 = vsel %vm890, %v2267, %v2269
  %v2275 = vsel %vm890, %v2269, %v2271
  %2282 = vst.msk [vmem:[#allocation2] sm:$0xff] %vm901, %v2261
  %2283 = vst [vmem:[#allocation2 + $0x8] sm:$0xff] %v2272
  %2284 = vst.msk [vmem:[#allocation2 + $0x10] sm:$0xff] %vm904, %v2273
  %2285 = vst.msk [vmem:[#allocation2 + $0x18] sm:$0xff] %vm901, %v2267
  %2286 = vst [vmem:[#allocation2 + $0x20] sm:$0xff] %v2274
  %2287 = vst.msk [vmem:[#allocation2 + $0x28] sm:$0xff] %vm904, %v2275
  %v2288 = vld [vmem:[%s909] sm:$0xff]
  %v2289 = vld [vmem:[%s909 + $0x8] sm:$0xff]
  %v2290 = vld [vmem:[%s909 + $0x10] sm:$0xff]
  %v2291 = vld [vmem:[%s909 + $0x18] sm:$0xff]
  %v2292 = vld [vmem:[%s909 + $0x20] sm:$0xff]
  %v2293 = vld [vmem:[%s909 + $0x28] sm:$0xff]
  %2294 = vst [vmem:[#allocation3] sm:$0xff] %v2288
  %2295 = vst [vmem:[#allocation3 + $0x8] sm:$0xff] %v2289
  %2296 = vst.msk [vmem:[#allocation3 + $0x10] sm:$0xff] %vm189, %v2290
  %2297 = vst [vmem:[#allocation3 + $0x18] sm:$0xff] %v2291
  %2298 = vst [vmem:[#allocation3 + $0x20] sm:$0xff] %v2292
  %2299 = vst.msk [vmem:[#allocation3 + $0x28] sm:$0xff] %vm189, %v2293
  %v2300 = vld [vmem:[%s909] sm:$0xff]
  %v2301 = vld [vmem:[%s909 + $0x8] sm:$0xff]
  %v2302 = vld [vmem:[%s909 + $0x10] sm:$0xff]
  %v2303 = vld [vmem:[%s909 + $0x18] sm:$0xff]
  %v2304 = vld [vmem:[%s909 + $0x20] sm:$0xff]
  %v2305 = vld [vmem:[%s909 + $0x28] sm:$0xff]
  %2312 = vrot.lane.b32.xlu0 %v2300, 127
  %v2313 = vpop.permute.xlu0 %2312
  %2314 = vrot.lane.b32.xlu0 %v2301, 127
  %v2315 = vpop.permute.xlu0 %2314
  %2316 = vrot.lane.b32.xlu0 %v2302, 127
  %v2317 = vpop.permute.xlu0 %2316
  %2318 = vrot.lane.b32.xlu0 %v2303, 127
  %v2319 = vpop.permute.xlu0 %2318
  %2320 = vrot.lane.b32.xlu0 %v2304, 127
  %v2321 = vpop.permute.xlu0 %2320
  %2322 = vrot.lane.b32.xlu0 %v2305, 127
  %v2323 = vpop.permute.xlu0 %2322
  %v2324 = vsel %vm218, %v2313, %v2315
  %v2325 = vsel %vm218, %v2315, %v2317
  %v2326 = vsel %vm218, %v2319, %v2321
  %v2327 = vsel %vm218, %v2321, %v2323
  %2334 = vst [vmem:[#allocation3 + $0x30] sm:$0xff] %v2324
  %2335 = vst [vmem:[#allocation3 + $0x38] sm:$0xff] %v2325
  %2336 = vst.msk [vmem:[#allocation3 + $0x40] sm:$0xff] %vm189, %v2317
  %2337 = vst [vmem:[#allocation3 + $0x48] sm:$0xff] %v2326
  %2338 = vst [vmem:[#allocation3 + $0x50] sm:$0xff] %v2327
  %2339 = vst.msk [vmem:[#allocation3 + $0x58] sm:$0xff] %vm189, %v2323
  %v2340 = vld [vmem:[%s909] sm:$0xff]
  %v2341 = vld [vmem:[%s909 + $0x8] sm:$0xff]
  %v2342 = vld [vmem:[%s909 + $0x10] sm:$0xff]
  %v2343 = vld [vmem:[%s909 + $0x18] sm:$0xff]
  %v2344 = vld [vmem:[%s909 + $0x20] sm:$0xff]
  %v2345 = vld [vmem:[%s909 + $0x28] sm:$0xff]
  %2352 = vrot.lane.b32.xlu0 %v2340, 126
  %v2353 = vpop.permute.xlu0 %2352
  %2354 = vrot.lane.b32.xlu0 %v2341, 126
  %v2355 = vpop.permute.xlu0 %2354
  %2356 = vrot.lane.b32.xlu0 %v2342, 126
  %v2357 = vpop.permute.xlu0 %2356
  %2358 = vrot.lane.b32.xlu0 %v2343, 126
  %v2359 = vpop.permute.xlu0 %2358
  %2360 = vrot.lane.b32.xlu0 %v2344, 126
  %v2361 = vpop.permute.xlu0 %2360
  %2362 = vrot.lane.b32.xlu0 %v2345, 126
  %v2363 = vpop.permute.xlu0 %2362
  %v2364 = vsel %vm259, %v2353, %v2355
  %v2365 = vsel %vm259, %v2355, %v2357
  %v2366 = vsel %vm259, %v2359, %v2361
  %v2367 = vsel %vm259, %v2361, %v2363
  %2374 = vst [vmem:[#allocation3 + $0x60] sm:$0xff] %v2364
  %2375 = vst [vmem:[#allocation3 + $0x68] sm:$0xff] %v2365
  %2376 = vst.msk [vmem:[#allocation3 + $0x70] sm:$0xff] %vm189, %v2357
  %2377 = vst [vmem:[#allocation3 + $0x78] sm:$0xff] %v2366
  %2378 = vst [vmem:[#allocation3 + $0x80] sm:$0xff] %v2367
  %2379 = vst.msk [vmem:[#allocation3 + $0x88] sm:$0xff] %vm189, %v2363
  %v2380 = vld [vmem:[%s909] sm:$0xff]
  %v2381 = vld [vmem:[%s909 + $0x8] sm:$0xff]
  %v2382 = vld [vmem:[%s909 + $0x10] sm:$0xff]
  %v2383 = vld [vmem:[%s909 + $0x18] sm:$0xff]
  %v2384 = vld [vmem:[%s909 + $0x20] sm:$0xff]
  %v2385 = vld [vmem:[%s909 + $0x28] sm:$0xff]
  %2392 = vrot.lane.b32.xlu0 %v2380, 110
  %v2393 = vpop.permute.xlu0 %2392
  %2394 = vrot.lane.b32.xlu0 %v2381, 110
  %v2395 = vpop.permute.xlu0 %2394
  %2396 = vrot.lane.b32.xlu0 %v2382, 110
  %v2397 = vpop.permute.xlu0 %2396
  %2398 = vrot.lane.b32.xlu0 %v2383, 110
  %v2399 = vpop.permute.xlu0 %2398
  %2400 = vrot.lane.b32.xlu0 %v2384, 110
  %v2401 = vpop.permute.xlu0 %2400
  %2402 = vrot.lane.b32.xlu0 %v2385, 110
  %v2403 = vpop.permute.xlu0 %2402
  %v2404 = vsel %vm300, %v2393, %v2395
  %v2405 = vsel %vm300, %v2395, %v2397
  %v2406 = vsel %vm300, %v2399, %v2401
  %v2407 = vsel %vm300, %v2401, %v2403
  %2414 = vst [vmem:[#allocation3 + $0x90] sm:$0xff] %v2404
  %2415 = vst [vmem:[#allocation3 + $0x98] sm:$0xff] %v2405
  %2416 = vst.msk [vmem:[#allocation3 + $0xa0] sm:$0xff] %vm189, %v2397
  %2417 = vst [vmem:[#allocation3 + $0xa8] sm:$0xff] %v2406
  %2418 = vst [vmem:[#allocation3 + $0xb0] sm:$0xff] %v2407
  %2419 = vst.msk [vmem:[#allocation3 + $0xb8] sm:$0xff] %vm189, %v2403
  %v2420 = vld [vmem:[%s909] sm:$0xff]
  %v2421 = vld [vmem:[%s909 + $0x8] sm:$0xff]
  %v2422 = vld [vmem:[%s909 + $0x10] sm:$0xff]
  %v2423 = vld [vmem:[%s909 + $0x18] sm:$0xff]
  %v2424 = vld [vmem:[%s909 + $0x20] sm:$0xff]
  %v2425 = vld [vmem:[%s909 + $0x28] sm:$0xff]
  %2432 = vrot.lane.b32.xlu0 %v2420, 109
  %v2433 = vpop.permute.xlu0 %2432
  %2434 = vrot.lane.b32.xlu0 %v2421, 109
  %v2435 = vpop.permute.xlu0 %2434
  %2436 = vrot.lane.b32.xlu0 %v2422, 109
  %v2437 = vpop.permute.xlu0 %2436
  %2438 = vrot.lane.b32.xlu0 %v2423, 109
  %v2439 = vpop.permute.xlu0 %2438
  %2440 = vrot.lane.b32.xlu0 %v2424, 109
  %v2441 = vpop.permute.xlu0 %2440
  %2442 = vrot.lane.b32.xlu0 %v2425, 109
  %v2443 = vpop.permute.xlu0 %2442
  %v2444 = vsel %vm341, %v2433, %v2435
  %v2445 = vsel %vm341, %v2435, %v2437
  %v2446 = vsel %vm341, %v2439, %v2441
  %v2447 = vsel %vm341, %v2441, %v2443
  %2454 = vst [vmem:[#allocation3 + $0xc0] sm:$0xff] %v2444
  %2455 = vst [vmem:[#allocation3 + $0xc8] sm:$0xff] %v2445
  %2456 = vst.msk [vmem:[#allocation3 + $0xd0] sm:$0xff] %vm189, %v2437
  %2457 = vst [vmem:[#allocation3 + $0xd8] sm:$0xff] %v2446
  %2458 = vst [vmem:[#allocation3 + $0xe0] sm:$0xff] %v2447
  %2459 = vst.msk [vmem:[#allocation3 + $0xe8] sm:$0xff] %vm189, %v2443
  %v2460 = vld [vmem:[%s909] sm:$0xff]
  %v2461 = vld [vmem:[%s909 + $0x8] sm:$0xff]
  %v2462 = vld [vmem:[%s909 + $0x10] sm:$0xff]
  %v2463 = vld [vmem:[%s909 + $0x18] sm:$0xff]
  %v2464 = vld [vmem:[%s909 + $0x20] sm:$0xff]
  %v2465 = vld [vmem:[%s909 + $0x28] sm:$0xff]
  %2472 = vrot.lane.b32.xlu0 %v2460, 108
  %v2473 = vpop.permute.xlu0 %2472
  %2474 = vrot.lane.b32.xlu0 %v2461, 108
  %v2475 = vpop.permute.xlu0 %2474
  %2476 = vrot.lane.b32.xlu0 %v2462, 108
  %v2477 = vpop.permute.xlu0 %2476
  %2478 = vrot.lane.b32.xlu0 %v2463, 108
  %v2479 = vpop.permute.xlu0 %2478
  %2480 = vrot.lane.b32.xlu0 %v2464, 108
  %v2481 = vpop.permute.xlu0 %2480
  %2482 = vrot.lane.b32.xlu0 %v2465, 108
  %v2483 = vpop.permute.xlu0 %2482
  %v2484 = vsel %vm382, %v2473, %v2475
  %v2485 = vsel %vm382, %v2475, %v2477
  %v2486 = vsel %vm382, %v2479, %v2481
  %v2487 = vsel %vm382, %v2481, %v2483
  %2494 = vst [vmem:[#allocation3 + $0xf0] sm:$0xff] %v2484
  %2495 = vst [vmem:[#allocation3 + $0xf8] sm:$0xff] %v2485
  %2496 = vst.msk [vmem:[#allocation3 + $0x100] sm:$0xff] %vm189, %v2477
  %2497 = vst [vmem:[#allocation3 + $0x108] sm:$0xff] %v2486
  %2498 = vst [vmem:[#allocation3 + $0x110] sm:$0xff] %v2487
  %2499 = vst.msk [vmem:[#allocation3 + $0x118] sm:$0xff] %vm189, %v2483
  %v2500 = vld [vmem:[%s909] sm:$0xff]
  %v2501 = vld [vmem:[%s909 + $0x8] sm:$0xff]
  %v2502 = vld [vmem:[%s909 + $0x10] sm:$0xff]
  %v2503 = vld [vmem:[%s909 + $0x18] sm:$0xff]
  %v2504 = vld [vmem:[%s909 + $0x20] sm:$0xff]
  %v2505 = vld [vmem:[%s909 + $0x28] sm:$0xff]
  %2512 = vrot.lane.b32.xlu0 %v2500, 92
  %v2513 = vpop.permute.xlu0 %2512
  %2514 = vrot.lane.b32.xlu0 %v2501, 92
  %v2515 = vpop.permute.xlu0 %2514
  %2516 = vrot.lane.b32.xlu0 %v2502, 92
  %v2517 = vpop.permute.xlu0 %2516
  %2518 = vrot.lane.b32.xlu0 %v2503, 92
  %v2519 = vpop.permute.xlu0 %2518
  %2520 = vrot.lane.b32.xlu0 %v2504, 92
  %v2521 = vpop.permute.xlu0 %2520
  %2522 = vrot.lane.b32.xlu0 %v2505, 92
  %v2523 = vpop.permute.xlu0 %2522
  %v2524 = vsel %vm423, %v2513, %v2515
  %v2525 = vsel %vm423, %v2515, %v2517
  %v2526 = vsel %vm423, %v2519, %v2521
  %v2527 = vsel %vm423, %v2521, %v2523
  %2534 = vst [vmem:[#allocation3 + $0x120] sm:$0xff] %v2524
  %2535 = vst [vmem:[#allocation3 + $0x128] sm:$0xff] %v2525
  %2536 = vst.msk [vmem:[#allocation3 + $0x130] sm:$0xff] %vm189, %v2517
  %2537 = vst [vmem:[#allocation3 + $0x138] sm:$0xff] %v2526
  %2538 = vst [vmem:[#allocation3 + $0x140] sm:$0xff] %v2527
  %2539 = vst.msk [vmem:[#allocation3 + $0x148] sm:$0xff] %vm189, %v2523
  %v2540 = vld [vmem:[%s909] sm:$0xff]
  %v2541 = vld [vmem:[%s909 + $0x8] sm:$0xff]
  %v2542 = vld [vmem:[%s909 + $0x10] sm:$0xff]
  %v2543 = vld [vmem:[%s909 + $0x18] sm:$0xff]
  %v2544 = vld [vmem:[%s909 + $0x20] sm:$0xff]
  %v2545 = vld [vmem:[%s909 + $0x28] sm:$0xff]
  %2552 = vrot.lane.b32.xlu0 %v2540, 91
  %v2553 = vpop.permute.xlu0 %2552
  %2554 = vrot.lane.b32.xlu0 %v2541, 91
  %v2555 = vpop.permute.xlu0 %2554
  %2556 = vrot.lane.b32.xlu0 %v2542, 91
  %v2557 = vpop.permute.xlu0 %2556
  %2558 = vrot.lane.b32.xlu0 %v2543, 91
  %v2559 = vpop.permute.xlu0 %2558
  %2560 = vrot.lane.b32.xlu0 %v2544, 91
  %v2561 = vpop.permute.xlu0 %2560
  %2562 = vrot.lane.b32.xlu0 %v2545, 91
  %v2563 = vpop.permute.xlu0 %2562
  %v2564 = vsel %vm464, %v2553, %v2555
  %v2565 = vsel %vm464, %v2555, %v2557
  %v2566 = vsel %vm464, %v2559, %v2561
  %v2567 = vsel %vm464, %v2561, %v2563
  %2574 = vst [vmem:[#allocation3 + $0x150] sm:$0xff] %v2564
  %2575 = vst [vmem:[#allocation3 + $0x158] sm:$0xff] %v2565
  %2576 = vst.msk [vmem:[#allocation3 + $0x160] sm:$0xff] %vm189, %v2557
  %2577 = vst [vmem:[#allocation3 + $0x168] sm:$0xff] %v2566
  %2578 = vst [vmem:[#allocation3 + $0x170] sm:$0xff] %v2567
  %2579 = vst.msk [vmem:[#allocation3 + $0x178] sm:$0xff] %vm189, %v2563
  %v2580 = vld [vmem:[%s909] sm:$0xff]
  %v2581 = vld [vmem:[%s909 + $0x8] sm:$0xff]
  %v2582 = vld [vmem:[%s909 + $0x10] sm:$0xff]
  %v2583 = vld [vmem:[%s909 + $0x18] sm:$0xff]
  %v2584 = vld [vmem:[%s909 + $0x20] sm:$0xff]
  %v2585 = vld [vmem:[%s909 + $0x28] sm:$0xff]
  %2592 = vrot.lane.b32.xlu0 %v2580, 90
  %v2593 = vpop.permute.xlu0 %2592
  %2594 = vrot.lane.b32.xlu0 %v2581, 90
  %v2595 = vpop.permute.xlu0 %2594
  %2596 = vrot.lane.b32.xlu0 %v2582, 90
  %v2597 = vpop.permute.xlu0 %2596
  %2598 = vrot.lane.b32.xlu0 %v2583, 90
  %v2599 = vpop.permute.xlu0 %2598
  %2600 = vrot.lane.b32.xlu0 %v2584, 90
  %v2601 = vpop.permute.xlu0 %2600
  %2602 = vrot.lane.b32.xlu0 %v2585, 90
  %v2603 = vpop.permute.xlu0 %2602
  %v2604 = vsel %vm505, %v2593, %v2595
  %v2605 = vsel %vm505, %v2595, %v2597
  %v2606 = vsel %vm505, %v2599, %v2601
  %v2607 = vsel %vm505, %v2601, %v2603
  %2614 = vst [vmem:[#allocation3 + $0x180] sm:$0xff] %v2604
  %2615 = vst [vmem:[#allocation3 + $0x188] sm:$0xff] %v2605
  %2616 = vst.msk [vmem:[#allocation3 + $0x190] sm:$0xff] %vm189, %v2597
  %2617 = vst [vmem:[#allocation3 + $0x198] sm:$0xff] %v2606
  %2618 = vst [vmem:[#allocation3 + $0x1a0] sm:$0xff] %v2607
  %2619 = vst.msk [vmem:[#allocation3 + $0x1a8] sm:$0xff] %vm189, %v2603
  %v2620 = vld [vmem:[#allocation3] sm:$0xff]
  %v2621 = vld [vmem:[#allocation3 + $0x8] sm:$0xff]
  %v2622 = vld [vmem:[#allocation3 + $0x10] sm:$0xff]
  %v2623 = vld [vmem:[#allocation3 + $0x18] sm:$0xff]
  %v2624 = vld [vmem:[#allocation3 + $0x20] sm:$0xff]
  %v2625 = vld [vmem:[#allocation3 + $0x28] sm:$0xff]
  %v2626 = vld [vmem:[#allocation3 + $0x30] sm:$0xff]
  %v2627 = vld [vmem:[#allocation3 + $0x38] sm:$0xff]
  %v2628 = vld [vmem:[#allocation3 + $0x40] sm:$0xff]
  %v2629 = vld [vmem:[#allocation3 + $0x48] sm:$0xff]
  %v2630 = vld [vmem:[#allocation3 + $0x50] sm:$0xff]
  %v2631 = vld [vmem:[#allocation3 + $0x58] sm:$0xff]
  %v2632 = vld [vmem:[#allocation3 + $0x60] sm:$0xff]
  %v2633 = vld [vmem:[#allocation3 + $0x68] sm:$0xff]
  %v2634 = vld [vmem:[#allocation3 + $0x70] sm:$0xff]
  %v2635 = vld [vmem:[#allocation3 + $0x78] sm:$0xff]
  %v2636 = vld [vmem:[#allocation3 + $0x80] sm:$0xff]
  %v2637 = vld [vmem:[#allocation3 + $0x88] sm:$0xff]
  %v2638 = vld [vmem:[#allocation3 + $0x90] sm:$0xff]
  %v2639 = vld [vmem:[#allocation3 + $0x98] sm:$0xff]
  %v2640 = vld [vmem:[#allocation3 + $0xa0] sm:$0xff]
  %v2641 = vld [vmem:[#allocation3 + $0xa8] sm:$0xff]
  %v2642 = vld [vmem:[#allocation3 + $0xb0] sm:$0xff]
  %v2643 = vld [vmem:[#allocation3 + $0xb8] sm:$0xff]
  %v2644 = vld [vmem:[#allocation3 + $0xc0] sm:$0xff]
  %v2645 = vld [vmem:[#allocation3 + $0xc8] sm:$0xff]
  %v2646 = vld [vmem:[#allocation3 + $0xd0] sm:$0xff]
  %v2647 = vld [vmem:[#allocation3 + $0xd8] sm:$0xff]
  %v2648 = vld [vmem:[#allocation3 + $0xe0] sm:$0xff]
  %v2649 = vld [vmem:[#allocation3 + $0xe8] sm:$0xff]
  %v2650 = vld [vmem:[#allocation3 + $0xf0] sm:$0xff]
  %v2651 = vld [vmem:[#allocation3 + $0xf8] sm:$0xff]
  %v2652 = vld [vmem:[#allocation3 + $0x100] sm:$0xff]
  %v2653 = vld [vmem:[#allocation3 + $0x108] sm:$0xff]
  %v2654 = vld [vmem:[#allocation3 + $0x110] sm:$0xff]
  %v2655 = vld [vmem:[#allocation3 + $0x118] sm:$0xff]
  %v2656 = vld [vmem:[#allocation3 + $0x120] sm:$0xff]
  %v2657 = vld [vmem:[#allocation3 + $0x128] sm:$0xff]
  %v2658 = vld [vmem:[#allocation3 + $0x130] sm:$0xff]
  %v2659 = vld [vmem:[#allocation3 + $0x138] sm:$0xff]
  %v2660 = vld [vmem:[#allocation3 + $0x140] sm:$0xff]
  %v2661 = vld [vmem:[#allocation3 + $0x148] sm:$0xff]
  %v2662 = vld [vmem:[#allocation3 + $0x150] sm:$0xff]
  %v2663 = vld [vmem:[#allocation3 + $0x158] sm:$0xff]
  %v2664 = vld [vmem:[#allocation3 + $0x160] sm:$0xff]
  %v2665 = vld [vmem:[#allocation3 + $0x168] sm:$0xff]
  %v2666 = vld [vmem:[#allocation3 + $0x170] sm:$0xff]
  %v2667 = vld [vmem:[#allocation3 + $0x178] sm:$0xff]
  %v2668 = vld [vmem:[#allocation3 + $0x180] sm:$0xff]
  %v2669 = vld [vmem:[#allocation3 + $0x188] sm:$0xff]
  %v2670 = vld [vmem:[#allocation3 + $0x190] sm:$0xff]
  %v2671 = vld [vmem:[#allocation3 + $0x198] sm:$0xff]
  %v2672 = vld [vmem:[#allocation3 + $0x1a0] sm:$0xff]
  %v2673 = vld [vmem:[#allocation3 + $0x1a8] sm:$0xff]
  %2674 = vmatprep.subr.bf16.mxu0 %v2621
  %2675 = vmatpush1.bf16.msra.mxu0 %v2620
  %2676 = vmatprep.subr.bf16.mxu0 %v2624
  %2677 = vmatpush1.bf16.msra.mxu0 %v2623
  %2678 = vmatprep.subr.bf16.mxu0 %v2627
  %2679 = vmatpush1.bf16.msra.mxu0 %v2626
  %2680 = vmatprep.subr.bf16.mxu0 %v2630
  %2681 = vmatpush1.bf16.msra.mxu0 %v2629
  %2682 = vmatprep.subr.bf16.mxu0 %v2633
  %2683 = vmatpush1.bf16.msra.mxu0 %v2632
  %2684 = vmatprep.subr.bf16.mxu0 %v2636
  %2685 = vmatpush1.bf16.msra.mxu0 %v2635
  %2686 = vmatprep.subr.bf16.mxu0 %v2639
  %2687 = vmatpush1.bf16.msra.mxu0 %v2638
  %2688 = vmatprep.subr.bf16.mxu0 %v2642
  %2689 = vmatpush1.bf16.msra.mxu0 %v2641
  %2690 = vmatprep.subr.bf16.mxu0 %v2645
  %2691 = vmatpush1.bf16.msra.mxu0 %v2644
  %2692 = vmatprep.subr.bf16.mxu0 %v2648
  %2693 = vmatpush1.bf16.msra.mxu0 %v2647
  %2694 = vmatprep.subr.bf16.mxu0 %v2651
  %2695 = vmatpush1.bf16.msra.mxu0 %v2650
  %2696 = vmatprep.subr.bf16.mxu0 %v2654
  %2697 = vmatpush1.bf16.msra.mxu0 %v2653
  %2698 = vmatprep.subr.bf16.mxu0 %v2657
  %2699 = vmatpush1.bf16.msra.mxu0 %v2656
  %2700 = vmatprep.subr.bf16.mxu0 %v2660
  %2701 = vmatpush1.bf16.msra.mxu0 %v2659
  %2702 = vmatprep.subr.bf16.mxu0 %v2663
  %2703 = vmatpush1.bf16.msra.mxu0 %v2662
  %2704 = vmatprep.subr.bf16.mxu0 %v2666
  %2705 = vmatpush1.bf16.msra.mxu0 %v2665
  %2706 = vmatprep.mubr.bf16.mxu0 %v2005
  %2707 = vmatmul.mubr.bf16.gmra.mrb[0].mxu0 %v2004
  %v2708 = vpop.f32.mrb[0].mxu0
  %v2709 = vadd.f32 %v1967, %v2708
  %v2710 = vpop.f32.mrb[0].mxu0
  %v2711 = vadd.f32 %v1967, %v2710
  %v2712 = vpop.f32.mrb[0].mxu0
  %v2713 = vadd.f32 %v1972, %v2712
  %v2714 = vpop.f32.mrb[0].mxu0
  %v2715 = vadd.f32 %v1972, %v2714
  %2716 = vmatprep.mubr.bf16.mxu0 %v2008
  %2717 = vmatmul.mubr.bf16.gmra.mrb[0].mxu0 %v2007
  %v2718 = vpop.f32.mrb[0].mxu0
  %v2719 = vadd.f32 %v1977, %v2718
  %v2720 = vpop.f32.mrb[0].mxu0
  %v2721 = vadd.f32 %v1977, %v2720
  %v2722 = vpop.f32.mrb[0].mxu0
  %v2723 = vadd.f32 %v1982, %v2722
  %v2724 = vpop.f32.mrb[0].mxu0
  %v2725 = vadd.f32 %v1982, %v2724
  %2726 = vdwg.mxu0
  %2727 = vmatprep.subr.bf16.mxu0 %v2669
  %2728 = vmatpush1.bf16.msra.mxu0 %v2668
  %2729 = vmatprep.subr.bf16.mxu0 %v2672
  %2730 = vmatpush1.bf16.msra.mxu0 %v2671
  %2731 = vmatprep.subr.bf16.mxu0 0
  %2732 = vmatpush1.bf16.msra.mxu0 0
  %2733 = vmatprep.subr.bf16.mxu0 0
  %2734 = vmatpush1.bf16.msra.mxu0 0
  %2735 = vmatprep.subr.bf16.mxu0 0
  %2736 = vmatpush1.bf16.msra.mxu0 0
  %2737 = vmatprep.subr.bf16.mxu0 0
  %2738 = vmatpush1.bf16.msra.mxu0 0
  %2739 = vmatprep.subr.bf16.mxu0 0
  %2740 = vmatpush1.bf16.msra.mxu0 0
  %2741 = vmatprep.subr.bf16.mxu0 0
  %2742 = vmatpush1.bf16.msra.mxu0 0
  %2743 = vmatprep.subr.bf16.mxu0 0
  %2744 = vmatpush1.bf16.msra.mxu0 0
  %2745 = vmatprep.subr.bf16.mxu0 0
  %2746 = vmatpush1.bf16.msra.mxu0 0
  %2747 = vmatprep.subr.bf16.mxu0 0
  %2748 = vmatpush1.bf16.msra.mxu0 0
  %2749 = vmatprep.subr.bf16.mxu0 0
  %2750 = vmatpush1.bf16.msra.mxu0 0
  %2751 = vmatprep.subr.bf16.mxu0 0
  %2752 = vmatpush1.bf16.msra.mxu0 0
  %2753 = vmatprep.subr.bf16.mxu0 0
  %2754 = vmatpush1.bf16.msra.mxu0 0
  %2755 = vmatprep.subr.bf16.mxu0 0
  %2756 = vmatpush1.bf16.msra.mxu0 0
  %2757 = vmatprep.subr.bf16.mxu0 0
  %2758 = vmatpush1.bf16.msra.mxu0 0
  %2759 = vmatprep.mubr.bf16.mxu0 0
  %2760 = vmatmul.mubr.bf16.gmra.mrb[0].mxu0 %v2015
  %v2761 = vpop.f32.mrb[0].mxu0
  %v2762 = vadd.f32 %v2709, %v2761
  %v2763 = vpop.f32.mrb[0].mxu0
  %v2764 = vadd.f32 %v2711, %v2763
  %v2765 = vpop.f32.mrb[0].mxu0
  %v2766 = vadd.f32 %v2713, %v2765
  %v2767 = vpop.f32.mrb[0].mxu0
  %v2768 = vadd.f32 %v2715, %v2767
  %2769 = vmatprep.mubr.bf16.mxu0 0
  %2770 = vmatmul.mubr.bf16.gmra.mrb[0].mxu0 %v2018
  %v2771 = vpop.f32.mrb[0].mxu0
  %v2772 = vadd.f32 %v2719, %v2771
  %v2773 = vpop.f32.mrb[0].mxu0
  %v2774 = vadd.f32 %v2721, %v2773
  %v2775 = vpop.f32.mrb[0].mxu0
  %v2776 = vadd.f32 %v2723, %v2775
  %v2777 = vpop.f32.mrb[0].mxu0
  %v2778 = vadd.f32 %v2725, %v2777
  %2779 = vdwg.mxu0
  %2780 = vmatprep.subr.bf16.mxu0 0
  %2781 = vmatpush1.bf16.msra.mxu0 %v2622
  %2782 = vmatprep.subr.bf16.mxu0 0
  %2783 = vmatpush1.bf16.msra.mxu0 %v2625
  %2784 = vmatprep.subr.bf16.mxu0 0
  %2785 = vmatpush1.bf16.msra.mxu0 %v2628
  %2786 = vmatprep.subr.bf16.mxu0 0
  %2787 = vmatpush1.bf16.msra.mxu0 %v2631
  %2788 = vmatprep.subr.bf16.mxu0 0
  %2789 = vmatpush1.bf16.msra.mxu0 %v2634
  %2790 = vmatprep.subr.bf16.mxu0 0
  %2791 = vmatpush1.bf16.msra.mxu0 %v2637
  %2792 = vmatprep.subr.bf16.mxu0 0
  %2793 = vmatpush1.bf16.msra.mxu0 %v2640
  %2794 = vmatprep.subr.bf16.mxu0 0
  %2795 = vmatpush1.bf16.msra.mxu0 %v2643
  %2796 = vmatprep.subr.bf16.mxu0 0
  %2797 = vmatpush1.bf16.msra.mxu0 %v2646
  %2798 = vmatprep.subr.bf16.mxu0 0
  %2799 = vmatpush1.bf16.msra.mxu0 %v2649
  %2800 = vmatprep.subr.bf16.mxu0 0
  %2801 = vmatpush1.bf16.msra.mxu0 %v2652
  %2802 = vmatprep.subr.bf16.mxu0 0
  %2803 = vmatpush1.bf16.msra.mxu0 %v2655
  %2804 = vmatprep.subr.bf16.mxu0 0
  %2805 = vmatpush1.bf16.msra.mxu0 %v2658
  %2806 = vmatprep.subr.bf16.mxu0 0
  %2807 = vmatpush1.bf16.msra.mxu0 %v2661
  %2808 = vmatprep.subr.bf16.mxu0 0
  %2809 = vmatpush1.bf16.msra.mxu0 %v2664
  %2810 = vmatprep.subr.bf16.mxu0 0
  %2811 = vmatpush1.bf16.msra.mxu0 %v2667
  %2812 = vmatprep.mubr.bf16.mxu0 %v2005
  %2813 = vmatmul.mubr.bf16.gmra.mrb[0].mxu0 %v2004
  %v2814 = vpop.f32.mrb[0].mxu0
  %v2815 = vadd.f32 %v1967, %v2814
  %v2816 = vpop.f32.mrb[0].mxu0
  %v2817 = vpop.f32.mrb[0].mxu0
  %v2818 = vadd.f32 %v1972, %v2817
  %v2819 = vpop.f32.mrb[0].mxu0
  %2820 = vmatprep.mubr.bf16.mxu0 %v2008
  %2821 = vmatmul.mubr.bf16.gmra.mrb[0].mxu0 %v2007
  %v2822 = vpop.f32.mrb[0].mxu0
  %v2823 = vadd.f32 %v1977, %v2822
  %v2824 = vpop.f32.mrb[0].mxu0
  %v2825 = vpop.f32.mrb[0].mxu0
  %v2826 = vadd.f32 %v1982, %v2825
  %v2827 = vpop.f32.mrb[0].mxu0
  %2828 = vdwg.mxu0
  %2829 = vmatprep.subr.bf16.mxu0 0
  %2830 = vmatpush1.bf16.msra.mxu0 %v2670
  %2831 = vmatprep.subr.bf16.mxu0 0
  %2832 = vmatpush1.bf16.msra.mxu0 %v2673
  %2833 = vmatprep.subr.bf16.mxu0 0
  %2834 = vmatpush1.bf16.msra.mxu0 0
  %2835 = vmatprep.subr.bf16.mxu0 0
  %2836 = vmatpush1.bf16.msra.mxu0 0
  %2837 = vmatprep.subr.bf16.mxu0 0
  %2838 = vmatpush1.bf16.msra.mxu0 0
  %2839 = vmatprep.subr.bf16.mxu0 0
  %2840 = vmatpush1.bf16.msra.mxu0 0
  %2841 = vmatprep.subr.bf16.mxu0 0
  %2842 = vmatpush1.bf16.msra.mxu0 0
  %2843 = vmatprep.subr.bf16.mxu0 0
  %2844 = vmatpush1.bf16.msra.mxu0 0
  %2845 = vmatprep.subr.bf16.mxu0 0
  %2846 = vmatpush1.bf16.msra.mxu0 0
  %2847 = vmatprep.subr.bf16.mxu0 0
  %2848 = vmatpush1.bf16.msra.mxu0 0
  %2849 = vmatprep.subr.bf16.mxu0 0
  %2850 = vmatpush1.bf16.msra.mxu0 0
  %2851 = vmatprep.subr.bf16.mxu0 0
  %2852 = vmatpush1.bf16.msra.mxu0 0
  %2853 = vmatprep.subr.bf16.mxu0 0
  %2854 = vmatpush1.bf16.msra.mxu0 0
  %2855 = vmatprep.subr.bf16.mxu0 0
  %2856 = vmatpush1.bf16.msra.mxu0 0
  %2857 = vmatprep.subr.bf16.mxu0 0
  %2858 = vmatpush1.bf16.msra.mxu0 0
  %2859 = vmatprep.subr.bf16.mxu0 0
  %2860 = vmatpush1.bf16.msra.mxu0 0
  %2861 = vmatprep.mubr.bf16.mxu0 0
  %2862 = vmatmul.mubr.bf16.gmra.mrb[0].mxu0 %v2015
  %v2863 = vpop.f32.mrb[0].mxu0
  %v2864 = vadd.f32 %v2815, %v2863
  %v2865 = vpop.f32.mrb[0].mxu0
  %v2866 = vpop.f32.mrb[0].mxu0
  %v2867 = vadd.f32 %v2818, %v2866
  %v2868 = vpop.f32.mrb[0].mxu0
  %2869 = vmatprep.mubr.bf16.mxu0 0
  %2870 = vmatmul.mubr.bf16.gmra.mrb[0].mxu0 %v2018
  %v2871 = vpop.f32.mrb[0].mxu0
  %v2872 = vadd.f32 %v2823, %v2871
  %v2873 = vpop.f32.mrb[0].mxu0
  %v2874 = vpop.f32.mrb[0].mxu0
  %v2875 = vadd.f32 %v2826, %v2874
  %v2876 = vpop.f32.mrb[0].mxu0
  %2877 = vdwg.mxu0
  %v2878 = vmax.f32 %v2762, 0.0
  %v2879 = vmax.f32 %v2764, 0.0
  %v2880 = vmax.f32 %v2864, 0.0
  %v2881 = vmax.f32 %v2766, 0.0
  %v2882 = vmax.f32 %v2768, 0.0
  %v2883 = vmax.f32 %v2867, 0.0
  %v2884 = vmax.f32 %v2772, 0.0
  %v2885 = vmax.f32 %v2774, 0.0
  %v2886 = vmax.f32 %v2872, 0.0
  %v2887 = vmax.f32 %v2776, 0.0
  %v2888 = vmax.f32 %v2778, 0.0
  %v2889 = vmax.f32 %v2875, 0.0
  %v2890 = vsel %vm851, %v2878, 0.0
  %v2891 = vsel %vm852, %v2879, 0.0
  %v2892 = vsel %vm853, %v2880, 0.0
  %v2893 = vsel %vm851, %v2881, 0.0
  %v2894 = vsel %vm852, %v2882, 0.0
  %v2895 = vsel %vm853, %v2883, 0.0
  %v2896 = vsel %vm851, %v2884, 0.0
  %v2897 = vsel %vm852, %v2885, 0.0
  %v2898 = vsel %vm853, %v2886, 0.0
  %v2899 = vsel %vm851, %v2887, 0.0
  %v2900 = vsel %vm852, %v2888, 0.0
  %v2901 = vsel %vm853, %v2889, 0.0
  %v2902 = vpack.c.bf16 %v2893, %v2890
  %v2903 = vpack.c.bf16 %v2894, %v2891
  %v2904 = vpack.c.bf16 %v2895, %v2892
  %v2905 = vpack.c.bf16 %v2899, %v2896
  %v2906 = vpack.c.bf16 %v2900, %v2897
  %v2907 = vpack.c.bf16 %v2901, %v2898
  %2914 = vrot.lane.b32.xlu0 %v2902, 19
  %v2915 = vpop.permute.xlu0 %2914
  %2916 = vrot.lane.b32.xlu0 %v2903, 19
  %v2917 = vpop.permute.xlu0 %2916
  %2918 = vrot.lane.b32.xlu0 %v2904, 19
  %v2919 = vpop.permute.xlu0 %2918
  %2920 = vrot.lane.b32.xlu0 %v2905, 19
  %v2921 = vpop.permute.xlu0 %2920
  %2922 = vrot.lane.b32.xlu0 %v2906, 19
  %v2923 = vpop.permute.xlu0 %2922
  %2924 = vrot.lane.b32.xlu0 %v2907, 19
  %v2925 = vpop.permute.xlu0 %2924
  %v2926 = vsel %vm890, %v2915, %v2917
  %v2927 = vsel %vm890, %v2917, %v2919
  %v2928 = vsel %vm890, %v2921, %v2923
  %v2929 = vsel %vm890, %v2923, %v2925
  %2936 = vst.msk [vmem:[%s909] sm:$0xff] %vm901, %v2915
  %2937 = vst [vmem:[%s909 + $0x8] sm:$0xff] %v2926
  %2938 = vst.msk [vmem:[%s909 + $0x10] sm:$0xff] %vm904, %v2927
  %2939 = vst.msk [vmem:[%s909 + $0x18] sm:$0xff] %vm901, %v2921
  %2940 = vst [vmem:[%s909 + $0x20] sm:$0xff] %v2928
  %2941 = vst.msk [vmem:[%s909 + $0x28] sm:$0xff] %vm904, %v2929
  %s2942 = scalar_lea.vmem %s1, 96
  %v2943 = vld [vmem:[%s2942] sm:$0xff]
  %v2944 = vld [vmem:[%s2942 + $0x8] sm:$0xf]
  %v2945 = vld [vmem:[%s2942 + $0xc] sm:$0xff]
  %v2946 = vld [vmem:[%s2942 + $0x14] sm:$0xf]
  %v2947 = vld [vmem:[%s2942 + $0x18] sm:$0xff]
  %v2948 = vld [vmem:[%s2942 + $0x20] sm:$0xf]
  %v2949 = vld [vmem:[%s2942 + $0x24] sm:$0xff]
  %v2950 = vld [vmem:[%s2942 + $0x2c] sm:$0xf]
  %s2951 = scalar_lea.vmem %s2, 64
  %v2952 = vld [vmem:[%s2951] sm:$0xff]
  %v2953 = vld [vmem:[%s2951 + $0x8] sm:$0xff]
  %v2954 = vld [vmem:[%s2951 + $0x10] sm:$0xff]
  %v2955 = vld [vmem:[%s2951 + $0x18] sm:$0xff]
  %v2956 = vld [vmem:[#allocation2] sm:$0xff]
  %v2957 = vld [vmem:[#allocation2 + $0x8] sm:$0xff]
  %v2958 = vld [vmem:[#allocation2 + $0x10] sm:$0xff]
  %v2959 = vld [vmem:[#allocation2 + $0x18] sm:$0xff]
  %v2960 = vld [vmem:[#allocation2 + $0x20] sm:$0xff]
  %v2961 = vld [vmem:[#allocation2 + $0x28] sm:$0xff]
  %2962 = vst [vmem:[#allocation3] sm:$0xff] %v2956
  %2963 = vst [vmem:[#allocation3 + $0x8] sm:$0xff] %v2957
  %2964 = vst.msk [vmem:[#allocation3 + $0x10] sm:$0xff] %vm189, %v2958
  %2965 = vst [vmem:[#allocation3 + $0x18] sm:$0xff] %v2959
  %2966 = vst [vmem:[#allocation3 + $0x20] sm:$0xff] %v2960
  %2967 = vst.msk [vmem:[#allocation3 + $0x28] sm:$0xff] %vm189, %v2961
  %v2968 = vld [vmem:[#allocation2] sm:$0xff]
  %v2969 = vld [vmem:[#allocation2 + $0x8] sm:$0xff]
  %v2970 = vld [vmem:[#allocation2 + $0x10] sm:$0xff]
  %v2971 = vld [vmem:[#allocation2 + $0x18] sm:$0xff]
  %v2972 = vld [vmem:[#allocation2 + $0x20] sm:$0xff]
  %v2973 = vld [vmem:[#allocation2 + $0x28] sm:$0xff]
  %2980 = vrot.lane.b32.xlu0 %v2968, 127
  %v2981 = vpop.permute.xlu0 %2980
  %2982 = vrot.lane.b32.xlu0 %v2969, 127
  %v2983 = vpop.permute.xlu0 %2982
  %2984 = vrot.lane.b32.xlu0 %v2970, 127
  %v2985 = vpop.permute.xlu0 %2984
  %2986 = vrot.lane.b32.xlu0 %v2971, 127
  %v2987 = vpop.permute.xlu0 %2986
  %2988 = vrot.lane.b32.xlu0 %v2972, 127
  %v2989 = vpop.permute.xlu0 %2988
  %2990 = vrot.lane.b32.xlu0 %v2973, 127
  %v2991 = vpop.permute.xlu0 %2990
  %v2992 = vsel %vm218, %v2981, %v2983
  %v2993 = vsel %vm218, %v2983, %v2985
  %v2994 = vsel %vm218, %v2987, %v2989
  %v2995 = vsel %vm218, %v2989, %v2991
  %3002 = vst [vmem:[#allocation3 + $0x30] sm:$0xff] %v2992
  %3003 = vst [vmem:[#allocation3 + $0x38] sm:$0xff] %v2993
  %3004 = vst.msk [vmem:[#allocation3 + $0x40] sm:$0xff] %vm189, %v2985
  %3005 = vst [vmem:[#allocation3 + $0x48] sm:$0xff] %v2994
  %3006 = vst [vmem:[#allocation3 + $0x50] sm:$0xff] %v2995
  %3007 = vst.msk [vmem:[#allocation3 + $0x58] sm:$0xff] %vm189, %v2991
  %v3008 = vld [vmem:[#allocation2] sm:$0xff]
  %v3009 = vld [vmem:[#allocation2 + $0x8] sm:$0xff]
  %v3010 = vld [vmem:[#allocation2 + $0x10] sm:$0xff]
  %v3011 = vld [vmem:[#allocation2 + $0x18] sm:$0xff]
  %v3012 = vld [vmem:[#allocation2 + $0x20] sm:$0xff]
  %v3013 = vld [vmem:[#allocation2 + $0x28] sm:$0xff]
  %3020 = vrot.lane.b32.xlu0 %v3008, 126
  %v3021 = vpop.permute.xlu0 %3020
  %3022 = vrot.lane.b32.xlu0 %v3009, 126
  %v3023 = vpop.permute.xlu0 %3022
  %3024 = vrot.lane.b32.xlu0 %v3010, 126
  %v3025 = vpop.permute.xlu0 %3024
  %3026 = vrot.lane.b32.xlu0 %v3011, 126
  %v3027 = vpop.permute.xlu0 %3026
  %3028 = vrot.lane.b32.xlu0 %v3012, 126
  %v3029 = vpop.permute.xlu0 %3028
  %3030 = vrot.lane.b32.xlu0 %v3013, 126
  %v3031 = vpop.permute.xlu0 %3030
  %v3032 = vsel %vm259, %v3021, %v3023
  %v3033 = vsel %vm259, %v3023, %v3025
  %v3034 = vsel %vm259, %v3027, %v3029
  %v3035 = vsel %vm259, %v3029, %v3031
  %3042 = vst [vmem:[#allocation3 + $0x60] sm:$0xff] %v3032
  %3043 = vst [vmem:[#allocation3 + $0x68] sm:$0xff] %v3033
  %3044 = vst.msk [vmem:[#allocation3 + $0x70] sm:$0xff] %vm189, %v3025
  %3045 = vst [vmem:[#allocation3 + $0x78] sm:$0xff] %v3034
  %3046 = vst [vmem:[#allocation3 + $0x80] sm:$0xff] %v3035
  %3047 = vst.msk [vmem:[#allocation3 + $0x88] sm:$0xff] %vm189, %v3031
  %v3048 = vld [vmem:[#allocation2] sm:$0xff]
  %v3049 = vld [vmem:[#allocation2 + $0x8] sm:$0xff]
  %v3050 = vld [vmem:[#allocation2 + $0x10] sm:$0xff]
  %v3051 = vld [vmem:[#allocation2 + $0x18] sm:$0xff]
  %v3052 = vld [vmem:[#allocation2 + $0x20] sm:$0xff]
  %v3053 = vld [vmem:[#allocation2 + $0x28] sm:$0xff]
  %3060 = vrot.lane.b32.xlu0 %v3048, 110
  %v3061 = vpop.permute.xlu0 %3060
  %3062 = vrot.lane.b32.xlu0 %v3049, 110
  %v3063 = vpop.permute.xlu0 %3062
  %3064 = vrot.lane.b32.xlu0 %v3050, 110
  %v3065 = vpop.permute.xlu0 %3064
  %3066 = vrot.lane.b32.xlu0 %v3051, 110
  %v3067 = vpop.permute.xlu0 %3066
  %3068 = vrot.lane.b32.xlu0 %v3052, 110
  %v3069 = vpop.permute.xlu0 %3068
  %3070 = vrot.lane.b32.xlu0 %v3053, 110
  %v3071 = vpop.permute.xlu0 %3070
  %v3072 = vsel %vm300, %v3061, %v3063
  %v3073 = vsel %vm300, %v3063, %v3065
  %v3074 = vsel %vm300, %v3067, %v3069
  %v3075 = vsel %vm300, %v3069, %v3071
  %3082 = vst [vmem:[#allocation3 + $0x90] sm:$0xff] %v3072
  %3083 = vst [vmem:[#allocation3 + $0x98] sm:$0xff] %v3073
  %3084 = vst.msk [vmem:[#allocation3 + $0xa0] sm:$0xff] %vm189, %v3065
  %3085 = vst [vmem:[#allocation3 + $0xa8] sm:$0xff] %v3074
  %3086 = vst [vmem:[#allocation3 + $0xb0] sm:$0xff] %v3075
  %3087 = vst.msk [vmem:[#allocation3 + $0xb8] sm:$0xff] %vm189, %v3071
  %v3088 = vld [vmem:[#allocation2] sm:$0xff]
  %v3089 = vld [vmem:[#allocation2 + $0x8] sm:$0xff]
  %v3090 = vld [vmem:[#allocation2 + $0x10] sm:$0xff]
  %v3091 = vld [vmem:[#allocation2 + $0x18] sm:$0xff]
  %v3092 = vld [vmem:[#allocation2 + $0x20] sm:$0xff]
  %v3093 = vld [vmem:[#allocation2 + $0x28] sm:$0xff]
  %3100 = vrot.lane.b32.xlu0 %v3088, 109
  %v3101 = vpop.permute.xlu0 %3100
  %3102 = vrot.lane.b32.xlu0 %v3089, 109
  %v3103 = vpop.permute.xlu0 %3102
  %3104 = vrot.lane.b32.xlu0 %v3090, 109
  %v3105 = vpop.permute.xlu0 %3104
  %3106 = vrot.lane.b32.xlu0 %v3091, 109
  %v3107 = vpop.permute.xlu0 %3106
  %3108 = vrot.lane.b32.xlu0 %v3092, 109
  %v3109 = vpop.permute.xlu0 %3108
  %3110 = vrot.lane.b32.xlu0 %v3093, 109
  %v3111 = vpop.permute.xlu0 %3110
  %v3112 = vsel %vm341, %v3101, %v3103
  %v3113 = vsel %vm341, %v3103, %v3105
  %v3114 = vsel %vm341, %v3107, %v3109
  %v3115 = vsel %vm341, %v3109, %v3111
  %3122 = vst [vmem:[#allocation3 + $0xc0] sm:$0xff] %v3112
  %3123 = vst [vmem:[#allocation3 + $0xc8] sm:$0xff] %v3113
  %3124 = vst.msk [vmem:[#allocation3 + $0xd0] sm:$0xff] %vm189, %v3105
  %3125 = vst [vmem:[#allocation3 + $0xd8] sm:$0xff] %v3114
  %3126 = vst [vmem:[#allocation3 + $0xe0] sm:$0xff] %v3115
  %3127 = vst.msk [vmem:[#allocation3 + $0xe8] sm:$0xff] %vm189, %v3111
  %v3128 = vld [vmem:[#allocation2] sm:$0xff]
  %v3129 = vld [vmem:[#allocation2 + $0x8] sm:$0xff]
  %v3130 = vld [vmem:[#allocation2 + $0x10] sm:$0xff]
  %v3131 = vld [vmem:[#allocation2 + $0x18] sm:$0xff]
  %v3132 = vld [vmem:[#allocation2 + $0x20] sm:$0xff]
  %v3133 = vld [vmem:[#allocation2 + $0x28] sm:$0xff]
  %3140 = vrot.lane.b32.xlu0 %v3128, 108
  %v3141 = vpop.permute.xlu0 %3140
  %3142 = vrot.lane.b32.xlu0 %v3129, 108
  %v3143 = vpop.permute.xlu0 %3142
  %3144 = vrot.lane.b32.xlu0 %v3130, 108
  %v3145 = vpop.permute.xlu0 %3144
  %3146 = vrot.lane.b32.xlu0 %v3131, 108
  %v3147 = vpop.permute.xlu0 %3146
  %3148 = vrot.lane.b32.xlu0 %v3132, 108
  %v3149 = vpop.permute.xlu0 %3148
  %3150 = vrot.lane.b32.xlu0 %v3133, 108
  %v3151 = vpop.permute.xlu0 %3150
  %v3152 = vsel %vm382, %v3141, %v3143
  %v3153 = vsel %vm382, %v3143, %v3145
  %v3154 = vsel %vm382, %v3147, %v3149
  %v3155 = vsel %vm382, %v3149, %v3151
  %3162 = vst [vmem:[#allocation3 + $0xf0] sm:$0xff] %v3152
  %3163 = vst [vmem:[#allocation3 + $0xf8] sm:$0xff] %v3153
  %3164 = vst.msk [vmem:[#allocation3 + $0x100] sm:$0xff] %vm189, %v3145
  %3165 = vst [vmem:[#allocation3 + $0x108] sm:$0xff] %v3154
  %3166 = vst [vmem:[#allocation3 + $0x110] sm:$0xff] %v3155
  %3167 = vst.msk [vmem:[#allocation3 + $0x118] sm:$0xff] %vm189, %v3151
  %v3168 = vld [vmem:[#allocation2] sm:$0xff]
  %v3169 = vld [vmem:[#allocation2 + $0x8] sm:$0xff]
  %v3170 = vld [vmem:[#allocation2 + $0x10] sm:$0xff]
  %v3171 = vld [vmem:[#allocation2 + $0x18] sm:$0xff]
  %v3172 = vld [vmem:[#allocation2 + $0x20] sm:$0xff]
  %v3173 = vld [vmem:[#allocation2 + $0x28] sm:$0xff]
  %3180 = vrot.lane.b32.xlu0 %v3168, 92
  %v3181 = vpop.permute.xlu0 %3180
  %3182 = vrot.lane.b32.xlu0 %v3169, 92
  %v3183 = vpop.permute.xlu0 %3182
  %3184 = vrot.lane.b32.xlu0 %v3170, 92
  %v3185 = vpop.permute.xlu0 %3184
  %3186 = vrot.lane.b32.xlu0 %v3171, 92
  %v3187 = vpop.permute.xlu0 %3186
  %3188 = vrot.lane.b32.xlu0 %v3172, 92
  %v3189 = vpop.permute.xlu0 %3188
  %3190 = vrot.lane.b32.xlu0 %v3173, 92
  %v3191 = vpop.permute.xlu0 %3190
  %v3192 = vsel %vm423, %v3181, %v3183
  %v3193 = vsel %vm423, %v3183, %v3185
  %v3194 = vsel %vm423, %v3187, %v3189
  %v3195 = vsel %vm423, %v3189, %v3191
  %3202 = vst [vmem:[#allocation3 + $0x120] sm:$0xff] %v3192
  %3203 = vst [vmem:[#allocation3 + $0x128] sm:$0xff] %v3193
  %3204 = vst.msk [vmem:[#allocation3 + $0x130] sm:$0xff] %vm189, %v3185
  %3205 = vst [vmem:[#allocation3 + $0x138] sm:$0xff] %v3194
  %3206 = vst [vmem:[#allocation3 + $0x140] sm:$0xff] %v3195
  %3207 = vst.msk [vmem:[#allocation3 + $0x148] sm:$0xff] %vm189, %v3191
  %v3208 = vld [vmem:[#allocation2] sm:$0xff]
  %v3209 = vld [vmem:[#allocation2 + $0x8] sm:$0xff]
  %v3210 = vld [vmem:[#allocation2 + $0x10] sm:$0xff]
  %v3211 = vld [vmem:[#allocation2 + $0x18] sm:$0xff]
  %v3212 = vld [vmem:[#allocation2 + $0x20] sm:$0xff]
  %v3213 = vld [vmem:[#allocation2 + $0x28] sm:$0xff]
  %3220 = vrot.lane.b32.xlu0 %v3208, 91
  %v3221 = vpop.permute.xlu0 %3220
  %3222 = vrot.lane.b32.xlu0 %v3209, 91
  %v3223 = vpop.permute.xlu0 %3222
  %3224 = vrot.lane.b32.xlu0 %v3210, 91
  %v3225 = vpop.permute.xlu0 %3224
  %3226 = vrot.lane.b32.xlu0 %v3211, 91
  %v3227 = vpop.permute.xlu0 %3226
  %3228 = vrot.lane.b32.xlu0 %v3212, 91
  %v3229 = vpop.permute.xlu0 %3228
  %3230 = vrot.lane.b32.xlu0 %v3213, 91
  %v3231 = vpop.permute.xlu0 %3230
  %v3232 = vsel %vm464, %v3221, %v3223
  %v3233 = vsel %vm464, %v3223, %v3225
  %v3234 = vsel %vm464, %v3227, %v3229
  %v3235 = vsel %vm464, %v3229, %v3231
  %3242 = vst [vmem:[#allocation3 + $0x150] sm:$0xff] %v3232
  %3243 = vst [vmem:[#allocation3 + $0x158] sm:$0xff] %v3233
  %3244 = vst.msk [vmem:[#allocation3 + $0x160] sm:$0xff] %vm189, %v3225
  %3245 = vst [vmem:[#allocation3 + $0x168] sm:$0xff] %v3234
  %3246 = vst [vmem:[#allocation3 + $0x170] sm:$0xff] %v3235
  %3247 = vst.msk [vmem:[#allocation3 + $0x178] sm:$0xff] %vm189, %v3231
  %v3248 = vld [vmem:[#allocation2] sm:$0xff]
  %v3249 = vld [vmem:[#allocation2 + $0x8] sm:$0xff]
  %v3250 = vld [vmem:[#allocation2 + $0x10] sm:$0xff]
  %v3251 = vld [vmem:[#allocation2 + $0x18] sm:$0xff]
  %v3252 = vld [vmem:[#allocation2 + $0x20] sm:$0xff]
  %v3253 = vld [vmem:[#allocation2 + $0x28] sm:$0xff]
  %3260 = vrot.lane.b32.xlu0 %v3248, 90
  %v3261 = vpop.permute.xlu0 %3260
  %3262 = vrot.lane.b32.xlu0 %v3249, 90
  %v3263 = vpop.permute.xlu0 %3262
  %3264 = vrot.lane.b32.xlu0 %v3250, 90
  %v3265 = vpop.permute.xlu0 %3264
  %3266 = vrot.lane.b32.xlu0 %v3251, 90
  %v3267 = vpop.permute.xlu0 %3266
  %3268 = vrot.lane.b32.xlu0 %v3252, 90
  %v3269 = vpop.permute.xlu0 %3268
  %3270 = vrot.lane.b32.xlu0 %v3253, 90
  %v3271 = vpop.permute.xlu0 %3270
  %v3272 = vsel %vm505, %v3261, %v3263
  %v3273 = vsel %vm505, %v3263, %v3265
  %v3274 = vsel %vm505, %v3267, %v3269
  %v3275 = vsel %vm505, %v3269, %v3271
  %3282 = vst [vmem:[#allocation3 + $0x180] sm:$0xff] %v3272
  %3283 = vst [vmem:[#allocation3 + $0x188] sm:$0xff] %v3273
  %3284 = vst.msk [vmem:[#allocation3 + $0x190] sm:$0xff] %vm189, %v3265
  %3285 = vst [vmem:[#allocation3 + $0x198] sm:$0xff] %v3274
  %3286 = vst [vmem:[#allocation3 + $0x1a0] sm:$0xff] %v3275
  %3287 = vst.msk [vmem:[#allocation3 + $0x1a8] sm:$0xff] %vm189, %v3271
  %v3288 = vld [vmem:[#allocation3] sm:$0xff]
  %v3289 = vld [vmem:[#allocation3 + $0x8] sm:$0xff]
  %v3290 = vld [vmem:[#allocation3 + $0x10] sm:$0xff]
  %v3291 = vld [vmem:[#allocation3 + $0x18] sm:$0xff]
  %v3292 = vld [vmem:[#allocation3 + $0x20] sm:$0xff]
  %v3293 = vld [vmem:[#allocation3 + $0x28] sm:$0xff]
  %v3294 = vld [vmem:[#allocation3 + $0x30] sm:$0xff]
  %v3295 = vld [vmem:[#allocation3 + $0x38] sm:$0xff]
  %v3296 = vld [vmem:[#allocation3 + $0x40] sm:$0xff]
  %v3297 = vld [vmem:[#allocation3 + $0x48] sm:$0xff]
  %v3298 = vld [vmem:[#allocation3 + $0x50] sm:$0xff]
  %v3299 = vld [vmem:[#allocation3 + $0x58] sm:$0xff]
  %v3300 = vld [vmem:[#allocation3 + $0x60] sm:$0xff]
  %v3301 = vld [vmem:[#allocation3 + $0x68] sm:$0xff]
  %v3302 = vld [vmem:[#allocation3 + $0x70] sm:$0xff]
  %v3303 = vld [vmem:[#allocation3 + $0x78] sm:$0xff]
  %v3304 = vld [vmem:[#allocation3 + $0x80] sm:$0xff]
  %v3305 = vld [vmem:[#allocation3 + $0x88] sm:$0xff]
  %v3306 = vld [vmem:[#allocation3 + $0x90] sm:$0xff]
  %v3307 = vld [vmem:[#allocation3 + $0x98] sm:$0xff]
  %v3308 = vld [vmem:[#allocation3 + $0xa0] sm:$0xff]
  %v3309 = vld [vmem:[#allocation3 + $0xa8] sm:$0xff]
  %v3310 = vld [vmem:[#allocation3 + $0xb0] sm:$0xff]
  %v3311 = vld [vmem:[#allocation3 + $0xb8] sm:$0xff]
  %v3312 = vld [vmem:[#allocation3 + $0xc0] sm:$0xff]
  %v3313 = vld [vmem:[#allocation3 + $0xc8] sm:$0xff]
  %v3314 = vld [vmem:[#allocation3 + $0xd0] sm:$0xff]
  %v3315 = vld [vmem:[#allocation3 + $0xd8] sm:$0xff]
  %v3316 = vld [vmem:[#allocation3 + $0xe0] sm:$0xff]
  %v3317 = vld [vmem:[#allocation3 + $0xe8] sm:$0xff]
  %v3318 = vld [vmem:[#allocation3 + $0xf0] sm:$0xff]
  %v3319 = vld [vmem:[#allocation3 + $0xf8] sm:$0xff]
  %v3320 = vld [vmem:[#allocation3 + $0x100] sm:$0xff]
  %v3321 = vld [vmem:[#allocation3 + $0x108] sm:$0xff]
  %v3322 = vld [vmem:[#allocation3 + $0x110] sm:$0xff]
  %v3323 = vld [vmem:[#allocation3 + $0x118] sm:$0xff]
  %v3324 = vld [vmem:[#allocation3 + $0x120] sm:$0xff]
  %v3325 = vld [vmem:[#allocation3 + $0x128] sm:$0xff]
  %v3326 = vld [vmem:[#allocation3 + $0x130] sm:$0xff]
  %v3327 = vld [vmem:[#allocation3 + $0x138] sm:$0xff]
  %v3328 = vld [vmem:[#allocation3 + $0x140] sm:$0xff]
  %v3329 = vld [vmem:[#allocation3 + $0x148] sm:$0xff]
  %v3330 = vld [vmem:[#allocation3 + $0x150] sm:$0xff]
  %v3331 = vld [vmem:[#allocation3 + $0x158] sm:$0xff]
  %v3332 = vld [vmem:[#allocation3 + $0x160] sm:$0xff]
  %v3333 = vld [vmem:[#allocation3 + $0x168] sm:$0xff]
  %v3334 = vld [vmem:[#allocation3 + $0x170] sm:$0xff]
  %v3335 = vld [vmem:[#allocation3 + $0x178] sm:$0xff]
  %v3336 = vld [vmem:[#allocation3 + $0x180] sm:$0xff]
  %v3337 = vld [vmem:[#allocation3 + $0x188] sm:$0xff]
  %v3338 = vld [vmem:[#allocation3 + $0x190] sm:$0xff]
  %v3339 = vld [vmem:[#allocation3 + $0x198] sm:$0xff]
  %v3340 = vld [vmem:[#allocation3 + $0x1a0] sm:$0xff]
  %v3341 = vld [vmem:[#allocation3 + $0x1a8] sm:$0xff]
  %3343 = vset.pattern.permute.xlu0 0
  %3344 = vperm.xlu0 %3343, %v2952
  %v3345 = vpop.permute.xlu0 %3344
  %3348 = vset.pattern.permute.xlu0 0
  %3349 = vperm.xlu0 %3348, %v2953
  %v3350 = vpop.permute.xlu0 %3349
  %3353 = vset.pattern.permute.xlu0 0
  %3354 = vperm.xlu0 %3353, %v2954
  %v3355 = vpop.permute.xlu0 %3354
  %3358 = vset.pattern.permute.xlu0 0
  %3359 = vperm.xlu0 %3358, %v2955
  %v3360 = vpop.permute.xlu0 %3359
  %v3370 = vunpack.c.l.b16 %v2943
  %v3371 = vunpack.c.h.b16 %v2943
  %v3372 = vunpack.c.l.b16 %v2944
  %v3373 = vunpack.c.l.b16 %v2945
  %v3374 = vunpack.c.h.b16 %v2945
  %v3375 = vunpack.c.l.b16 %v2946
  %v3376 = vunpack.c.l.b16 %v2947
  %v3377 = vunpack.c.h.b16 %v2947
  %v3378 = vunpack.c.l.b16 %v2948
  %v3379 = vunpack.c.l.b16 %v2949
  %v3380 = vunpack.c.h.b16 %v2949
  %v3381 = vunpack.c.l.b16 %v2950
  %v3382 = vpack.c.b16 %v3373, %v3370
  %v3383 = vpack.c.b16 %v3374, %v3371
  %v3384 = vpack.c.b16 %v3375, %v3372
  %v3385 = vpack.c.b16 %v3379, %v3376
  %v3386 = vpack.c.b16 %v3380, %v3377
  %v3387 = vpack.c.b16 %v3381, %v3378
  %v3393 = vsel %vm189, %v3384, 0
  %v3396 = vsel %vm189, %v3387, 0
  %3398 = vmatprep.subr.bf16.mxu0 %v3289
  %3399 = vmatpush1.bf16.msra.mxu0 %v3288
  %3400 = vmatprep.subr.bf16.mxu0 %v3292
  %3401 = vmatpush1.bf16.msra.mxu0 %v3291
  %3402 = vmatprep.subr.bf16.mxu0 %v3295
  %3403 = vmatpush1.bf16.msra.mxu0 %v3294
  %3404 = vmatprep.subr.bf16.mxu0 %v3298
  %3405 = vmatpush1.bf16.msra.mxu0 %v3297
  %3406 = vmatprep.subr.bf16.mxu0 %v3301
  %3407 = vmatpush1.bf16.msra.mxu0 %v3300
  %3408 = vmatprep.subr.bf16.mxu0 %v3304
  %3409 = vmatpush1.bf16.msra.mxu0 %v3303
  %3410 = vmatprep.subr.bf16.mxu0 %v3307
  %3411 = vmatpush1.bf16.msra.mxu0 %v3306
  %3412 = vmatprep.subr.bf16.mxu0 %v3310
  %3413 = vmatpush1.bf16.msra.mxu0 %v3309
  %3414 = vmatprep.subr.bf16.mxu0 %v3313
  %3415 = vmatpush1.bf16.msra.mxu0 %v3312
  %3416 = vmatprep.subr.bf16.mxu0 %v3316
  %3417 = vmatpush1.bf16.msra.mxu0 %v3315
  %3418 = vmatprep.subr.bf16.mxu0 %v3319
  %3419 = vmatpush1.bf16.msra.mxu0 %v3318
  %3420 = vmatprep.subr.bf16.mxu0 %v3322
  %3421 = vmatpush1.bf16.msra.mxu0 %v3321
  %3422 = vmatprep.subr.bf16.mxu0 %v3325
  %3423 = vmatpush1.bf16.msra.mxu0 %v3324
  %3424 = vmatprep.subr.bf16.mxu0 %v3328
  %3425 = vmatpush1.bf16.msra.mxu0 %v3327
  %3426 = vmatprep.subr.bf16.mxu0 %v3331
  %3427 = vmatpush1.bf16.msra.mxu0 %v3330
  %3428 = vmatprep.subr.bf16.mxu0 %v3334
  %3429 = vmatpush1.bf16.msra.mxu0 %v3333
  %3430 = vmatprep.mubr.bf16.mxu0 %v3383
  %3431 = vmatmul.mubr.bf16.gmra.mrb[0].mxu0 %v3382
  %v3432 = vpop.f32.mrb[0].mxu0
  %v3433 = vadd.f32 %v3345, %v3432
  %v3434 = vpop.f32.mrb[0].mxu0
  %v3435 = vadd.f32 %v3345, %v3434
  %v3436 = vpop.f32.mrb[0].mxu0
  %v3437 = vadd.f32 %v3350, %v3436
  %v3438 = vpop.f32.mrb[0].mxu0
  %v3439 = vadd.f32 %v3350, %v3438
  %3440 = vmatprep.mubr.bf16.mxu0 %v3386
  %3441 = vmatmul.mubr.bf16.gmra.mrb[0].mxu0 %v3385
  %v3442 = vpop.f32.mrb[0].mxu0
  %v3443 = vadd.f32 %v3355, %v3442
  %v3444 = vpop.f32.mrb[0].mxu0
  %v3445 = vadd.f32 %v3355, %v3444
  %v3446 = vpop.f32.mrb[0].mxu0
  %v3447 = vadd.f32 %v3360, %v3446
  %v3448 = vpop.f32.mrb[0].mxu0
  %v3449 = vadd.f32 %v3360, %v3448
  %3450 = vdwg.mxu0
  %3451 = vmatprep.subr.bf16.mxu0 %v3337
  %3452 = vmatpush1.bf16.msra.mxu0 %v3336
  %3453 = vmatprep.subr.bf16.mxu0 %v3340
  %3454 = vmatpush1.bf16.msra.mxu0 %v3339
  %3455 = vmatprep.subr.bf16.mxu0 0
  %3456 = vmatpush1.bf16.msra.mxu0 0
  %3457 = vmatprep.subr.bf16.mxu0 0
  %3458 = vmatpush1.bf16.msra.mxu0 0
  %3459 = vmatprep.subr.bf16.mxu0 0
  %3460 = vmatpush1.bf16.msra.mxu0 0
  %3461 = vmatprep.subr.bf16.mxu0 0
  %3462 = vmatpush1.bf16.msra.mxu0 0
  %3463 = vmatprep.subr.bf16.mxu0 0
  %3464 = vmatpush1.bf16.msra.mxu0 0
  %3465 = vmatprep.subr.bf16.mxu0 0
  %3466 = vmatpush1.bf16.msra.mxu0 0
  %3467 = vmatprep.subr.bf16.mxu0 0
  %3468 = vmatpush1.bf16.msra.mxu0 0
  %3469 = vmatprep.subr.bf16.mxu0 0
  %3470 = vmatpush1.bf16.msra.mxu0 0
  %3471 = vmatprep.subr.bf16.mxu0 0
  %3472 = vmatpush1.bf16.msra.mxu0 0
  %3473 = vmatprep.subr.bf16.mxu0 0
  %3474 = vmatpush1.bf16.msra.mxu0 0
  %3475 = vmatprep.subr.bf16.mxu0 0
  %3476 = vmatpush1.bf16.msra.mxu0 0
  %3477 = vmatprep.subr.bf16.mxu0 0
  %3478 = vmatpush1.bf16.msra.mxu0 0
  %3479 = vmatprep.subr.bf16.mxu0 0
  %3480 = vmatpush1.bf16.msra.mxu0 0
  %3481 = vmatprep.subr.bf16.mxu0 0
  %3482 = vmatpush1.bf16.msra.mxu0 0
  %3483 = vmatprep.mubr.bf16.mxu0 0
  %3484 = vmatmul.mubr.bf16.gmra.mrb[0].mxu0 %v3393
  %v3485 = vpop.f32.mrb[0].mxu0
  %v3486 = vadd.f32 %v3433, %v3485
  %v3487 = vpop.f32.mrb[0].mxu0
  %v3488 = vadd.f32 %v3435, %v3487
  %v3489 = vpop.f32.mrb[0].mxu0
  %v3490 = vadd.f32 %v3437, %v3489
  %v3491 = vpop.f32.mrb[0].mxu0
  %v3492 = vadd.f32 %v3439, %v3491
  %3493 = vmatprep.mubr.bf16.mxu0 0
  %3494 = vmatmul.mubr.bf16.gmra.mrb[0].mxu0 %v3396
  %v3495 = vpop.f32.mrb[0].mxu0
  %v3496 = vadd.f32 %v3443, %v3495
  %v3497 = vpop.f32.mrb[0].mxu0
  %v3498 = vadd.f32 %v3445, %v3497
  %v3499 = vpop.f32.mrb[0].mxu0
  %v3500 = vadd.f32 %v3447, %v3499
  %v3501 = vpop.f32.mrb[0].mxu0
  %v3502 = vadd.f32 %v3449, %v3501
  %3503 = vdwg.mxu0
  %3504 = vmatprep.subr.bf16.mxu0 0
  %3505 = vmatpush1.bf16.msra.mxu0 %v3290
  %3506 = vmatprep.subr.bf16.mxu0 0
  %3507 = vmatpush1.bf16.msra.mxu0 %v3293
  %3508 = vmatprep.subr.bf16.mxu0 0
  %3509 = vmatpush1.bf16.msra.mxu0 %v3296
  %3510 = vmatprep.subr.bf16.mxu0 0
  %3511 = vmatpush1.bf16.msra.mxu0 %v3299
  %3512 = vmatprep.subr.bf16.mxu0 0
  %3513 = vmatpush1.bf16.msra.mxu0 %v3302
  %3514 = vmatprep.subr.bf16.mxu0 0
  %3515 = vmatpush1.bf16.msra.mxu0 %v3305
  %3516 = vmatprep.subr.bf16.mxu0 0
  %3517 = vmatpush1.bf16.msra.mxu0 %v3308
  %3518 = vmatprep.subr.bf16.mxu0 0
  %3519 = vmatpush1.bf16.msra.mxu0 %v3311
  %3520 = vmatprep.subr.bf16.mxu0 0
  %3521 = vmatpush1.bf16.msra.mxu0 %v3314
  %3522 = vmatprep.subr.bf16.mxu0 0
  %3523 = vmatpush1.bf16.msra.mxu0 %v3317
  %3524 = vmatprep.subr.bf16.mxu0 0
  %3525 = vmatpush1.bf16.msra.mxu0 %v3320
  %3526 = vmatprep.subr.bf16.mxu0 0
  %3527 = vmatpush1.bf16.msra.mxu0 %v3323
  %3528 = vmatprep.subr.bf16.mxu0 0
  %3529 = vmatpush1.bf16.msra.mxu0 %v3326
  %3530 = vmatprep.subr.bf16.mxu0 0
  %3531 = vmatpush1.bf16.msra.mxu0 %v3329
  %3532 = vmatprep.subr.bf16.mxu0 0
  %3533 = vmatpush1.bf16.msra.mxu0 %v3332
  %3534 = vmatprep.subr.bf16.mxu0 0
  %3535 = vmatpush1.bf16.msra.mxu0 %v3335
  %3536 = vmatprep.mubr.bf16.mxu0 %v3383
  %3537 = vmatmul.mubr.bf16.gmra.mrb[0].mxu0 %v3382
  %v3538 = vpop.f32.mrb[0].mxu0
  %v3539 = vadd.f32 %v3345, %v3538
  %v3540 = vpop.f32.mrb[0].mxu0
  %v3541 = vpop.f32.mrb[0].mxu0
  %v3542 = vadd.f32 %v3350, %v3541
  %v3543 = vpop.f32.mrb[0].mxu0
  %3544 = vmatprep.mubr.bf16.mxu0 %v3386
  %3545 = vmatmul.mubr.bf16.gmra.mrb[0].mxu0 %v3385
  %v3546 = vpop.f32.mrb[0].mxu0
  %v3547 = vadd.f32 %v3355, %v3546
  %v3548 = vpop.f32.mrb[0].mxu0
  %v3549 = vpop.f32.mrb[0].mxu0
  %v3550 = vadd.f32 %v3360, %v3549
  %v3551 = vpop.f32.mrb[0].mxu0
  %3552 = vdwg.mxu0
  %3553 = vmatprep.subr.bf16.mxu0 0
  %3554 = vmatpush1.bf16.msra.mxu0 %v3338
  %3555 = vmatprep.subr.bf16.mxu0 0
  %3556 = vmatpush1.bf16.msra.mxu0 %v3341
  %3557 = vmatprep.subr.bf16.mxu0 0
  %3558 = vmatpush1.bf16.msra.mxu0 0
  %3559 = vmatprep.subr.bf16.mxu0 0
  %3560 = vmatpush1.bf16.msra.mxu0 0
  %3561 = vmatprep.subr.bf16.mxu0 0
  %3562 = vmatpush1.bf16.msra.mxu0 0
  %3563 = vmatprep.subr.bf16.mxu0 0
  %3564 = vmatpush1.bf16.msra.mxu0 0
  %3565 = vmatprep.subr.bf16.mxu0 0
  %3566 = vmatpush1.bf16.msra.mxu0 0
  %3567 = vmatprep.subr.bf16.mxu0 0
  %3568 = vmatpush1.bf16.msra.mxu0 0
  %3569 = vmatprep.subr.bf16.mxu0 0
  %3570 = vmatpush1.bf16.msra.mxu0 0
  %3571 = vmatprep.subr.bf16.mxu0 0
  %3572 = vmatpush1.bf16.msra.mxu0 0
  %3573 = vmatprep.subr.bf16.mxu0 0
  %3574 = vmatpush1.bf16.msra.mxu0 0
  %3575 = vmatprep.subr.bf16.mxu0 0
  %3576 = vmatpush1.bf16.msra.mxu0 0
  %3577 = vmatprep.subr.bf16.mxu0 0
  %3578 = vmatpush1.bf16.msra.mxu0 0
  %3579 = vmatprep.subr.bf16.mxu0 0
  %3580 = vmatpush1.bf16.msra.mxu0 0
  %3581 = vmatprep.subr.bf16.mxu0 0
  %3582 = vmatpush1.bf16.msra.mxu0 0
  %3583 = vmatprep.subr.bf16.mxu0 0
  %3584 = vmatpush1.bf16.msra.mxu0 0
  %3585 = vmatprep.mubr.bf16.mxu0 0
  %3586 = vmatmul.mubr.bf16.gmra.mrb[0].mxu0 %v3393
  %v3587 = vpop.f32.mrb[0].mxu0
  %v3588 = vadd.f32 %v3539, %v3587
  %v3589 = vpop.f32.mrb[0].mxu0
  %v3590 = vpop.f32.mrb[0].mxu0
  %v3591 = vadd.f32 %v3542, %v3590
  %v3592 = vpop.f32.mrb[0].mxu0
  %3593 = vmatprep.mubr.bf16.mxu0 0
  %3594 = vmatmul.mubr.bf16.gmra.mrb[0].mxu0 %v3396
  %v3595 = vpop.f32.mrb[0].mxu0
  %v3596 = vadd.f32 %v3547, %v3595
  %v3597 = vpop.f32.mrb[0].mxu0
  %v3598 = vpop.f32.mrb[0].mxu0
  %v3599 = vadd.f32 %v3550, %v3598
  %v3600 = vpop.f32.mrb[0].mxu0
  %3601 = vdwg.mxu0
  %v3602 = vmax.f32 %v3486, 0.0
  %v3603 = vmax.f32 %v3488, 0.0
  %v3604 = vmax.f32 %v3588, 0.0
  %v3605 = vmax.f32 %v3490, 0.0
  %v3606 = vmax.f32 %v3492, 0.0
  %v3607 = vmax.f32 %v3591, 0.0
  %v3608 = vmax.f32 %v3496, 0.0
  %v3609 = vmax.f32 %v3498, 0.0
  %v3610 = vmax.f32 %v3596, 0.0
  %v3611 = vmax.f32 %v3500, 0.0
  %v3612 = vmax.f32 %v3502, 0.0
  %v3613 = vmax.f32 %v3599, 0.0
  %v3614 = vsel %vm851, %v3602, 0.0
  %v3615 = vsel %vm852, %v3603, 0.0
  %v3616 = vsel %vm853, %v3604, 0.0
  %v3617 = vsel %vm851, %v3605, 0.0
  %v3618 = vsel %vm852, %v3606, 0.0
  %v3619 = vsel %vm853, %v3607, 0.0
  %v3620 = vsel %vm851, %v3608, 0.0
  %v3621 = vsel %vm852, %v3609, 0.0
  %v3622 = vsel %vm853, %v3610, 0.0
  %v3623 = vsel %vm851, %v3611, 0.0
  %v3624 = vsel %vm852, %v3612, 0.0
  %v3625 = vsel %vm853, %v3613, 0.0
  %3626 = vst [vmem:[%s3] sm:$0xff] %v3614
  %3627 = vst [vmem:[%s3 + $0x8] sm:$0xff] %v3615
  %3628 = vst.msk [vmem:[%s3 + $0x10] sm:$0xff] %vm189, %v3616
  %3629 = vst [vmem:[%s3 + $0x18] sm:$0xff] %v3617
  %3630 = vst [vmem:[%s3 + $0x20] sm:$0xff] %v3618
  %3631 = vst.msk [vmem:[%s3 + $0x28] sm:$0xff] %vm189, %v3619
  %3632 = vst [vmem:[%s3 + $0x30] sm:$0xff] %v3620
  %3633 = vst [vmem:[%s3 + $0x38] sm:$0xff] %v3621
  %3634 = vst.msk [vmem:[%s3 + $0x40] sm:$0xff] %vm189, %v3622
  %3635 = vst [vmem:[%s3 + $0x48] sm:$0xff] %v3623
  %3636 = vst [vmem:[%s3 + $0x50] sm:$0xff] %v3624
  %3637 = vst.msk [vmem:[%s3 + $0x58] sm:$0xff] %vm189, %v3625
  %v3638 = vld [vmem:[%s909] sm:$0xff]
  %v3639 = vld [vmem:[%s909 + $0x8] sm:$0xff]
  %v3640 = vld [vmem:[%s909 + $0x10] sm:$0xff]
  %v3641 = vld [vmem:[%s909 + $0x18] sm:$0xff]
  %v3642 = vld [vmem:[%s909 + $0x20] sm:$0xff]
  %v3643 = vld [vmem:[%s909 + $0x28] sm:$0xff]
  %3644 = vst [vmem:[#allocation3] sm:$0xff] %v3638
  %3645 = vst [vmem:[#allocation3 + $0x8] sm:$0xff] %v3639
  %3646 = vst.msk [vmem:[#allocation3 + $0x10] sm:$0xff] %vm189, %v3640
  %3647 = vst [vmem:[#allocation3 + $0x18] sm:$0xff] %v3641
  %3648 = vst [vmem:[#allocation3 + $0x20] sm:$0xff] %v3642
  %3649 = vst.msk [vmem:[#allocation3 + $0x28] sm:$0xff] %vm189, %v3643
  %v3650 = vld [vmem:[%s909] sm:$0xff]
  %v3651 = vld [vmem:[%s909 + $0x8] sm:$0xff]
  %v3652 = vld [vmem:[%s909 + $0x10] sm:$0xff]
  %v3653 = vld [vmem:[%s909 + $0x18] sm:$0xff]
  %v3654 = vld [vmem:[%s909 + $0x20] sm:$0xff]
  %v3655 = vld [vmem:[%s909 + $0x28] sm:$0xff]
  %3662 = vrot.lane.b32.xlu0 %v3650, 127
  %v3663 = vpop.permute.xlu0 %3662
  %3664 = vrot.lane.b32.xlu0 %v3651, 127
  %v3665 = vpop.permute.xlu0 %3664
  %3666 = vrot.lane.b32.xlu0 %v3652, 127
  %v3667 = vpop.permute.xlu0 %3666
  %3668 = vrot.lane.b32.xlu0 %v3653, 127
  %v3669 = vpop.permute.xlu0 %3668
  %3670 = vrot.lane.b32.xlu0 %v3654, 127
  %v3671 = vpop.permute.xlu0 %3670
  %3672 = vrot.lane.b32.xlu0 %v3655, 127
  %v3673 = vpop.permute.xlu0 %3672
  %v3674 = vsel %vm218, %v3663, %v3665
  %v3675 = vsel %vm218, %v3665, %v3667
  %v3676 = vsel %vm218, %v3669, %v3671
  %v3677 = vsel %vm218, %v3671, %v3673
  %3684 = vst [vmem:[#allocation3 + $0x30] sm:$0xff] %v3674
  %3685 = vst [vmem:[#allocation3 + $0x38] sm:$0xff] %v3675
  %3686 = vst.msk [vmem:[#allocation3 + $0x40] sm:$0xff] %vm189, %v3667
  %3687 = vst [vmem:[#allocation3 + $0x48] sm:$0xff] %v3676
  %3688 = vst [vmem:[#allocation3 + $0x50] sm:$0xff] %v3677
  %3689 = vst.msk [vmem:[#allocation3 + $0x58] sm:$0xff] %vm189, %v3673
  %v3690 = vld [vmem:[%s909] sm:$0xff]
  %v3691 = vld [vmem:[%s909 + $0x8] sm:$0xff]
  %v3692 = vld [vmem:[%s909 + $0x10] sm:$0xff]
  %v3693 = vld [vmem:[%s909 + $0x18] sm:$0xff]
  %v3694 = vld [vmem:[%s909 + $0x20] sm:$0xff]
  %v3695 = vld [vmem:[%s909 + $0x28] sm:$0xff]
  %3702 = vrot.lane.b32.xlu0 %v3690, 126
  %v3703 = vpop.permute.xlu0 %3702
  %3704 = vrot.lane.b32.xlu0 %v3691, 126
  %v3705 = vpop.permute.xlu0 %3704
  %3706 = vrot.lane.b32.xlu0 %v3692, 126
  %v3707 = vpop.permute.xlu0 %3706
  %3708 = vrot.lane.b32.xlu0 %v3693, 126
  %v3709 = vpop.permute.xlu0 %3708
  %3710 = vrot.lane.b32.xlu0 %v3694, 126
  %v3711 = vpop.permute.xlu0 %3710
  %3712 = vrot.lane.b32.xlu0 %v3695, 126
  %v3713 = vpop.permute.xlu0 %3712
  %v3714 = vsel %vm259, %v3703, %v3705
  %v3715 = vsel %vm259, %v3705, %v3707
  %v3716 = vsel %vm259, %v3709, %v3711
  %v3717 = vsel %vm259, %v3711, %v3713
  %3724 = vst [vmem:[#allocation3 + $0x60] sm:$0xff] %v3714
  %3725 = vst [vmem:[#allocation3 + $0x68] sm:$0xff] %v3715
  %3726 = vst.msk [vmem:[#allocation3 + $0x70] sm:$0xff] %vm189, %v3707
  %3727 = vst [vmem:[#allocation3 + $0x78] sm:$0xff] %v3716
  %3728 = vst [vmem:[#allocation3 + $0x80] sm:$0xff] %v3717
  %3729 = vst.msk [vmem:[#allocation3 + $0x88] sm:$0xff] %vm189, %v3713
  %v3730 = vld [vmem:[%s909] sm:$0xff]
  %v3731 = vld [vmem:[%s909 + $0x8] sm:$0xff]
  %v3732 = vld [vmem:[%s909 + $0x10] sm:$0xff]
  %v3733 = vld [vmem:[%s909 + $0x18] sm:$0xff]
  %v3734 = vld [vmem:[%s909 + $0x20] sm:$0xff]
  %v3735 = vld [vmem:[%s909 + $0x28] sm:$0xff]
  %3742 = vrot.lane.b32.xlu0 %v3730, 110
  %v3743 = vpop.permute.xlu0 %3742
  %3744 = vrot.lane.b32.xlu0 %v3731, 110
  %v3745 = vpop.permute.xlu0 %3744
  %3746 = vrot.lane.b32.xlu0 %v3732, 110
  %v3747 = vpop.permute.xlu0 %3746
  %3748 = vrot.lane.b32.xlu0 %v3733, 110
  %v3749 = vpop.permute.xlu0 %3748
  %3750 = vrot.lane.b32.xlu0 %v3734, 110
  %v3751 = vpop.permute.xlu0 %3750
  %3752 = vrot.lane.b32.xlu0 %v3735, 110
  %v3753 = vpop.permute.xlu0 %3752
  %v3754 = vsel %vm300, %v3743, %v3745
  %v3755 = vsel %vm300, %v3745, %v3747
  %v3756 = vsel %vm300, %v3749, %v3751
  %v3757 = vsel %vm300, %v3751, %v3753
  %3764 = vst [vmem:[#allocation3 + $0x90] sm:$0xff] %v3754
  %3765 = vst [vmem:[#allocation3 + $0x98] sm:$0xff] %v3755
  %3766 = vst.msk [vmem:[#allocation3 + $0xa0] sm:$0xff] %vm189, %v3747
  %3767 = vst [vmem:[#allocation3 + $0xa8] sm:$0xff] %v3756
  %3768 = vst [vmem:[#allocation3 + $0xb0] sm:$0xff] %v3757
  %3769 = vst.msk [vmem:[#allocation3 + $0xb8] sm:$0xff] %vm189, %v3753
  %v3770 = vld [vmem:[%s909] sm:$0xff]
  %v3771 = vld [vmem:[%s909 + $0x8] sm:$0xff]
  %v3772 = vld [vmem:[%s909 + $0x10] sm:$0xff]
  %v3773 = vld [vmem:[%s909 + $0x18] sm:$0xff]
  %v3774 = vld [vmem:[%s909 + $0x20] sm:$0xff]
  %v3775 = vld [vmem:[%s909 + $0x28] sm:$0xff]
  %3782 = vrot.lane.b32.xlu0 %v3770, 109
  %v3783 = vpop.permute.xlu0 %3782
  %3784 = vrot.lane.b32.xlu0 %v3771, 109
  %v3785 = vpop.permute.xlu0 %3784
  %3786 = vrot.lane.b32.xlu0 %v3772, 109
  %v3787 = vpop.permute.xlu0 %3786
  %3788 = vrot.lane.b32.xlu0 %v3773, 109
  %v3789 = vpop.permute.xlu0 %3788
  %3790 = vrot.lane.b32.xlu0 %v3774, 109
  %v3791 = vpop.permute.xlu0 %3790
  %3792 = vrot.lane.b32.xlu0 %v3775, 109
  %v3793 = vpop.permute.xlu0 %3792
  %v3794 = vsel %vm341, %v3783, %v3785
  %v3795 = vsel %vm341, %v3785, %v3787
  %v3796 = vsel %vm341, %v3789, %v3791
  %v3797 = vsel %vm341, %v3791, %v3793
  %3804 = vst [vmem:[#allocation3 + $0xc0] sm:$0xff] %v3794
  %3805 = vst [vmem:[#allocation3 + $0xc8] sm:$0xff] %v3795
  %3806 = vst.msk [vmem:[#allocation3 + $0xd0] sm:$0xff] %vm189, %v3787
  %3807 = vst [vmem:[#allocation3 + $0xd8] sm:$0xff] %v3796
  %3808 = vst [vmem:[#allocation3 + $0xe0] sm:$0xff] %v3797
  %3809 = vst.msk [vmem:[#allocation3 + $0xe8] sm:$0xff] %vm189, %v3793
  %v3810 = vld [vmem:[%s909] sm:$0xff]
  %v3811 = vld [vmem:[%s909 + $0x8] sm:$0xff]
  %v3812 = vld [vmem:[%s909 + $0x10] sm:$0xff]
  %v3813 = vld [vmem:[%s909 + $0x18] sm:$0xff]
  %v3814 = vld [vmem:[%s909 + $0x20] sm:$0xff]
  %v3815 = vld [vmem:[%s909 + $0x28] sm:$0xff]
  %3822 = vrot.lane.b32.xlu0 %v3810, 108
  %v3823 = vpop.permute.xlu0 %3822
  %3824 = vrot.lane.b32.xlu0 %v3811, 108
  %v3825 = vpop.permute.xlu0 %3824
  %3826 = vrot.lane.b32.xlu0 %v3812, 108
  %v3827 = vpop.permute.xlu0 %3826
  %3828 = vrot.lane.b32.xlu0 %v3813, 108
  %v3829 = vpop.permute.xlu0 %3828
  %3830 = vrot.lane.b32.xlu0 %v3814, 108
  %v3831 = vpop.permute.xlu0 %3830
  %3832 = vrot.lane.b32.xlu0 %v3815, 108
  %v3833 = vpop.permute.xlu0 %3832
  %v3834 = vsel %vm382, %v3823, %v3825
  %v3835 = vsel %vm382, %v3825, %v3827
  %v3836 = vsel %vm382, %v3829, %v3831
  %v3837 = vsel %vm382, %v3831, %v3833
  %3844 = vst [vmem:[#allocation3 + $0xf0] sm:$0xff] %v3834
  %3845 = vst [vmem:[#allocation3 + $0xf8] sm:$0xff] %v3835
  %3846 = vst.msk [vmem:[#allocation3 + $0x100] sm:$0xff] %vm189, %v3827
  %3847 = vst [vmem:[#allocation3 + $0x108] sm:$0xff] %v3836
  %3848 = vst [vmem:[#allocation3 + $0x110] sm:$0xff] %v3837
  %3849 = vst.msk [vmem:[#allocation3 + $0x118] sm:$0xff] %vm189, %v3833
  %v3850 = vld [vmem:[%s909] sm:$0xff]
  %v3851 = vld [vmem:[%s909 + $0x8] sm:$0xff]
  %v3852 = vld [vmem:[%s909 + $0x10] sm:$0xff]
  %v3853 = vld [vmem:[%s909 + $0x18] sm:$0xff]
  %v3854 = vld [vmem:[%s909 + $0x20] sm:$0xff]
  %v3855 = vld [vmem:[%s909 + $0x28] sm:$0xff]
  %3862 = vrot.lane.b32.xlu0 %v3850, 92
  %v3863 = vpop.permute.xlu0 %3862
  %3864 = vrot.lane.b32.xlu0 %v3851, 92
  %v3865 = vpop.permute.xlu0 %3864
  %3866 = vrot.lane.b32.xlu0 %v3852, 92
  %v3867 = vpop.permute.xlu0 %3866
  %3868 = vrot.lane.b32.xlu0 %v3853, 92
  %v3869 = vpop.permute.xlu0 %3868
  %3870 = vrot.lane.b32.xlu0 %v3854, 92
  %v3871 = vpop.permute.xlu0 %3870
  %3872 = vrot.lane.b32.xlu0 %v3855, 92
  %v3873 = vpop.permute.xlu0 %3872
  %v3874 = vsel %vm423, %v3863, %v3865
  %v3875 = vsel %vm423, %v3865, %v3867
  %v3876 = vsel %vm423, %v3869, %v3871
  %v3877 = vsel %vm423, %v3871, %v3873
  %3884 = vst [vmem:[#allocation3 + $0x120] sm:$0xff] %v3874
  %3885 = vst [vmem:[#allocation3 + $0x128] sm:$0xff] %v3875
  %3886 = vst.msk [vmem:[#allocation3 + $0x130] sm:$0xff] %vm189, %v3867
  %3887 = vst [vmem:[#allocation3 + $0x138] sm:$0xff] %v3876
  %3888 = vst [vmem:[#allocation3 + $0x140] sm:$0xff] %v3877
  %3889 = vst.msk [vmem:[#allocation3 + $0x148] sm:$0xff] %vm189, %v3873
  %v3890 = vld [vmem:[%s909] sm:$0xff]
  %v3891 = vld [vmem:[%s909 + $0x8] sm:$0xff]
  %v3892 = vld [vmem:[%s909 + $0x10] sm:$0xff]
  %v3893 = vld [vmem:[%s909 + $0x18] sm:$0xff]
  %v3894 = vld [vmem:[%s909 + $0x20] sm:$0xff]
  %v3895 = vld [vmem:[%s909 + $0x28] sm:$0xff]
  %3902 = vrot.lane.b32.xlu0 %v3890, 91
  %v3903 = vpop.permute.xlu0 %3902
  %3904 = vrot.lane.b32.xlu0 %v3891, 91
  %v3905 = vpop.permute.xlu0 %3904
  %3906 = vrot.lane.b32.xlu0 %v3892, 91
  %v3907 = vpop.permute.xlu0 %3906
  %3908 = vrot.lane.b32.xlu0 %v3893, 91
  %v3909 = vpop.permute.xlu0 %3908
  %3910 = vrot.lane.b32.xlu0 %v3894, 91
  %v3911 = vpop.permute.xlu0 %3910
  %3912 = vrot.lane.b32.xlu0 %v3895, 91
  %v3913 = vpop.permute.xlu0 %3912
  %v3914 = vsel %vm464, %v3903, %v3905
  %v3915 = vsel %vm464, %v3905, %v3907
  %v3916 = vsel %vm464, %v3909, %v3911
  %v3917 = vsel %vm464, %v3911, %v3913
  %3924 = vst [vmem:[#allocation3 + $0x150] sm:$0xff] %v3914
  %3925 = vst [vmem:[#allocation3 + $0x158] sm:$0xff] %v3915
  %3926 = vst.msk [vmem:[#allocation3 + $0x160] sm:$0xff] %vm189, %v3907
  %3927 = vst [vmem:[#allocation3 + $0x168] sm:$0xff] %v3916
  %3928 = vst [vmem:[#allocation3 + $0x170] sm:$0xff] %v3917
  %3929 = vst.msk [vmem:[#allocation3 + $0x178] sm:$0xff] %vm189, %v3913
  %v3930 = vld [vmem:[%s909] sm:$0xff]
  %v3931 = vld [vmem:[%s909 + $0x8] sm:$0xff]
  %v3932 = vld [vmem:[%s909 + $0x10] sm:$0xff]
  %v3933 = vld [vmem:[%s909 + $0x18] sm:$0xff]
  %v3934 = vld [vmem:[%s909 + $0x20] sm:$0xff]
  %v3935 = vld [vmem:[%s909 + $0x28] sm:$0xff]
  %3942 = vrot.lane.b32.xlu0 %v3930, 90
  %v3943 = vpop.permute.xlu0 %3942
  %3944 = vrot.lane.b32.xlu0 %v3931, 90
  %v3945 = vpop.permute.xlu0 %3944
  %3946 = vrot.lane.b32.xlu0 %v3932, 90
  %v3947 = vpop.permute.xlu0 %3946
  %3948 = vrot.lane.b32.xlu0 %v3933, 90
  %v3949 = vpop.permute.xlu0 %3948
  %3950 = vrot.lane.b32.xlu0 %v3934, 90
  %v3951 = vpop.permute.xlu0 %3950
  %3952 = vrot.lane.b32.xlu0 %v3935, 90
  %v3953 = vpop.permute.xlu0 %3952
  %v3954 = vsel %vm505, %v3943, %v3945
  %v3955 = vsel %vm505, %v3945, %v3947
  %v3956 = vsel %vm505, %v3949, %v3951
  %v3957 = vsel %vm505, %v3951, %v3953
  %3964 = vst [vmem:[#allocation3 + $0x180] sm:$0xff] %v3954
  %3965 = vst [vmem:[#allocation3 + $0x188] sm:$0xff] %v3955
  %3966 = vst.msk [vmem:[#allocation3 + $0x190] sm:$0xff] %vm189, %v3947
  %3967 = vst [vmem:[#allocation3 + $0x198] sm:$0xff] %v3956
  %3968 = vst [vmem:[#allocation3 + $0x1a0] sm:$0xff] %v3957
  %3969 = vst.msk [vmem:[#allocation3 + $0x1a8] sm:$0xff] %vm189, %v3953
  %v3970 = vld [vmem:[#allocation3] sm:$0xff]
  %v3971 = vld [vmem:[#allocation3 + $0x8] sm:$0xff]
  %v3972 = vld [vmem:[#allocation3 + $0x10] sm:$0xff]
  %v3973 = vld [vmem:[#allocation3 + $0x18] sm:$0xff]
  %v3974 = vld [vmem:[#allocation3 + $0x20] sm:$0xff]
  %v3975 = vld [vmem:[#allocation3 + $0x28] sm:$0xff]
  %v3976 = vld [vmem:[#allocation3 + $0x30] sm:$0xff]
  %v3977 = vld [vmem:[#allocation3 + $0x38] sm:$0xff]
  %v3978 = vld [vmem:[#allocation3 + $0x40] sm:$0xff]
  %v3979 = vld [vmem:[#allocation3 + $0x48] sm:$0xff]
  %v3980 = vld [vmem:[#allocation3 + $0x50] sm:$0xff]
  %v3981 = vld [vmem:[#allocation3 + $0x58] sm:$0xff]
  %v3982 = vld [vmem:[#allocation3 + $0x60] sm:$0xff]
  %v3983 = vld [vmem:[#allocation3 + $0x68] sm:$0xff]
  %v3984 = vld [vmem:[#allocation3 + $0x70] sm:$0xff]
  %v3985 = vld [vmem:[#allocation3 + $0x78] sm:$0xff]
  %v3986 = vld [vmem:[#allocation3 + $0x80] sm:$0xff]
  %v3987 = vld [vmem:[#allocation3 + $0x88] sm:$0xff]
  %v3988 = vld [vmem:[#allocation3 + $0x90] sm:$0xff]
  %v3989 = vld [vmem:[#allocation3 + $0x98] sm:$0xff]
  %v3990 = vld [vmem:[#allocation3 + $0xa0] sm:$0xff]
  %v3991 = vld [vmem:[#allocation3 + $0xa8] sm:$0xff]
  %v3992 = vld [vmem:[#allocation3 + $0xb0] sm:$0xff]
  %v3993 = vld [vmem:[#allocation3 + $0xb8] sm:$0xff]
  %v3994 = vld [vmem:[#allocation3 + $0xc0] sm:$0xff]
  %v3995 = vld [vmem:[#allocation3 + $0xc8] sm:$0xff]
  %v3996 = vld [vmem:[#allocation3 + $0xd0] sm:$0xff]
  %v3997 = vld [vmem:[#allocation3 + $0xd8] sm:$0xff]
  %v3998 = vld [vmem:[#allocation3 + $0xe0] sm:$0xff]
  %v3999 = vld [vmem:[#allocation3 + $0xe8] sm:$0xff]
  %v4000 = vld [vmem:[#allocation3 + $0xf0] sm:$0xff]
  %v4001 = vld [vmem:[#allocation3 + $0xf8] sm:$0xff]
  %v4002 = vld [vmem:[#allocation3 + $0x100] sm:$0xff]
  %v4003 = vld [vmem:[#allocation3 + $0x108] sm:$0xff]
  %v4004 = vld [vmem:[#allocation3 + $0x110] sm:$0xff]
  %v4005 = vld [vmem:[#allocation3 + $0x118] sm:$0xff]
  %v4006 = vld [vmem:[#allocation3 + $0x120] sm:$0xff]
  %v4007 = vld [vmem:[#allocation3 + $0x128] sm:$0xff]
  %v4008 = vld [vmem:[#allocation3 + $0x130] sm:$0xff]
  %v4009 = vld [vmem:[#allocation3 + $0x138] sm:$0xff]
  %v4010 = vld [vmem:[#allocation3 + $0x140] sm:$0xff]
  %v4011 = vld [vmem:[#allocation3 + $0x148] sm:$0xff]
  %v4012 = vld [vmem:[#allocation3 + $0x150] sm:$0xff]
  %v4013 = vld [vmem:[#allocation3 + $0x158] sm:$0xff]
  %v4014 = vld [vmem:[#allocation3 + $0x160] sm:$0xff]
  %v4015 = vld [vmem:[#allocation3 + $0x168] sm:$0xff]
  %v4016 = vld [vmem:[#allocation3 + $0x170] sm:$0xff]
  %v4017 = vld [vmem:[#allocation3 + $0x178] sm:$0xff]
  %v4018 = vld [vmem:[#allocation3 + $0x180] sm:$0xff]
  %v4019 = vld [vmem:[#allocation3 + $0x188] sm:$0xff]
  %v4020 = vld [vmem:[#allocation3 + $0x190] sm:$0xff]
  %v4021 = vld [vmem:[#allocation3 + $0x198] sm:$0xff]
  %v4022 = vld [vmem:[#allocation3 + $0x1a0] sm:$0xff]
  %v4023 = vld [vmem:[#allocation3 + $0x1a8] sm:$0xff]
  %4024 = vmatprep.subr.bf16.mxu0 %v3971
  %4025 = vmatpush1.bf16.msra.mxu0 %v3970
  %4026 = vmatprep.subr.bf16.mxu0 %v3974
  %4027 = vmatpush1.bf16.msra.mxu0 %v3973
  %4028 = vmatprep.subr.bf16.mxu0 %v3977
  %4029 = vmatpush1.bf16.msra.mxu0 %v3976
  %4030 = vmatprep.subr.bf16.mxu0 %v3980
  %4031 = vmatpush1.bf16.msra.mxu0 %v3979
  %4032 = vmatprep.subr.bf16.mxu0 %v3983
  %4033 = vmatpush1.bf16.msra.mxu0 %v3982
  %4034 = vmatprep.subr.bf16.mxu0 %v3986
  %4035 = vmatpush1.bf16.msra.mxu0 %v3985
  %4036 = vmatprep.subr.bf16.mxu0 %v3989
  %4037 = vmatpush1.bf16.msra.mxu0 %v3988
  %4038 = vmatprep.subr.bf16.mxu0 %v3992
  %4039 = vmatpush1.bf16.msra.mxu0 %v3991
  %4040 = vmatprep.subr.bf16.mxu0 %v3995
  %4041 = vmatpush1.bf16.msra.mxu0 %v3994
  %4042 = vmatprep.subr.bf16.mxu0 %v3998
  %4043 = vmatpush1.bf16.msra.mxu0 %v3997
  %4044 = vmatprep.subr.bf16.mxu0 %v4001
  %4045 = vmatpush1.bf16.msra.mxu0 %v4000
  %4046 = vmatprep.subr.bf16.mxu0 %v4004
  %4047 = vmatpush1.bf16.msra.mxu0 %v4003
  %4048 = vmatprep.subr.bf16.mxu0 %v4007
  %4049 = vmatpush1.bf16.msra.mxu0 %v4006
  %4050 = vmatprep.subr.bf16.mxu0 %v4010
  %4051 = vmatpush1.bf16.msra.mxu0 %v4009
  %4052 = vmatprep.subr.bf16.mxu0 %v4013
  %4053 = vmatpush1.bf16.msra.mxu0 %v4012
  %4054 = vmatprep.subr.bf16.mxu0 %v4016
  %4055 = vmatpush1.bf16.msra.mxu0 %v4015
  %4056 = vmatprep.mubr.bf16.mxu0 %v3383
  %4057 = vmatmul.mubr.bf16.gmra.mrb[0].mxu0 %v3382
  %v4058 = vpop.f32.mrb[0].mxu0
  %v4059 = vadd.f32 %v3345, %v4058
  %v4060 = vpop.f32.mrb[0].mxu0
  %v4061 = vadd.f32 %v3345, %v4060
  %v4062 = vpop.f32.mrb[0].mxu0
  %v4063 = vadd.f32 %v3350, %v4062
  %v4064 = vpop.f32.mrb[0].mxu0
  %v4065 = vadd.f32 %v3350, %v4064
  %4066 = vmatprep.mubr.bf16.mxu0 %v3386
  %4067 = vmatmul.mubr.bf16.gmra.mrb[0].mxu0 %v3385
  %v4068 = vpop.f32.mrb[0].mxu0
  %v4069 = vadd.f32 %v3355, %v4068
  %v4070 = vpop.f32.mrb[0].mxu0
  %v4071 = vadd.f32 %v3355, %v4070
  %v4072 = vpop.f32.mrb[0].mxu0
  %v4073 = vadd.f32 %v3360, %v4072
  %v4074 = vpop.f32.mrb[0].mxu0
  %v4075 = vadd.f32 %v3360, %v4074
  %4076 = vdwg.mxu0
  %4077 = vmatprep.subr.bf16.mxu0 %v4019
  %4078 = vmatpush1.bf16.msra.mxu0 %v4018
  %4079 = vmatprep.subr.bf16.mxu0 %v4022
  %4080 = vmatpush1.bf16.msra.mxu0 %v4021
  %4081 = vmatprep.subr.bf16.mxu0 0
  %4082 = vmatpush1.bf16.msra.mxu0 0
  %4083 = vmatprep.subr.bf16.mxu0 0
  %4084 = vmatpush1.bf16.msra.mxu0 0
  %4085 = vmatprep.subr.bf16.mxu0 0
  %4086 = vmatpush1.bf16.msra.mxu0 0
  %4087 = vmatprep.subr.bf16.mxu0 0
  %4088 = vmatpush1.bf16.msra.mxu0 0
  %4089 = vmatprep.subr.bf16.mxu0 0
  %4090 = vmatpush1.bf16.msra.mxu0 0
  %4091 = vmatprep.subr.bf16.mxu0 0
  %4092 = vmatpush1.bf16.msra.mxu0 0
  %4093 = vmatprep.subr.bf16.mxu0 0
  %4094 = vmatpush1.bf16.msra.mxu0 0
  %4095 = vmatprep.subr.bf16.mxu0 0
  %4096 = vmatpush1.bf16.msra.mxu0 0
  %4097 = vmatprep.subr.bf16.mxu0 0
  %4098 = vmatpush1.bf16.msra.mxu0 0
  %4099 = vmatprep.subr.bf16.mxu0 0
  %4100 = vmatpush1.bf16.msra.mxu0 0
  %4101 = vmatprep.subr.bf16.mxu0 0
  %4102 = vmatpush1.bf16.msra.mxu0 0
  %4103 = vmatprep.subr.bf16.mxu0 0
  %4104 = vmatpush1.bf16.msra.mxu0 0
  %4105 = vmatprep.subr.bf16.mxu0 0
  %4106 = vmatpush1.bf16.msra.mxu0 0
  %4107 = vmatprep.subr.bf16.mxu0 0
  %4108 = vmatpush1.bf16.msra.mxu0 0
  %4109 = vmatprep.mubr.bf16.mxu0 0
  %4110 = vmatmul.mubr.bf16.gmra.mrb[0].mxu0 %v3393
  %v4111 = vpop.f32.mrb[0].mxu0
  %v4112 = vadd.f32 %v4059, %v4111
  %v4113 = vpop.f32.mrb[0].mxu0
  %v4114 = vadd.f32 %v4061, %v4113
  %v4115 = vpop.f32.mrb[0].mxu0
  %v4116 = vadd.f32 %v4063, %v4115
  %v4117 = vpop.f32.mrb[0].mxu0
  %v4118 = vadd.f32 %v4065, %v4117
  %4119 = vmatprep.mubr.bf16.mxu0 0
  %4120 = vmatmul.mubr.bf16.gmra.mrb[0].mxu0 %v3396
  %v4121 = vpop.f32.mrb[0].mxu0
  %v4122 = vadd.f32 %v4069, %v4121
  %v4123 = vpop.f32.mrb[0].mxu0
  %v4124 = vadd.f32 %v4071, %v4123
  %v4125 = vpop.f32.mrb[0].mxu0
  %v4126 = vadd.f32 %v4073, %v4125
  %v4127 = vpop.f32.mrb[0].mxu0
  %v4128 = vadd.f32 %v4075, %v4127
  %4129 = vdwg.mxu0
  %4130 = vmatprep.subr.bf16.mxu0 0
  %4131 = vmatpush1.bf16.msra.mxu0 %v3972
  %4132 = vmatprep.subr.bf16.mxu0 0
  %4133 = vmatpush1.bf16.msra.mxu0 %v3975
  %4134 = vmatprep.subr.bf16.mxu0 0
  %4135 = vmatpush1.bf16.msra.mxu0 %v3978
  %4136 = vmatprep.subr.bf16.mxu0 0
  %4137 = vmatpush1.bf16.msra.mxu0 %v3981
  %4138 = vmatprep.subr.bf16.mxu0 0
  %4139 = vmatpush1.bf16.msra.mxu0 %v3984
  %4140 = vmatprep.subr.bf16.mxu0 0
  %4141 = vmatpush1.bf16.msra.mxu0 %v3987
  %4142 = vmatprep.subr.bf16.mxu0 0
  %4143 = vmatpush1.bf16.msra.mxu0 %v3990
  %4144 = vmatprep.subr.bf16.mxu0 0
  %4145 = vmatpush1.bf16.msra.mxu0 %v3993
  %4146 = vmatprep.subr.bf16.mxu0 0
  %4147 = vmatpush1.bf16.msra.mxu0 %v3996
  %4148 = vmatprep.subr.bf16.mxu0 0
  %4149 = vmatpush1.bf16.msra.mxu0 %v3999
  %4150 = vmatprep.subr.bf16.mxu0 0
  %4151 = vmatpush1.bf16.msra.mxu0 %v4002
  %4152 = vmatprep.subr.bf16.mxu0 0
  %4153 = vmatpush1.bf16.msra.mxu0 %v4005
  %4154 = vmatprep.subr.bf16.mxu0 0
  %4155 = vmatpush1.bf16.msra.mxu0 %v4008
  %4156 = vmatprep.subr.bf16.mxu0 0
  %4157 = vmatpush1.bf16.msra.mxu0 %v4011
  %4158 = vmatprep.subr.bf16.mxu0 0
  %4159 = vmatpush1.bf16.msra.mxu0 %v4014
  %4160 = vmatprep.subr.bf16.mxu0 0
  %4161 = vmatpush1.bf16.msra.mxu0 %v4017
  %4162 = vmatprep.mubr.bf16.mxu0 %v3383
  %4163 = vmatmul.mubr.bf16.gmra.mrb[0].mxu0 %v3382
  %v4164 = vpop.f32.mrb[0].mxu0
  %v4165 = vadd.f32 %v3345, %v4164
  %v4166 = vpop.f32.mrb[0].mxu0
  %v4167 = vpop.f32.mrb[0].mxu0
  %v4168 = vadd.f32 %v3350, %v4167
  %v4169 = vpop.f32.mrb[0].mxu0
  %4170 = vmatprep.mubr.bf16.mxu0 %v3386
  %4171 = vmatmul.mubr.bf16.gmra.mrb[0].mxu0 %v3385
  %v4172 = vpop.f32.mrb[0].mxu0
  %v4173 = vadd.f32 %v3355, %v4172
  %v4174 = vpop.f32.mrb[0].mxu0
  %v4175 = vpop.f32.mrb[0].mxu0
  %v4176 = vadd.f32 %v3360, %v4175
  %v4177 = vpop.f32.mrb[0].mxu0
  %4178 = vdwg.mxu0
  %4179 = vmatprep.subr.bf16.mxu0 0
  %4180 = vmatpush1.bf16.msra.mxu0 %v4020
  %4181 = vmatprep.subr.bf16.mxu0 0
  %4182 = vmatpush1.bf16.msra.mxu0 %v4023
  %4183 = vmatprep.subr.bf16.mxu0 0
  %4184 = vmatpush1.bf16.msra.mxu0 0
  %4185 = vmatprep.subr.bf16.mxu0 0
  %4186 = vmatpush1.bf16.msra.mxu0 0
  %4187 = vmatprep.subr.bf16.mxu0 0
  %4188 = vmatpush1.bf16.msra.mxu0 0
  %4189 = vmatprep.subr.bf16.mxu0 0
  %4190 = vmatpush1.bf16.msra.mxu0 0
  %4191 = vmatprep.subr.bf16.mxu0 0
  %4192 = vmatpush1.bf16.msra.mxu0 0
  %4193 = vmatprep.subr.bf16.mxu0 0
  %4194 = vmatpush1.bf16.msra.mxu0 0
  %4195 = vmatprep.subr.bf16.mxu0 0
  %4196 = vmatpush1.bf16.msra.mxu0 0
  %4197 = vmatprep.subr.bf16.mxu0 0
  %4198 = vmatpush1.bf16.msra.mxu0 0
  %4199 = vmatprep.subr.bf16.mxu0 0
  %4200 = vmatpush1.bf16.msra.mxu0 0
  %4201 = vmatprep.subr.bf16.mxu0 0
  %4202 = vmatpush1.bf16.msra.mxu0 0
  %4203 = vmatprep.subr.bf16.mxu0 0
  %4204 = vmatpush1.bf16.msra.mxu0 0
  %4205 = vmatprep.subr.bf16.mxu0 0
  %4206 = vmatpush1.bf16.msra.mxu0 0
  %4207 = vmatprep.subr.bf16.mxu0 0
  %4208 = vmatpush1.bf16.msra.mxu0 0
  %4209 = vmatprep.subr.bf16.mxu0 0
  %4210 = vmatpush1.bf16.msra.mxu0 0
  %4211 = vmatprep.mubr.bf16.mxu0 0
  %4212 = vmatmul.mubr.bf16.gmra.mrb[0].mxu0 %v3393
  %v4213 = vpop.f32.mrb[0].mxu0
  %v4214 = vadd.f32 %v4165, %v4213
  %v4215 = vpop.f32.mrb[0].mxu0
  %v4216 = vpop.f32.mrb[0].mxu0
  %v4217 = vadd.f32 %v4168, %v4216
  %v4218 = vpop.f32.mrb[0].mxu0
  %4219 = vmatprep.mubr.bf16.mxu0 0
  %4220 = vmatmul.mubr.bf16.gmra.mrb[0].mxu0 %v3396
  %v4221 = vpop.f32.mrb[0].mxu0
  %v4222 = vadd.f32 %v4173, %v4221
  %v4223 = vpop.f32.mrb[0].mxu0
  %v4224 = vpop.f32.mrb[0].mxu0
  %v4225 = vadd.f32 %v4176, %v4224
  %v4226 = vpop.f32.mrb[0].mxu0
  %4227 = vdwg.mxu0
  %v4228 = vmax.f32 %v4112, 0.0
  %v4229 = vmax.f32 %v4114, 0.0
  %v4230 = vmax.f32 %v4214, 0.0
  %v4231 = vmax.f32 %v4116, 0.0
  %v4232 = vmax.f32 %v4118, 0.0
  %v4233 = vmax.f32 %v4217, 0.0
  %v4234 = vmax.f32 %v4122, 0.0
  %v4235 = vmax.f32 %v4124, 0.0
  %v4236 = vmax.f32 %v4222, 0.0
  %v4237 = vmax.f32 %v4126, 0.0
  %v4238 = vmax.f32 %v4128, 0.0
  %v4239 = vmax.f32 %v4225, 0.0
  %v4240 = vsel %vm851, %v4228, 0.0
  %v4241 = vsel %vm852, %v4229, 0.0
  %v4242 = vsel %vm853, %v4230, 0.0
  %v4243 = vsel %vm851, %v4231, 0.0
  %v4244 = vsel %vm852, %v4232, 0.0
  %v4245 = vsel %vm853, %v4233, 0.0
  %v4246 = vsel %vm851, %v4234, 0.0
  %v4247 = vsel %vm852, %v4235, 0.0
  %v4248 = vsel %vm853, %v4236, 0.0
  %v4249 = vsel %vm851, %v4237, 0.0
  %v4250 = vsel %vm852, %v4238, 0.0
  %v4251 = vsel %vm853, %v4239, 0.0
  %s4252 = scalar_lea.vmem %s3, 96
  %4253 = vst [vmem:[%s4252] sm:$0xff] %v4240
  %4254 = vst [vmem:[%s4252 + $0x8] sm:$0xff] %v4241
  %4255 = vst.msk [vmem:[%s4252 + $0x10] sm:$0xff] %vm189, %v4242
  %4256 = vst [vmem:[%s4252 + $0x18] sm:$0xff] %v4243
  %4257 = vst [vmem:[%s4252 + $0x20] sm:$0xff] %v4244
  %4258 = vst.msk [vmem:[%s4252 + $0x28] sm:$0xff] %vm189, %v4245
  %4259 = vst [vmem:[%s4252 + $0x30] sm:$0xff] %v4246
  %4260 = vst [vmem:[%s4252 + $0x38] sm:$0xff] %v4247
  %4261 = vst.msk [vmem:[%s4252 + $0x40] sm:$0xff] %vm189, %v4248
  %4262 = vst [vmem:[%s4252 + $0x48] sm:$0xff] %v4249
  %4263 = vst [vmem:[%s4252 + $0x50] sm:$0xff] %v4250
  %4264 = vst.msk [vmem:[%s4252 + $0x58] sm:$0xff] %vm189, %v4251
  // Predicated region
  $region14: #{convnet_forward.1} parent=0 // pred_check
    _
  $region15: #{convnet_forward.1} parent=0 // pred_check_branch
    %4266 = sbr.rel (0) target = $region17
  $region16: #{convnet_forward.1} parent=0 // pred_region
    _
  $region17: #{convnet_forward.1} parent=0 // pred_fallthru
    _
  // Predicated region
  $region18: #{convnet_forward.1} parent=0 // pred_check
    _
  $region19: #{convnet_forward.1} parent=0 // pred_check_branch
    %4268 = sbr.rel (0) target = $region21
  $region20: #{convnet_forward.1} parent=0 // pred_region
    _
  $region21: #{convnet_forward.1} parent=0 // pred_fallthru
    _

</llo_original>
